<compile_context>
chip_gen: v5e
topology: v5e:2x2
jax: 0.10.0
libtpu: 0.0.40
codegen_flags: <defaults>
</compile_context>

<pallas_src>
import math

import jax
import jax.numpy as jnp
from jax.experimental import pallas as pl
from jax.experimental.pallas import tpu as pltpu

EPS = 1e-15
EMBEDDING_DIM = 128   # hidden_channels in the PyTorch module
NUM_TCN = 7           # num_cluster1 in the PyTorch module
LANES = 128


def _vmem_limit_bytes():
    # ~112 MiB on 128-MiB parts (v5e/v6e), ~56 MiB on v7x (64 MiB / TC).
    cap = 128 << 20
    try:
        cap = int(pltpu.get_tpu_info().vmem_capacity_bytes)
    except Exception:
        pass
    return int(max(32 << 20, min(cap - (8 << 20), 112 << 20)))


def _choose_stripe(n128, vmem_limit):
    """Largest adjacency row-stripe (multiple of 128) that fits in VMEM."""
    fixed = 4 << 20                                    # weights, accumulators, headroom
    # linear-in-N residents: [x|1] (bf16, 128-lane padded, 2 bufs) + S scratch (bf16)
    linear = n128 * (2 * LANES * 2 + LANES * 2)
    budget = max(vmem_limit - fixed - linear, 2 << 20)
    # per stripe-row cost: adjacency (bf16, 2 bufs) + logits output block (f32, 2 bufs)
    per_row = 2 * (n128 * 2 + LANES * 4)
    tn = (budget // per_row) // 128 * 128
    return int(max(128, min(n128, tn)))


def _make_kernel(n_valid, tn, c, h, k, p, n_stripes):
    inv_sqrt_k = 1.0 / math.sqrt(k)

    def kernel(xall_ref, adj_ref, wrel_ref, brel_ref, wroot_ref, wpool_ref, bpool_ref,
               logp_ref, mc_ref, ortho_ref, s_ref, adjout_ref,
               s_scr, pooled_x, pooled_ss, pooled_adj, den_acc):
        phase = pl.program_id(1)
        stripe = pl.program_id(2)
        off = pl.multiple_of(stripe * tn, tn)

        adj_i = adj_ref[0]                          # (tn, n_pad) bf16 row-stripe of A

        # ---- phase 0: DenseGraphConv + ReLU + pool logits + softmax
        #      + all stripe-local (S-side) reductions.
        @pl.when(phase == 0)
        def _embed():
            @pl.when(stripe == 0)
            def _init():
                pooled_x[...] = jnp.zeros_like(pooled_x)
                pooled_ss[...] = jnp.zeros_like(pooled_ss)
                den_acc[...] = jnp.zeros_like(den_acc)

            x_all = xall_ref[0]                                   # (n_pad, c+1) bf16
            x_i = xall_ref[0, pl.ds(off, tn), :].astype(jnp.float32)

            # A @ [X | 1]: lanes < c give A.X, lane c gives the degree vector.
            ax_aug = jnp.dot(adj_i, x_all, preferred_element_type=jnp.float32)
            d_i = ax_aug[:, c:c + 1]                              # (tn, 1) degrees

            # DenseGraphConv(aggr='add'): lin_rel(A @ x) + lin_root(x); the ones
            # lane hits zero-padded weight rows.  Then ReLU.
            hi = (jnp.dot(ax_aug, wrel_ref[...], preferred_element_type=jnp.float32)
                  + brel_ref[...]
                  + jnp.dot(x_i, wroot_ref[...], preferred_element_type=jnp.float32))
            hi = jnp.maximum(hi, 0.0)                             # (tn, h) f32

            # pool1 logits; zero-padded weights -> lane-dense 128-wide store,
            # lanes >= k stay exactly 0.
            s_logits = (jnp.dot(hi, wpool_ref[...], preferred_element_type=jnp.float32)
                        + bpool_ref[...])
            s_ref[0] = s_logits

            # softmax over the first k lanes (exact divide for reference parity)
            lane = jax.lax.broadcasted_iota(jnp.int32, (tn, p), 1)
            logits_m = jnp.where(lane < k, s_logits, -1e30)
            mx = jnp.max(logits_m, axis=-1, keepdims=True)
            e = jnp.exp(logits_m - mx)
            s = e / jnp.sum(e, axis=-1, keepdims=True)            # lanes >= k are 0
            row = off + jax.lax.broadcasted_iota(jnp.int32, (tn, p), 0)
            s = jnp.where(row < n_valid, s, 0.0)                  # zero padded rows
            s_scr[pl.ds(off, tn), :] = s.astype(jnp.bfloat16)

            # stripe-local pooled reductions (f32 MXU; tiny next to the A@X stream)
            pooled_x[...] += jax.lax.dot_general(
                s, hi, (((0,), (0,)), ((), ())),
                preferred_element_type=jnp.float32)               # S^T H  (p, h)
            pooled_ss[...] += jax.lax.dot_general(
                s, s, (((0,), (0,)), ((), ())),
                preferred_element_type=jnp.float32)               # S^T S  (p, p)
            den_acc[...] += jnp.sum(d_i * s * s, axis=0, keepdims=True)

        # ---- phase 1: S^T A S only (needs the full S, hence the second pass on A)
        @pl.when(phase == 1)
        def _pool():
            @pl.when(stripe == 0)
            def _init():
                pooled_adj[...] = jnp.zeros_like(pooled_adj)

            si = s_scr[pl.ds(off, tn), :]                         # (tn, p) bf16
            s_all = s_scr[...]                                    # (n_pad, p) bf16
            as_i = jnp.dot(adj_i, s_all, preferred_element_type=jnp.float32)
            pooled_adj[...] += jax.lax.dot_general(
                si, as_i.astype(jnp.bfloat16), (((0,), (0,)), ((), ())),
                preferred_element_type=jnp.float32)               # S^T A S  (p, p)

            @pl.when(stripe == n_stripes - 1)
            def _finalize():
                out_x = pooled_x[0:k, :]                          # (k, h)
                ss = pooled_ss[0:k, 0:k]                          # (k, k)
                out_adj = pooled_adj[0:k, 0:k]                    # (k, k)

                r = jax.lax.broadcasted_iota(jnp.int32, (k, k), 0)
                cc = jax.lax.broadcasted_iota(jnp.int32, (k, k), 1)
                eye = (r == cc).astype(jnp.float32)

                # MinCut loss: -trace(S^T A S) / trace(S^T D S)
                num = jnp.sum(out_adj * eye, axis=(0, 1), keepdims=True)   # (1, 1)
                den = jnp.sum(den_acc[...], axis=(0, 1), keepdims=True)    # (1, 1)
                mc_ref[...] = (-(num / den)).reshape(1, 1, 1)

                # Orthogonality loss
                ssn = jnp.sqrt(jnp.sum(ss * ss, axis=(0, 1), keepdims=True))
                diff = ss / ssn - eye * inv_sqrt_k
                ortho_ref[...] = jnp.sqrt(
                    jnp.sum(diff * diff, axis=(0, 1), keepdims=True)).reshape(1, 1, 1)

                # zero diagonal + symmetric degree normalization (exact divides)
                adj_z = out_adj * (1.0 - eye)
                ones_col = jnp.ones((k, 1), dtype=jnp.float32)
                rs_col = jnp.dot(adj_z, ones_col,
                                 preferred_element_type=jnp.float32)       # (k, 1) rowsums
                rs_row = jax.lax.dot_general(
                    ones_col, adj_z, (((0,), (1,)), ((), ())),
                    preferred_element_type=jnp.float32)                    # (1, k) rowsums
                adjout_ref[0] = (adj_z / (jnp.sqrt(rs_row) + EPS)
                                 / (jnp.sqrt(rs_col) + EPS))

                # log_softmax of the pooled node features
                xm = out_x - jnp.max(out_x, axis=-1, keepdims=True)
                lse = jnp.log(jnp.sum(jnp.exp(xm), axis=-1, keepdims=True))
                logp_ref[0] = xm - lse

    return kernel


def net_forward(x, adj, params, *, stripe=None):
    """Forward pass of CytoCommunity Step2 `Net` (mask=None path)."""
    B, N, C = x.shape
    H = params["w_rel"].shape[1]
    K = params["w_pool"].shape[1]
    P = LANES
    assert K <= P
    C1 = C + 1

    vmem_limit = _vmem_limit_bytes()
    n128 = pl.cdiv(N, 128) * 128
    if stripe is None:
        stripe = _choose_stripe(n128, vmem_limit)
    TN = max(128, (int(stripe) // 128) * 128)
    N_pad = pl.cdiv(N, TN) * TN
    n_stripes = N_pad // TN

    # Boundary casts / padding (0/1 adjacency is exact in bf16).  The extra ones
    # feature lane makes A @ [X | 1] return the degree vector for free; the
    # matching weight rows are zero-padded so it never perturbs the hidden.
    x_pad = jnp.pad(x.astype(jnp.float32), ((0, 0), (0, N_pad - N), (0, 0)))
    ones = jnp.ones((B, N_pad, 1), jnp.float32)
    x_aug = jnp.concatenate([x_pad, ones], axis=-1).astype(jnp.bfloat16)
    adj_p = jnp.pad(adj, ((0, 0), (0, N_pad - N), (0, N_pad - N))).astype(jnp.bfloat16)

    w_rel = jnp.pad(params["w_rel"].astype(jnp.float32), ((0, 1), (0, 0)))    # (C1, H)
    w_root = jnp.pad(params["w_root"].astype(jnp.float32), ((0, 1), (0, 0)))  # (C1, H)
    b_rel = params["b_rel"].astype(jnp.float32).reshape(1, H)
    w_pool = jnp.pad(params["w_pool"].astype(jnp.float32), ((0, 0), (0, P - K)))
    b_pool = jnp.pad(params["b_pool"].astype(jnp.float32).reshape(1, K),
                     ((0, 0), (0, P - K)))

    kernel = _make_kernel(N, TN, C, H, K, P, n_stripes)

    out_shape = (
        jax.ShapeDtypeStruct((B, K, H), jnp.float32),      # log_softmax(pooled x)
        jax.ShapeDtypeStruct((B, 1, 1), jnp.float32),      # mincut loss per batch
        jax.ShapeDtypeStruct((B, 1, 1), jnp.float32),      # ortho loss per batch
        jax.ShapeDtypeStruct((B, N_pad, P), jnp.float32),  # cluster-assign logits (padded)
        jax.ShapeDtypeStruct((B, K, K), jnp.float32),      # coarsened adjacency
    )

    def s_out_map(b, ph, i):
        # phase 0: write stripe i; phase 1: stay pinned on the last phase-0 block
        # so the output block is never revisited (no recompute / garbage writeback).
        return (b, i * (1 - ph) + (n_stripes - 1) * ph, 0)

    grid_spec = pltpu.PrefetchScalarGridSpec(
        num_scalar_prefetch=0,
        grid=(B, 2, n_stripes),
        in_specs=[
            pl.BlockSpec((1, N_pad, C1), lambda b, ph, i: (b, 0, 0)),   # full [x | 1]
            pl.BlockSpec((1, TN, N_pad), lambda b, ph, i: (b, i, 0)),   # adjacency stripe
            pl.BlockSpec((C1, H), lambda b, ph, i: (0, 0)),             # w_rel (padded)
            pl.BlockSpec((1, H), lambda b, ph, i: (0, 0)),              # b_rel
            pl.BlockSpec((C1, H), lambda b, ph, i: (0, 0)),             # w_root (padded)
            pl.BlockSpec((H, P), lambda b, ph, i: (0, 0)),              # w_pool (padded)
            pl.BlockSpec((1, P), lambda b, ph, i: (0, 0)),              # b_pool (padded)
        ],
        out_specs=[
            pl.BlockSpec((1, K, H), lambda b, ph, i: (b, 0, 0)),
            pl.BlockSpec((1, 1, 1), lambda b, ph, i: (b, 0, 0)),
            pl.BlockSpec((1, 1, 1), lambda b, ph, i: (b, 0, 0)),
            pl.BlockSpec((1, TN, P), s_out_map),
            pl.BlockSpec((1, K, K), lambda b, ph, i: (b, 0, 0)),
        ],
        scratch_shapes=[
            pltpu.VMEM((N_pad, P), jnp.bfloat16),     # softmax(S)
            pltpu.VMEM((P, H), jnp.float32),          # S^T X accumulator
            pltpu.VMEM((P, P), jnp.float32),          # S^T S accumulator
            pltpu.VMEM((P, P), jnp.float32),          # S^T A S accumulator
            pltpu.VMEM((1, P), jnp.float32),          # mincut denominator accumulator
        ],
    )

    logp, mc_b, o_b, s_logits_pad, out_adj = pl.pallas_call(
        kernel,
        out_shape=out_shape,
        grid_spec=grid_spec,
        compiler_params=pltpu.CompilerParams(
            dimension_semantics=("parallel", "arbitrary", "arbitrary"),
            vmem_limit_bytes=vmem_limit,
        ),
    )(x_aug, adj_p, w_rel, b_rel, w_root, w_pool, b_pool)

    # torch.mean over batch + unpad (glue)
    mincut_loss = jnp.mean(mc_b)
    ortho_loss = jnp.mean(o_b)
    s_logits = s_logits_pad[:, :N, :K]
    return logp, mincut_loss, ortho_loss, s_logits, out_adj


def net_reference(x, adj, params):
    """Pure-JAX mirror of the PyTorch forward (for verification)."""
    w_rel, b_rel = params["w_rel"], params["b_rel"]
    w_root, w_pool, b_pool = params["w_root"], params["w_pool"], params["b_pool"]
    h = jnp.einsum("bnm,bmc->bnc", adj, x)
    h = h @ w_rel + b_rel + x @ w_root
    h = jax.nn.relu(h)
    s_logits = h @ w_pool + b_pool
    s = jax.nn.softmax(s_logits, axis=-1)
    out_x = jnp.einsum("bnk,bnh->bkh", s, h)
    out_adj = jnp.einsum("bnk,bnm,bml->bkl", s, adj, s)
    mincut_num = jnp.trace(out_adj, axis1=-2, axis2=-1)
    d_flat = adj.sum(-1)
    mincut_den = jnp.einsum("bnk,bn,bnk->b", s, d_flat, s)
    mincut_loss = jnp.mean(-(mincut_num / mincut_den))
    ss = jnp.einsum("bnk,bnl->bkl", s, s)
    K = s.shape[-1]
    i_s = jnp.eye(K, dtype=jnp.float32)
    ss_norm = jnp.sqrt(jnp.sum(ss * ss, axis=(-2, -1), keepdims=True))
    ortho = jnp.sqrt(jnp.sum((ss / ss_norm - i_s / jnp.sqrt(jnp.float32(K))) ** 2,
                             axis=(-2, -1)))
    ortho_loss = jnp.mean(ortho)
    out_adj = out_adj * (1.0 - i_s)
    d = jnp.sqrt(out_adj.sum(-1))[:, None, :] + EPS
    out_adj = (out_adj / d) / jnp.swapaxes(d, -2, -1)
    logp = jax.nn.log_softmax(out_x, axis=-1)
    return logp, mincut_loss, ortho_loss, s_logits, out_adj


def init_params(key, in_channels, hidden_channels=EMBEDDING_DIM, num_clusters=NUM_TCN):
    k1, k2, k3, k4 = jax.random.split(key, 4)
    # Linear weights stored as (in, out); lin_rel has a bias, lin_root has none.
    return {
        "w_rel": 0.1 * jax.random.normal(k1, (in_channels, hidden_channels), jnp.float32),
        "b_rel": 0.05 * jax.random.normal(k2, (1, hidden_channels), jnp.float32),
        "w_root": 0.1 * jax.random.normal(k3, (in_channels, hidden_channels), jnp.float32),
        "w_pool": 0.1 * jax.random.normal(k4, (hidden_channels, num_clusters), jnp.float32),
        "b_pool": jnp.zeros((1, num_clusters), jnp.float32),
    }


if __name__ == "__main__":
    B, N, C = 2, 16, 4
    key = jax.random.PRNGKey(0)
    kx, ka, kp = jax.random.split(key, 3)

    x = jax.random.normal(kx, (B, N, C), jnp.float32)
    a = (jax.random.uniform(ka, (B, N, N)) > 0.6).astype(jnp.float32)
    adj = jnp.maximum(a, jnp.swapaxes(a, -2, -1))   # symmetric 0/1 adjacency

    params = init_params(kp, C)

    outs = net_forward(x, adj, params)
    outs = jax.block_until_ready(outs)

    refs = net_reference(x, adj, params)
    names = ("logp", "mincut", "ortho", "s_logits", "out_adj")
    for name, got, ref in zip(names, outs, refs):
        assert jnp.allclose(got, ref, rtol=2e-2, atol=2e-2), f"mismatch vs reference: {name}"

    print("KERNEL_OK")
</pallas_src>

<mosaic_0001>
module attributes {stable_mosaic.version = 11 : i64} {
  func.func @kernel(%arg0: i32, %arg1: i32, %arg2: i32, %arg3: memref<1x128x5xbf16, #tpu.memory_space<vmem>>, %arg4: memref<1x128x128xbf16, #tpu.memory_space<vmem>>, %arg5: memref<5x128xf32, #tpu.memory_space<vmem>>, %arg6: memref<1x128xf32, #tpu.memory_space<vmem>>, %arg7: memref<5x128xf32, #tpu.memory_space<vmem>>, %arg8: memref<128x128xf32, #tpu.memory_space<vmem>>, %arg9: memref<1x128xf32, #tpu.memory_space<vmem>>, %arg10: memref<1x7x128xf32, #tpu.memory_space<vmem>>, %arg11: memref<1x1x1xf32, #tpu.memory_space<vmem>>, %arg12: memref<1x1x1xf32, #tpu.memory_space<vmem>>, %arg13: memref<1x128x128xf32, #tpu.memory_space<vmem>>, %arg14: memref<1x7x7xf32, #tpu.memory_space<vmem>>, %arg15: memref<128x128xbf16, #tpu.memory_space<vmem>>, %arg16: memref<128x128xf32, #tpu.memory_space<vmem>>, %arg17: memref<128x128xf32, #tpu.memory_space<vmem>>, %arg18: memref<128x128xf32, #tpu.memory_space<vmem>>, %arg19: memref<1x128xf32, #tpu.memory_space<vmem>>) attributes {dimension_semantics = [#tpu.dimension_semantics<parallel>, #tpu.dimension_semantics<arbitrary>, #tpu.dimension_semantics<arbitrary>], iteration_bounds = array<i64: 2, 2, 1>, scalar_prefetch = 0 : i64, scratch_operands = 5 : i64, tpu.core_type = #tpu.core_type<tc>, window_params = [{transform_indices = @transform_0, window_bounds = array<i64: 1, 128, 5>}, {transform_indices = @transform_1, window_bounds = array<i64: 1, 128, 128>}, {pipeline_mode = #tpu.pipeline_mode<synchronous>, transform_indices = @transform_2, window_bounds = array<i64: 5, 128>}, {pipeline_mode = #tpu.pipeline_mode<synchronous>, transform_indices = @transform_3, window_bounds = array<i64: 1, 128>}, {pipeline_mode = #tpu.pipeline_mode<synchronous>, transform_indices = @transform_4, window_bounds = array<i64: 5, 128>}, {pipeline_mode = #tpu.pipeline_mode<synchronous>, transform_indices = @transform_5, window_bounds = array<i64: 128, 128>}, {pipeline_mode = #tpu.pipeline_mode<synchronous>, transform_indices = @transform_6, window_bounds = array<i64: 1, 128>}, {transform_indices = @transform_7, window_bounds = array<i64: 1, 7, 128>}, {transform_indices = @transform_8, window_bounds = array<i64: 1, 1, 1>}, {transform_indices = @transform_9, window_bounds = array<i64: 1, 1, 1>}, {transform_indices = @transform_10, window_bounds = array<i64: 1, 128, 128>}, {transform_indices = @transform_11, window_bounds = array<i64: 1, 7, 7>}]} {
    %c128_i32 = arith.constant 128 : i32
    %0 = arith.muli %arg2, %c128_i32 : i32
    %1 = tpu.assume_multiple %0, 128 : i32
    %c0 = arith.constant 0 : index
    %c0_0 = arith.constant 0 : index
    %c0_1 = arith.constant 0 : index
    %2 = vector.load %arg4[%c0, %c0_0, %c0_1] : memref<1x128x128xbf16, #tpu.memory_space<vmem>>, vector<1x128x128xbf16>
    %3 = vector.shape_cast %2 : vector<1x128x128xbf16> to vector<128x128xbf16>
    %c0_i32 = arith.constant 0 : i32
    %4 = arith.cmpi eq, %arg1, %c0_i32 : i32
    %5 = arith.extui %4 : i1 to i32
    %c0_i32_2 = arith.constant 0 : i32
    %6 = arith.cmpi ne, %5, %c0_i32_2 : i32
    scf.if %6 {
      %c0_i32_4 = arith.constant 0 : i32
      %10 = arith.cmpi eq, %arg2, %c0_i32_4 : i32
      %11 = arith.extui %10 : i1 to i32
      %c0_i32_5 = arith.constant 0 : i32
      %12 = arith.cmpi ne, %11, %c0_i32_5 : i32
      scf.if %12 {
        %cst_48 = arith.constant 0.000000e+00 : f32
        %79 = vector.broadcast %cst_48 : f32 to vector<128x128xf32>
        %c0_49 = arith.constant 0 : index
        %c0_50 = arith.constant 0 : index
        %80 = vector.load %arg16[%c0_49, %c0_50] : memref<128x128xf32, #tpu.memory_space<vmem>>, vector<128x128xf32>
        tpu.vector_store %arg16[%c0_49, %c0_50], %79 {strides = array<i32>} : memref<128x128xf32, #tpu.memory_space<vmem>>, vector<128x128xf32>,
        %cst_51 = arith.constant 0.000000e+00 : f32
        %81 = vector.broadcast %cst_51 : f32 to vector<128x128xf32>
        %c0_52 = arith.constant 0 : index
        %c0_53 = arith.constant 0 : index
        %82 = vector.load %arg17[%c0_52, %c0_53] : memref<128x128xf32, #tpu.memory_space<vmem>>, vector<128x128xf32>
        tpu.vector_store %arg17[%c0_52, %c0_53], %81 {strides = array<i32>} : memref<128x128xf32, #tpu.memory_space<vmem>>, vector<128x128xf32>,
        %cst_54 = arith.constant 0.000000e+00 : f32
        %83 = vector.broadcast %cst_54 : f32 to vector<1x128xf32>
        %c0_55 = arith.constant 0 : index
        %c0_56 = arith.constant 0 : index
        %84 = vector.load %arg19[%c0_55, %c0_56] : memref<1x128xf32, #tpu.memory_space<vmem>>, vector<1x128xf32>
        tpu.vector_store %arg19[%c0_55, %c0_56], %83 {strides = array<i32>} : memref<1x128xf32, #tpu.memory_space<vmem>>, vector<1x128xf32>,
      } else {
      }
      %c0_6 = arith.constant 0 : index
      %c0_7 = arith.constant 0 : index
      %c0_8 = arith.constant 0 : index
      %13 = vector.load %arg3[%c0_6, %c0_7, %c0_8] : memref<1x128x5xbf16, #tpu.memory_space<vmem>>, vector<1x128x5xbf16>
      %14 = vector.shape_cast %13 : vector<1x128x5xbf16> to vector<128x5xbf16>
      %c0_9 = arith.constant 0 : index
      %15 = arith.index_cast %1 : i32 to index
      %c0_10 = arith.constant 0 : index
      %16 = vector.load %arg3[%c0_9, %15, %c0_10] : memref<1x128x5xbf16, #tpu.memory_space<vmem>>, vector<1x128x5xbf16>
      %17 = vector.shape_cast %16 : vector<1x128x5xbf16> to vector<128x5xbf16>
      %18 = arith.extf %17 : vector<128x5xbf16> to vector<128x5xf32>
      %cst = arith.constant dense<0.000000e+00> : vector<128x5xf32>
      %19 = tpu.matmul %3, %14, %cst {dimension_numbers = #tpu.dot_dimension_numbers<[1], [0], [0], [1], [0, 0, 1, 1], [], []>} : vector<128x128xbf16>, vector<128x5xbf16>, vector<128x5xf32> -> vector<128x5xf32>
      %20 = vector.extract_strided_slice %19 {offsets = [0, 4], sizes = [128, 1], strides = [1, 1]} : vector<128x5xf32> to vector<128x1xf32>
      %c0_11 = arith.constant 0 : index
      %c0_12 = arith.constant 0 : index
      %21 = vector.load %arg5[%c0_11, %c0_12] : memref<5x128xf32, #tpu.memory_space<vmem>>, vector<5x128xf32>
      %cst_13 = arith.constant dense<0.000000e+00> : vector<128x128xf32>
      %22 = tpu.matmul %19, %21, %cst_13 {dimension_numbers = #tpu.dot_dimension_numbers<[1], [0], [0], [1], [0, 0, 1, 1], [], []>} : vector<128x5xf32>, vector<5x128xf32>, vector<128x128xf32> -> vector<128x128xf32>
      %c0_14 = arith.constant 0 : index
      %c0_15 = arith.constant 0 : index
      %23 = vector.load %arg6[%c0_14, %c0_15] : memref<1x128xf32, #tpu.memory_space<vmem>>, vector<1x128xf32>
      %24 = vector.broadcast %23 : vector<1x128xf32> to vector<128x128xf32>
      %25 = arith.addf %22, %24 : vector<128x128xf32>
      %c0_16 = arith.constant 0 : index
      %c0_17 = arith.constant 0 : index
      %26 = vector.load %arg7[%c0_16, %c0_17] : memref<5x128xf32, #tpu.memory_space<vmem>>, vector<5x128xf32>
      %cst_18 = arith.constant dense<0.000000e+00> : vector<128x128xf32>
      %27 = tpu.matmul %18, %26, %cst_18 {dimension_numbers = #tpu.dot_dimension_numbers<[1], [0], [0], [1], [0, 0, 1, 1], [], []>} : vector<128x5xf32>, vector<5x128xf32>, vector<128x128xf32> -> vector<128x128xf32>
      %28 = arith.addf %25, %27 : vector<128x128xf32>
      %cst_19 = arith.constant 0.000000e+00 : f32
      %29 = vector.broadcast %cst_19 : f32 to vector<128x128xf32>
      %30 = arith.maximumf %28, %29 : vector<128x128xf32>
      %c0_20 = arith.constant 0 : index
      %c0_21 = arith.constant 0 : index
      %31 = vector.load %arg8[%c0_20, %c0_21] : memref<128x128xf32, #tpu.memory_space<vmem>>, vector<128x128xf32>
      %cst_22 = arith.constant dense<0.000000e+00> : vector<128x128xf32>
      %32 = tpu.matmul %30, %31, %cst_22 {dimension_numbers = #tpu.dot_dimension_numbers<[1], [0], [0], [1], [0, 0, 1, 1], [], []>} : vector<128x128xf32>, vector<128x128xf32>, vector<128x128xf32> -> vector<128x128xf32>
      %c0_23 = arith.constant 0 : index
      %c0_24 = arith.constant 0 : index
      %33 = vector.load %arg9[%c0_23, %c0_24] : memref<1x128xf32, #tpu.memory_space<vmem>>, vector<1x128xf32>
      %34 = vector.broadcast %33 : vector<1x128xf32> to vector<128x128xf32>
      %35 = arith.addf %32, %34 : vector<128x128xf32>
      %c0_25 = arith.constant 0 : index
      %c0_26 = arith.constant 0 : index
      %c0_27 = arith.constant 0 : index
      %36 = vector.load %arg13[%c0_25, %c0_26, %c0_27] : memref<1x128x128xf32, #tpu.memory_space<vmem>>, vector<1x128x128xf32>
      %37 = vector.shape_cast %36 : vector<1x128x128xf32> to vector<128x128xf32>
      %38 = vector.shape_cast %35 : vector<128x128xf32> to vector<1x128x128xf32>
      tpu.vector_store %arg13[%c0_25, %c0_26, %c0_27], %38 {strides = array<i32>} : memref<1x128x128xf32, #tpu.memory_space<vmem>>, vector<1x128x128xf32>,
      %39 = tpu.iota {dimensions = array<i32: 1>} : vector<128x128xi32>
      %c7_i32 = arith.constant 7 : i32
      %40 = vector.broadcast %c7_i32 : i32 to vector<128x128xi32>
      %41 = arith.cmpi slt, %39, %40 : vector<128x128xi32>
      %cst_28 = arith.constant -1.000000e+30 : f32
      %42 = vector.broadcast %cst_28 : f32 to vector<128x128xf32>
      %43 = arith.select %41, %35, %42 : vector<128x128xi1>, vector<128x128xf32>
      %cst_29 = arith.constant dense<0xFF800000> : vector<128xf32>
      %44 = vector.multi_reduction <maximumf>, %43, %cst_29 [1] : vector<128x128xf32> to vector<128xf32>
      %45 = vector.shape_cast %44 : vector<128xf32> to vector<128x1xf32>
      %46 = vector.broadcast %45 : vector<128x1xf32> to vector<128x128xf32>
      %47 = arith.subf %43, %46 : vector<128x128xf32>
      %48 = math.exp %47 : vector<128x128xf32>
      %cst_30 = arith.constant dense<0.000000e+00> : vector<128xf32>
      %49 = vector.multi_reduction <add>, %48, %cst_30 [1] : vector<128x128xf32> to vector<128xf32>
      %50 = vector.shape_cast %49 : vector<128xf32> to vector<128x1xf32>
      %51 = vector.broadcast %50 : vector<128x1xf32> to vector<128x128xf32>
      %52 = arith.divf %48, %51 : vector<128x128xf32>
      %53 = tpu.iota {dimensions = array<i32: 0>} : vector<128x128xi32>
      %54 = vector.broadcast %1 : i32 to vector<128x128xi32>
      %55 = arith.addi %54, %53 : vector<128x128xi32>
      %c16_i32 = arith.constant 16 : i32
      %56 = vector.broadcast %c16_i32 : i32 to vector<128x128xi32>
      %57 = arith.cmpi slt, %55, %56 : vector<128x128xi32>
      %cst_31 = arith.constant 0.000000e+00 : f32
      %58 = vector.broadcast %cst_31 : f32 to vector<128x128xf32>
      %59 = arith.select %57, %52, %58 : vector<128x128xi1>, vector<128x128xf32>
      %60 = arith.truncf %59 : vector<128x128xf32> to vector<128x128xbf16>
      %61 = arith.index_cast %1 : i32 to index
      %c0_32 = arith.constant 0 : index
      %62 = vector.load %arg15[%61, %c0_32] : memref<128x128xbf16, #tpu.memory_space<vmem>>, vector<128x128xbf16>
      tpu.vector_store %arg15[%61, %c0_32], %60 {strides = array<i32>} : memref<128x128xbf16, #tpu.memory_space<vmem>>, vector<128x128xbf16>,
      %c0_33 = arith.constant 0 : index
      %c0_34 = arith.constant 0 : index
      %63 = vector.load %arg16[%c0_33, %c0_34] : memref<128x128xf32, #tpu.memory_space<vmem>>, vector<128x128xf32>
      %cst_35 = arith.constant dense<0.000000e+00> : vector<128x128xf32>
      %64 = tpu.matmul %59, %30, %cst_35 {dimension_numbers = #tpu.dot_dimension_numbers<[0], [0], [1], [1], [0, 1, 1, 1], [], []>} : vector<128x128xf32>, vector<128x128xf32>, vector<128x128xf32> -> vector<128x128xf32>
      %65 = arith.addf %63, %64 : vector<128x128xf32>
      %c0_36 = arith.constant 0 : index
      %c0_37 = arith.constant 0 : index
      %66 = vector.load %arg16[%c0_36, %c0_37] : memref<128x128xf32, #tpu.memory_space<vmem>>, vector<128x128xf32>
      tpu.vector_store %arg16[%c0_36, %c0_37], %65 {strides = array<i32>} : memref<128x128xf32, #tpu.memory_space<vmem>>, vector<128x128xf32>,
      %c0_38 = arith.constant 0 : index
      %c0_39 = arith.constant 0 : index
      %67 = vector.load %arg17[%c0_38, %c0_39] : memref<128x128xf32, #tpu.memory_space<vmem>>, vector<128x128xf32>
      %cst_40 = arith.constant dense<0.000000e+00> : vector<128x128xf32>
      %68 = tpu.matmul %59, %59, %cst_40 {dimension_numbers = #tpu.dot_dimension_numbers<[0], [0], [1], [1], [0, 1, 1, 1], [], []>} : vector<128x128xf32>, vector<128x128xf32>, vector<128x128xf32> -> vector<128x128xf32>
      %69 = arith.addf %67, %68 : vector<128x128xf32>
      %c0_41 = arith.constant 0 : index
      %c0_42 = arith.constant 0 : index
      %70 = vector.load %arg17[%c0_41, %c0_42] : memref<128x128xf32, #tpu.memory_space<vmem>>, vector<128x128xf32>
      tpu.vector_store %arg17[%c0_41, %c0_42], %69 {strides = array<i32>} : memref<128x128xf32, #tpu.memory_space<vmem>>, vector<128x128xf32>,
      %c0_43 = arith.constant 0 : index
      %c0_44 = arith.constant 0 : index
      %71 = vector.load %arg19[%c0_43, %c0_44] : memref<1x128xf32, #tpu.memory_space<vmem>>, vector<1x128xf32>
      %72 = vector.broadcast %20 : vector<128x1xf32> to vector<128x128xf32>
      %73 = arith.mulf %72, %59 : vector<128x128xf32>
      %74 = arith.mulf %73, %59 : vector<128x128xf32>
      %cst_45 = arith.constant dense<0.000000e+00> : vector<128xf32>
      %75 = vector.multi_reduction <add>, %74, %cst_45 [0] : vector<128x128xf32> to vector<128xf32>
      %76 = vector.shape_cast %75 : vector<128xf32> to vector<1x128xf32>
      %77 = arith.addf %71, %76 : vector<1x128xf32>
      %c0_46 = arith.constant 0 : index
      %c0_47 = arith.constant 0 : index
      %78 = vector.load %arg19[%c0_46, %c0_47] : memref<1x128xf32, #tpu.memory_space<vmem>>, vector<1x128xf32>
      tpu.vector_store %arg19[%c0_46, %c0_47], %77 {strides = array<i32>} : memref<1x128xf32, #tpu.memory_space<vmem>>, vector<1x128xf32>,
    } else {
    }
    %c1_i32 = arith.constant 1 : i32
    %7 = arith.cmpi eq, %arg1, %c1_i32 : i32
    %8 = arith.extui %7 : i1 to i32
    %c0_i32_3 = arith.constant 0 : i32
    %9 = arith.cmpi ne, %8, %c0_i32_3 : i32
    scf.if %9 {
      %c0_i32_4 = arith.constant 0 : i32
      %10 = arith.cmpi eq, %arg2, %c0_i32_4 : i32
      %11 = arith.extui %10 : i1 to i32
      %c0_i32_5 = arith.constant 0 : i32
      %12 = arith.cmpi ne, %11, %c0_i32_5 : i32
      scf.if %12 {
        %cst_16 = arith.constant 0.000000e+00 : f32
        %25 = vector.broadcast %cst_16 : f32 to vector<128x128xf32>
        %c0_17 = arith.constant 0 : index
        %c0_18 = arith.constant 0 : index
        %26 = vector.load %arg18[%c0_17, %c0_18] : memref<128x128xf32, #tpu.memory_space<vmem>>, vector<128x128xf32>
        tpu.vector_store %arg18[%c0_17, %c0_18], %25 {strides = array<i32>} : memref<128x128xf32, #tpu.memory_space<vmem>>, vector<128x128xf32>,
      } else {
      }
      %13 = arith.index_cast %1 : i32 to index
      %c0_6 = arith.constant 0 : index
      %14 = vector.load %arg15[%13, %c0_6] : memref<128x128xbf16, #tpu.memory_space<vmem>>, vector<128x128xbf16>
      %c0_7 = arith.constant 0 : index
      %c0_8 = arith.constant 0 : index
      %15 = vector.load %arg15[%c0_7, %c0_8] : memref<128x128xbf16, #tpu.memory_space<vmem>>, vector<128x128xbf16>
      %cst = arith.constant dense<0.000000e+00> : vector<128x128xf32>
      %16 = tpu.matmul %3, %15, %cst {dimension_numbers = #tpu.dot_dimension_numbers<[1], [0], [0], [1], [0, 0, 1, 1], [], []>} : vector<128x128xbf16>, vector<128x128xbf16>, vector<128x128xf32> -> vector<128x128xf32>
      %c0_9 = arith.constant 0 : index
      %c0_10 = arith.constant 0 : index
      %17 = vector.load %arg18[%c0_9, %c0_10] : memref<128x128xf32, #tpu.memory_space<vmem>>, vector<128x128xf32>
      %18 = arith.truncf %16 : vector<128x128xf32> to vector<128x128xbf16>
      %cst_11 = arith.constant dense<0.000000e+00> : vector<128x128xf32>
      %19 = tpu.matmul %14, %18, %cst_11 {dimension_numbers = #tpu.dot_dimension_numbers<[0], [0], [1], [1], [0, 1, 1, 1], [], []>} : vector<128x128xbf16>, vector<128x128xbf16>, vector<128x128xf32> -> vector<128x128xf32>
      %20 = arith.addf %17, %19 : vector<128x128xf32>
      %c0_12 = arith.constant 0 : index
      %c0_13 = arith.constant 0 : index
      %21 = vector.load %arg18[%c0_12, %c0_13] : memref<128x128xf32, #tpu.memory_space<vmem>>, vector<128x128xf32>
      tpu.vector_store %arg18[%c0_12, %c0_13], %20 {strides = array<i32>} : memref<128x128xf32, #tpu.memory_space<vmem>>, vector<128x128xf32>,
      %c0_i32_14 = arith.constant 0 : i32
      %22 = arith.cmpi eq, %arg2, %c0_i32_14 : i32
      %23 = arith.extui %22 : i1 to i32
      %c0_i32_15 = arith.constant 0 : i32
      %24 = arith.cmpi ne, %23, %c0_i32_15 : i32
      scf.if %24 {
        %c0_16 = arith.constant 0 : index
        %c0_17 = arith.constant 0 : index
        %25 = vector.load %arg16[%c0_16, %c0_17] : memref<128x128xf32, #tpu.memory_space<vmem>>, vector<7x128xf32>
        %c0_18 = arith.constant 0 : index
        %c0_19 = arith.constant 0 : index
        %26 = vector.load %arg17[%c0_18, %c0_19] : memref<128x128xf32, #tpu.memory_space<vmem>>, vector<7x7xf32>
        %c0_20 = arith.constant 0 : index
        %c0_21 = arith.constant 0 : index
        %27 = vector.load %arg18[%c0_20, %c0_21] : memref<128x128xf32, #tpu.memory_space<vmem>>, vector<7x7xf32>
        %28 = tpu.iota {dimensions = array<i32: 0>} : vector<7x7xi32>
        %29 = tpu.iota {dimensions = array<i32: 1>} : vector<7x7xi32>
        %30 = arith.cmpi eq, %28, %29 : vector<7x7xi32>
        %31 = arith.extui %30 : vector<7x7xi1> to vector<7x7xi32>
        %32 = arith.sitofp %31 : vector<7x7xi32> to vector<7x7xf32>
        %33 = arith.mulf %27, %32 : vector<7x7xf32>
        %34 = vector.shape_cast %33 : vector<7x7xf32> to vector<1x7x7xf32>
        %cst_22 = arith.constant dense<0.000000e+00> : vector<1xf32>
        %35 = vector.multi_reduction <add>, %34, %cst_22 [1, 2] : vector<1x7x7xf32> to vector<1xf32>
        %36 = vector.shape_cast %35 : vector<1xf32> to vector<1x1x1xf32>
        %37 = vector.extract %36[0, 0, 0] : f32 from vector<1x1x1xf32>
        %38 = vector.broadcast %37 : f32 to vector<1x1xf32>
        %c0_23 = arith.constant 0 : index
        %c0_24 = arith.constant 0 : index
        %39 = vector.load %arg19[%c0_23, %c0_24] : memref<1x128xf32, #tpu.memory_space<vmem>>, vector<1x128xf32>
        %40 = vector.shape_cast %39 : vector<1x128xf32> to vector<1x1x128xf32>
        %cst_25 = arith.constant dense<0.000000e+00> : vector<1xf32>
        %41 = vector.multi_reduction <add>, %40, %cst_25 [1, 2] : vector<1x1x128xf32> to vector<1xf32>
        %42 = vector.shape_cast %41 : vector<1xf32> to vector<1x1x1xf32>
        %43 = vector.extract %42[0, 0, 0] : f32 from vector<1x1x1xf32>
        %44 = vector.broadcast %43 : f32 to vector<1x1xf32>
        %45 = arith.divf %38, %44 : vector<1x1xf32>
        %cst_26 = arith.constant 0.000000e+00 : f32
        %46 = vector.broadcast %cst_26 : f32 to vector<1x1xf32>
        %47 = arith.subf %46, %45 : vector<1x1xf32>
        %48 = vector.shape_cast %47 : vector<1x1xf32> to vector<1x1x1xf32>
        %c0_27 = arith.constant 0 : index
        %c0_28 = arith.constant 0 : index
        %c0_29 = arith.constant 0 : index
        %49 = vector.load %arg11[%c0_27, %c0_28, %c0_29] : memref<1x1x1xf32, #tpu.memory_space<vmem>>, vector<1x1x1xf32>
        tpu.vector_store %arg11[%c0_27, %c0_28, %c0_29], %48 {strides = array<i32>} : memref<1x1x1xf32, #tpu.memory_space<vmem>>, vector<1x1x1xf32>,
        %50 = arith.mulf %26, %26 : vector<7x7xf32>
        %51 = vector.shape_cast %50 : vector<7x7xf32> to vector<1x7x7xf32>
        %cst_30 = arith.constant dense<0.000000e+00> : vector<1xf32>
        %52 = vector.multi_reduction <add>, %51, %cst_30 [1, 2] : vector<1x7x7xf32> to vector<1xf32>
        %53 = vector.shape_cast %52 : vector<1xf32> to vector<1x1x1xf32>
        %54 = vector.extract %53[0, 0, 0] : f32 from vector<1x1x1xf32>
        %55 = vector.broadcast %54 : f32 to vector<1x1xf32>
        %56 = math.sqrt %55 : vector<1x1xf32>
        %57 = vector.broadcast %56 : vector<1x1xf32> to vector<7x7xf32>
        %58 = arith.divf %26, %57 : vector<7x7xf32>
        %cst_31 = arith.constant 0.377964467 : f32
        %59 = vector.broadcast %cst_31 : f32 to vector<7x7xf32>
        %60 = arith.mulf %32, %59 : vector<7x7xf32>
        %61 = arith.subf %58, %60 : vector<7x7xf32>
        %62 = arith.mulf %61, %61 : vector<7x7xf32>
        %63 = vector.shape_cast %62 : vector<7x7xf32> to vector<1x7x7xf32>
        %cst_32 = arith.constant dense<0.000000e+00> : vector<1xf32>
        %64 = vector.multi_reduction <add>, %63, %cst_32 [1, 2] : vector<1x7x7xf32> to vector<1xf32>
        %65 = vector.shape_cast %64 : vector<1xf32> to vector<1x1x1xf32>
        %66 = vector.extract %65[0, 0, 0] : f32 from vector<1x1x1xf32>
        %67 = vector.broadcast %66 : f32 to vector<1x1xf32>
        %68 = math.sqrt %67 : vector<1x1xf32>
        %69 = vector.shape_cast %68 : vector<1x1xf32> to vector<1x1x1xf32>
        %c0_33 = arith.constant 0 : index
        %c0_34 = arith.constant 0 : index
        %c0_35 = arith.constant 0 : index
        %70 = vector.load %arg12[%c0_33, %c0_34, %c0_35] : memref<1x1x1xf32, #tpu.memory_space<vmem>>, vector<1x1x1xf32>
        tpu.vector_store %arg12[%c0_33, %c0_34, %c0_35], %69 {strides = array<i32>} : memref<1x1x1xf32, #tpu.memory_space<vmem>>, vector<1x1x1xf32>,
        %cst_36 = arith.constant 1.000000e+00 : f32
        %71 = vector.broadcast %cst_36 : f32 to vector<7x7xf32>
        %72 = arith.subf %71, %32 : vector<7x7xf32>
        %73 = arith.mulf %27, %72 : vector<7x7xf32>
        %cst_37 = arith.constant 1.000000e+00 : f32
        %74 = vector.broadcast %cst_37 : f32 to vector<7x1xf32>
        %cst_38 = arith.constant dense<0.000000e+00> : vector<7x1xf32>
        %75 = tpu.matmul %73, %74, %cst_38 {dimension_numbers = #tpu.dot_dimension_numbers<[1], [0], [0], [1], [0, 0, 1, 1], [], []>} : vector<7x7xf32>, vector<7x1xf32>, vector<7x1xf32> -> vector<7x1xf32>
        %cst_39 = arith.constant dense<0.000000e+00> : vector<1x7xf32>
        %76 = tpu.matmul %74, %73, %cst_39 {dimension_numbers = #tpu.dot_dimension_numbers<[0], [1], [1], [0], [0, 1, 1, 0], [], []>} : vector<7x1xf32>, vector<7x7xf32>, vector<1x7xf32> -> vector<1x7xf32>
        %77 = math.sqrt %76 : vector<1x7xf32>
        %cst_40 = arith.constant 1.000000e-15 : f32
        %78 = vector.broadcast %cst_40 : f32 to vector<1x7xf32>
        %79 = arith.addf %77, %78 : vector<1x7xf32>
        %80 = vector.broadcast %79 : vector<1x7xf32> to vector<7x7xf32>
        %81 = arith.divf %73, %80 : vector<7x7xf32>
        %82 = math.sqrt %75 : vector<7x1xf32>
        %cst_41 = arith.constant 1.000000e-15 : f32
        %83 = vector.broadcast %cst_41 : f32 to vector<7x1xf32>
        %84 = arith.addf %82, %83 : vector<7x1xf32>
        %85 = vector.broadcast %84 : vector<7x1xf32> to vector<7x7xf32>
        %86 = arith.divf %81, %85 : vector<7x7xf32>
        %c0_42 = arith.constant 0 : index
        %c0_43 = arith.constant 0 : index
        %c0_44 = arith.constant 0 : index
        %87 = vector.load %arg14[%c0_42, %c0_43, %c0_44] : memref<1x7x7xf32, #tpu.memory_space<vmem>>, vector<1x7x7xf32>
        %88 = vector.shape_cast %87 : vector<1x7x7xf32> to vector<7x7xf32>
        %89 = vector.shape_cast %86 : vector<7x7xf32> to vector<1x7x7xf32>
        tpu.vector_store %arg14[%c0_42, %c0_43, %c0_44], %89 {strides = array<i32>} : memref<1x7x7xf32, #tpu.memory_space<vmem>>, vector<1x7x7xf32>,
        %cst_45 = arith.constant dense<0xFF800000> : vector<7xf32>
        %90 = vector.multi_reduction <maximumf>, %25, %cst_45 [1] : vector<7x128xf32> to vector<7xf32>
        %91 = vector.shape_cast %90 : vector<7xf32> to vector<7x1xf32>
        %92 = vector.broadcast %91 : vector<7x1xf32> to vector<7x128xf32>
        %93 = arith.subf %25, %92 : vector<7x128xf32>
        %94 = math.exp %93 : vector<7x128xf32>
        %cst_46 = arith.constant dense<0.000000e+00> : vector<7xf32>
        %95 = vector.multi_reduction <add>, %94, %cst_46 [1] : vector<7x128xf32> to vector<7xf32>
        %96 = vector.shape_cast %95 : vector<7xf32> to vector<7x1xf32>
        %97 = math.log %96 : vector<7x1xf32>
        %98 = vector.broadcast %97 : vector<7x1xf32> to vector<7x128xf32>
        %99 = arith.subf %93, %98 : vector<7x128xf32>
        %c0_47 = arith.constant 0 : index
        %c0_48 = arith.constant 0 : index
        %c0_49 = arith.constant 0 : index
        %100 = vector.load %arg10[%c0_47, %c0_48, %c0_49] : memref<1x7x128xf32, #tpu.memory_space<vmem>>, vector<1x7x128xf32>
        %101 = vector.shape_cast %100 : vector<1x7x128xf32> to vector<7x128xf32>
        %102 = vector.shape_cast %99 : vector<7x128xf32> to vector<1x7x128xf32>
        tpu.vector_store %arg10[%c0_47, %c0_48, %c0_49], %102 {strides = array<i32>} : memref<1x7x128xf32, #tpu.memory_space<vmem>>, vector<1x7x128xf32>,
      } else {
      }
    } else {
    }
    return
  }
  func.func @transform_0(%arg0: i32, %arg1: i32, %arg2: i32) -> (i32, i32, i32) {
    %c0_i32 = arith.constant 0 : i32
    %c0_i32_0 = arith.constant 0 : i32
    %c0_i32_1 = arith.constant 0 : i32
    return %arg0, %c0_i32, %c0_i32_0 : i32, i32, i32
  }
  func.func @transform_1(%arg0: i32, %arg1: i32, %arg2: i32) -> (i32, i32, i32) {
    %c0_i32 = arith.constant 0 : i32
    %c0_i32_0 = arith.constant 0 : i32
    return %arg0, %arg2, %c0_i32 : i32, i32, i32
  }
  func.func @transform_2(%arg0: i32, %arg1: i32, %arg2: i32) -> (i32, i32) {
    %c0_i32 = arith.constant 0 : i32
    %c0_i32_0 = arith.constant 0 : i32
    %c0_i32_1 = arith.constant 0 : i32
    return %c0_i32, %c0_i32_0 : i32, i32
  }
  func.func @transform_3(%arg0: i32, %arg1: i32, %arg2: i32) -> (i32, i32) {
    %c0_i32 = arith.constant 0 : i32
    %c0_i32_0 = arith.constant 0 : i32
    %c0_i32_1 = arith.constant 0 : i32
    return %c0_i32, %c0_i32_0 : i32, i32
  }
  func.func @transform_4(%arg0: i32, %arg1: i32, %arg2: i32) -> (i32, i32) {
    %c0_i32 = arith.constant 0 : i32
    %c0_i32_0 = arith.constant 0 : i32
    %c0_i32_1 = arith.constant 0 : i32
    return %c0_i32, %c0_i32_0 : i32, i32
  }
  func.func @transform_5(%arg0: i32, %arg1: i32, %arg2: i32) -> (i32, i32) {
    %c0_i32 = arith.constant 0 : i32
    %c0_i32_0 = arith.constant 0 : i32
    %c0_i32_1 = arith.constant 0 : i32
    return %c0_i32, %c0_i32_0 : i32, i32
  }
  func.func @transform_6(%arg0: i32, %arg1: i32, %arg2: i32) -> (i32, i32) {
    %c0_i32 = arith.constant 0 : i32
    %c0_i32_0 = arith.constant 0 : i32
    %c0_i32_1 = arith.constant 0 : i32
    return %c0_i32, %c0_i32_0 : i32, i32
  }
  func.func @transform_7(%arg0: i32, %arg1: i32, %arg2: i32) -> (i32, i32, i32) {
    %c0_i32 = arith.constant 0 : i32
    %c0_i32_0 = arith.constant 0 : i32
    %c0_i32_1 = arith.constant 0 : i32
    return %arg0, %c0_i32, %c0_i32_0 : i32, i32, i32
  }
  func.func @transform_8(%arg0: i32, %arg1: i32, %arg2: i32) -> (i32, i32, i32) {
    %c0_i32 = arith.constant 0 : i32
    %c0_i32_0 = arith.constant 0 : i32
    %c0_i32_1 = arith.constant 0 : i32
    return %arg0, %c0_i32, %c0_i32_0 : i32, i32, i32
  }
  func.func @transform_9(%arg0: i32, %arg1: i32, %arg2: i32) -> (i32, i32, i32) {
    %c0_i32 = arith.constant 0 : i32
    %c0_i32_0 = arith.constant 0 : i32
    %c0_i32_1 = arith.constant 0 : i32
    return %arg0, %c0_i32, %c0_i32_0 : i32, i32, i32
  }
  func.func @transform_10(%arg0: i32, %arg1: i32, %arg2: i32) -> (i32, i32, i32) {
    %c1_i32 = arith.constant 1 : i32
    %0 = arith.subi %c1_i32, %arg1 : i32
    %1 = arith.muli %arg2, %0 : i32
    %c0_i32 = arith.constant 0 : i32
    %2 = arith.muli %c0_i32, %arg1 : i32
    %3 = arith.addi %1, %2 : i32
    %c0_i32_0 = arith.constant 0 : i32
    %c0_i32_1 = arith.constant 0 : i32
    return %arg0, %3, %c0_i32_0 : i32, i32, i32
  }
  func.func @transform_11(%arg0: i32, %arg1: i32, %arg2: i32) -> (i32, i32, i32) {
    %c0_i32 = arith.constant 0 : i32
    %c0_i32_0 = arith.constant 0 : i32
    %c0_i32_1 = arith.constant 0 : i32
    return %arg0, %c0_i32, %c0_i32_0 : i32, i32, i32
  }
}

</mosaic_0001>

<llo_original>
// kernel: tpu_custom_call.1
$region0: #{tpu_custom_call.1}
  #allocation0 [shape = 'u32[]', space=smem, size = 0x4, offset = 0x4, fixed_abs, tag = 'smem constant byte address 0x4 - core index']
  #allocation1 [shape = 'u32[72,128]{1,0:T(1,128)}', space=vmem, size = 0x9000, scoped, tag = 'internal scratch']
  #allocation2 [shape = 'bf16[128,128]{1,0:T(8,128)(2,1)}', space=vmem, size = 0x8000, scoped, tag = 'scratch operand']
  #allocation3 [shape = 'f32[128,128]{1,0:T(8,128)}', space=vmem, size = 0x10000, scoped, tag = 'scratch operand']
  #allocation4 [shape = 'f32[128,128]{1,0:T(8,128)}', space=vmem, size = 0x10000, scoped, tag = 'scratch operand']
  #allocation5 [shape = 'f32[128,128]{1,0:T(8,128)}', space=vmem, size = 0x10000, scoped, tag = 'scratch operand']
  #allocation6 [shape = 'f32[1,128]{1,0:T(1,128)}', space=vmem, size = 0x200, scoped, tag = 'scratch operand']
  %s0 = inlined_call_operand.vmem [shape: bf16[2,128,5], index: 0, kind: input, shape index: {}]
  %s1 = inlined_call_operand.vmem [shape: bf16[2,128,128], index: 1, kind: input, shape index: {}]
  %s2 = inlined_call_operand.hbm [shape: f32[5,128], index: 2, kind: input, shape index: {}]
  %s3 = inlined_call_operand.hbm [shape: f32[1,128], index: 3, kind: input, shape index: {}]
  %s4 = inlined_call_operand.vmem [shape: f32[5,128], index: 4, kind: input, shape index: {}]
  %s5 = inlined_call_operand.hbm [shape: f32[128,128], index: 5, kind: input, shape index: {}]
  %s6 = inlined_call_operand.vmem [shape: f32[1,128], index: 6, kind: input, shape index: {}]
  %s7 = inlined_call_operand.vmem [shape: f32[2,7,128], index: 7, kind: output, shape index: {0}]
  %s8 = inlined_call_operand.vmem [shape: f32[2,1,1], index: 8, kind: output, shape index: {1}]
  %s9 = inlined_call_operand.vmem [shape: f32[2,1,1], index: 9, kind: output, shape index: {2}]
  %s10 = inlined_call_operand.hbm [shape: f32[2,128,128], index: 10, kind: output, shape index: {3}]
  %s11 = inlined_call_operand.vmem [shape: f32[2,7,7], index: 11, kind: output, shape index: {4}]
  %12 = xla_tuple %s7, %s8, %s9, %s10, %s11
  %s13 = sld [smem:[#allocation0]]
  $region125: #{tpu_custom_call.1} parent=0
    _
  %s15 = ssub.s32 1, %s13
  %s16 = scalar_select 0, %s15, %s13
  $region1: #{tpu_custom_call.1} parent=0
    #allocation7 [shape = 'u8[4096]{0}', space=vmem, size = 0x1000, scoped, tag = 'input window, operand 2, single buffered']
    #allocation8 [shape = 's32[2]{0}', space=sflag, size = 0x8, scoped, tag = 'scoped memory for tpu_custom_call.1']
    #allocation9 [shape = 's32[2]{0}', space=sflag, size = 0x8, scoped, tag = 'scoped memory for tpu_custom_call.1']
    #allocation10 [shape = 'u8[512]{0}', space=vmem, size = 0x400, scoped, tag = 'input window, operand 3, single buffered']
    #allocation11 [shape = 's32[1]{0}', space=sflag, size = 0x4, scoped, tag = 'scoped memory for tpu_custom_call.1']
    #allocation12 [shape = 'u8[65536]{0}', space=vmem, size = 0x10000, scoped, tag = 'input window, operand 5, single buffered']
    #allocation13 [shape = 'u8[131072]{0}', space=vmem, size = 0x20000, scoped, tag = 'output window, operand 3']
    %17 = vsyncpa [#allocation8], 0
    %18 = vsyncpa [#allocation11], 0
    %19 = vsyncpa [#allocation9], 0
    %s20 = scalar_lea.sflag [#allocation9], 1
    %21 = vsyncpa %s20, 0
    loop: start=0, step=1, limit=6
    $region2: #{tpu_custom_call.1} parent=1 // loop_pre_header
      _
    $region3: #{tpu_custom_call.1} parent=1 // loop_header
      %s23 = sphi 0, %s27
      %p24 = scmp.ge.s32.totalorder %s23, 6
      %s30 = sphi 0, %s49
      %s31 = sphi 0, %s45
      %s32 = sphi 0, %s41
      %s33 = sphi 0, %s30
      %s34 = sphi 0, %s31
      %s35 = sphi 0, %s32
      %s36 = sphi 0, %s33
      %s37 = sphi 0, %s34
      %s38 = sphi 0, %s35
      %s52 = sphi 0, %s54
      %s55 = sphi 0, %s52
      %s56 = sphi 0, %s55
      %s72 = sphi 0, %s56
      %s80 = sphi 0, %s82
      %s83 = sphi 0, %s80
      %s84 = sphi 0, %s83
      %s100 = sphi 0, %s84
      %s104 = sphi 0, %s104
      %s106 = sphi 0, %s104
      %s107 = sphi 0, %s106
      %s121 = sphi 0, %s107
      %s125 = sphi 0, %s125
      %s127 = sphi 0, %s125
      %s128 = sphi 0, %s127
      %s142 = sphi 0, %s128
      %s146 = sphi 0, %s146
      %s148 = sphi 0, %s146
      %s149 = sphi 0, %s148
      %s163 = sphi 0, %s149
      %s167 = sphi 0, %s167
      %s169 = sphi 0, %s167
      %s170 = sphi 0, %s169
      %s184 = sphi 0, %s170
      %s188 = sphi 0, %s188
      %s190 = sphi 0, %s188
      %s191 = sphi 0, %s190
      %s205 = sphi 0, %s191
      %s211 = sphi 0, %s213
      %s214 = sphi 0, %s211
      %s215 = sphi 0, %s214
      %s231 = sphi 0, %s215
      %s237 = sphi 0, %s239
      %s240 = sphi 0, %s237
      %s241 = sphi 0, %s240
      %s257 = sphi 0, %s241
      %s263 = sphi 0, %s265
      %s266 = sphi 0, %s263
      %s267 = sphi 0, %s266
      %s283 = sphi 0, %s267
      %s295 = sphi 0, %s297
      %s298 = sphi 0, %s295
      %s299 = sphi 0, %s298
      %s315 = sphi 0, %s299
      %s321 = sphi 0, %s323
      %s324 = sphi 0, %s321
      %s325 = sphi 0, %s324
      %s341 = sphi 0, %s325
    $region4: #{tpu_custom_call.1} parent=1 // loop_header_branch
      %26 = sbr.rel (%p24) target = $region8
    $region5: #{tpu_custom_call.1} parent=1 // loop_body
      %s28 = ssub.s32 %s23, 1
      %s29 = ssub.s32 %s23, 2
      %s39 = sadd.s32 1, %s32
      %p40 = scmp.ge.s32.totalorder %s39, 1
      %s41 = scalar_select %p40, 0, %s39
      %s42 = sadd.s32 1, %s31
      %s43 = scalar_select %p40, %s42, %s31
      %p44 = scmp.ge.s32.totalorder %s43, 2
      %s45 = scalar_select %p44, 0, %s43
      %s46 = sadd.s32 1, %s30
      %s47 = scalar_select %p44, %s46, %s30
      %p48 = scmp.ge.s32.totalorder %s47, 2
      %s49 = scalar_select %p48, 0, %s47
      %s50 = ssub.s32 %s30, %s49
      %p51 = scmp.eq.s32.totalorder %s50, 0
      %s53 = sadd.s32 %s52, 1
      %s54 = scalar_select %p51, %s52, %s53
      %p57 = pneg %p51
      %p58 = scmp.eq.s32.totalorder %s23, 3
      %p59 = por %p57, %p58
      %p60 = scmp.ne.s32.totalorder %s52, %s55
      %p61 = scmp.eq.s32.totalorder %s23, 0
      %p62 = por %p60, %p61
      %p63 = scmp.ne.s32.totalorder %s52, %s55
      %p64 = scmp.eq.s32.totalorder %s28, 3
      %p65 = por %p63, %p64
      %p66 = scmp.ne.s32.totalorder %s55, %s56
      %p67 = scmp.eq.s32.totalorder %s28, 0
      %p68 = por %p66, %p67
      %p69 = scmp.ne.s32.totalorder %s55, %s56
      %p70 = scmp.eq.s32.totalorder %s29, 3
      %p71 = por %p69, %p70
      %p73 = scmp.ne.s32.totalorder %s56, %s72
      %p74 = scmp.eq.s32.totalorder %s29, 0
      %p75 = por %p73, %p74
      %s76 = ssub.s32 %s30, %s49
      %s77 = ssub.s32 %s32, %s41
      %s78 = sor.u32 %s76, %s77
      %p79 = scmp.eq.s32.totalorder %s78, 0
      %s81 = sadd.s32 %s80, 1
      %s82 = scalar_select %p79, %s80, %s81
      %p85 = pneg %p79
      %p86 = scmp.eq.s32.totalorder %s23, 3
      %p87 = por %p85, %p86
      %p88 = scmp.ne.s32.totalorder %s80, %s83
      %p89 = scmp.eq.s32.totalorder %s23, 0
      %p90 = por %p88, %p89
      %p91 = scmp.ne.s32.totalorder %s80, %s83
      %p92 = scmp.eq.s32.totalorder %s28, 3
      %p93 = por %p91, %p92
      %p94 = scmp.ne.s32.totalorder %s83, %s84
      %p95 = scmp.eq.s32.totalorder %s28, 0
      %p96 = por %p94, %p95
      %p97 = scmp.ne.s32.totalorder %s83, %s84
      %p98 = scmp.eq.s32.totalorder %s29, 3
      %p99 = por %p97, %p98
      %p101 = scmp.ne.s32.totalorder %s84, %s100
      %p102 = scmp.eq.s32.totalorder %s29, 0
      %p103 = por %p101, %p102
      %s105 = sadd.s32 %s104, 1
      %p108 = scmp.eq.s32.totalorder %s23, 3
      %p109 = scmp.ne.s32.totalorder %s104, %s106
      %p110 = scmp.eq.s32.totalorder %s23, 0
      %p111 = por %p109, %p110
      %p112 = scmp.ne.s32.totalorder %s104, %s106
      %p113 = scmp.eq.s32.totalorder %s28, 3
      %p114 = por %p112, %p113
      %p115 = scmp.ne.s32.totalorder %s106, %s107
      %p116 = scmp.eq.s32.totalorder %s28, 0
      %p117 = por %p115, %p116
      %p118 = scmp.ne.s32.totalorder %s106, %s107
      %p119 = scmp.eq.s32.totalorder %s29, 3
      %p120 = por %p118, %p119
      %p122 = scmp.ne.s32.totalorder %s107, %s121
      %p123 = scmp.eq.s32.totalorder %s29, 0
      %p124 = por %p122, %p123
      %s126 = sadd.s32 %s125, 1
      %p129 = scmp.eq.s32.totalorder %s23, 3
      %p130 = scmp.ne.s32.totalorder %s125, %s127
      %p131 = scmp.eq.s32.totalorder %s23, 0
      %p132 = por %p130, %p131
      %p133 = scmp.ne.s32.totalorder %s125, %s127
      %p134 = scmp.eq.s32.totalorder %s28, 3
      %p135 = por %p133, %p134
      %p136 = scmp.ne.s32.totalorder %s127, %s128
      %p137 = scmp.eq.s32.totalorder %s28, 0
      %p138 = por %p136, %p137
      %p139 = scmp.ne.s32.totalorder %s127, %s128
      %p140 = scmp.eq.s32.totalorder %s29, 3
      %p141 = por %p139, %p140
      %p143 = scmp.ne.s32.totalorder %s128, %s142
      %p144 = scmp.eq.s32.totalorder %s29, 0
      %p145 = por %p143, %p144
      %s147 = sadd.s32 %s146, 1
      %p150 = scmp.eq.s32.totalorder %s23, 3
      %p151 = scmp.ne.s32.totalorder %s146, %s148
      %p152 = scmp.eq.s32.totalorder %s23, 0
      %p153 = por %p151, %p152
      %p154 = scmp.ne.s32.totalorder %s146, %s148
      %p155 = scmp.eq.s32.totalorder %s28, 3
      %p156 = por %p154, %p155
      %p157 = scmp.ne.s32.totalorder %s148, %s149
      %p158 = scmp.eq.s32.totalorder %s28, 0
      %p159 = por %p157, %p158
      %p160 = scmp.ne.s32.totalorder %s148, %s149
      %p161 = scmp.eq.s32.totalorder %s29, 3
      %p162 = por %p160, %p161
      %p164 = scmp.ne.s32.totalorder %s149, %s163
      %p165 = scmp.eq.s32.totalorder %s29, 0
      %p166 = por %p164, %p165
      %s168 = sadd.s32 %s167, 1
      %p171 = scmp.eq.s32.totalorder %s23, 3
      %p172 = scmp.ne.s32.totalorder %s167, %s169
      %p173 = scmp.eq.s32.totalorder %s23, 0
      %p174 = por %p172, %p173
      %p175 = scmp.ne.s32.totalorder %s167, %s169
      %p176 = scmp.eq.s32.totalorder %s28, 3
      %p177 = por %p175, %p176
      %p178 = scmp.ne.s32.totalorder %s169, %s170
      %p179 = scmp.eq.s32.totalorder %s28, 0
      %p180 = por %p178, %p179
      %p181 = scmp.ne.s32.totalorder %s169, %s170
      %p182 = scmp.eq.s32.totalorder %s29, 3
      %p183 = por %p181, %p182
      %p185 = scmp.ne.s32.totalorder %s170, %s184
      %p186 = scmp.eq.s32.totalorder %s29, 0
      %p187 = por %p185, %p186
      %s189 = sadd.s32 %s188, 1
      %p192 = scmp.eq.s32.totalorder %s23, 3
      %p193 = scmp.ne.s32.totalorder %s188, %s190
      %p194 = scmp.eq.s32.totalorder %s23, 0
      %p195 = por %p193, %p194
      %p196 = scmp.ne.s32.totalorder %s188, %s190
      %p197 = scmp.eq.s32.totalorder %s28, 3
      %p198 = por %p196, %p197
      %p199 = scmp.ne.s32.totalorder %s190, %s191
      %p200 = scmp.eq.s32.totalorder %s28, 0
      %p201 = por %p199, %p200
      %p202 = scmp.ne.s32.totalorder %s190, %s191
      %p203 = scmp.eq.s32.totalorder %s29, 3
      %p204 = por %p202, %p203
      %p206 = scmp.ne.s32.totalorder %s191, %s205
      %p207 = scmp.eq.s32.totalorder %s29, 0
      %p208 = por %p206, %p207
      %s209 = ssub.s32 %s30, %s49
      %p210 = scmp.eq.s32.totalorder %s209, 0
      %s212 = sadd.s32 %s211, 1
      %s213 = scalar_select %p210, %s211, %s212
      %p216 = pneg %p210
      %p217 = scmp.eq.s32.totalorder %s23, 3
      %p218 = por %p216, %p217
      %p219 = scmp.ne.s32.totalorder %s211, %s214
      %p220 = scmp.eq.s32.totalorder %s23, 0
      %p221 = por %p219, %p220
      %p222 = scmp.ne.s32.totalorder %s211, %s214
      %p223 = scmp.eq.s32.totalorder %s28, 3
      %p224 = por %p222, %p223
      %p225 = scmp.ne.s32.totalorder %s214, %s215
      %p226 = scmp.eq.s32.totalorder %s28, 0
      %p227 = por %p225, %p226
      %p228 = scmp.ne.s32.totalorder %s214, %s215
      %p229 = scmp.eq.s32.totalorder %s29, 3
      %p230 = por %p228, %p229
      %p232 = scmp.ne.s32.totalorder %s215, %s231
      %p233 = scmp.eq.s32.totalorder %s29, 0
      %p234 = por %p232, %p233
      %s235 = ssub.s32 %s30, %s49
      %p236 = scmp.eq.s32.totalorder %s235, 0
      %s238 = sadd.s32 %s237, 1
      %s239 = scalar_select %p236, %s237, %s238
      %p242 = pneg %p236
      %p243 = scmp.eq.s32.totalorder %s23, 3
      %p244 = por %p242, %p243
      %p245 = scmp.ne.s32.totalorder %s237, %s240
      %p246 = scmp.eq.s32.totalorder %s23, 0
      %p247 = por %p245, %p246
      %p248 = scmp.ne.s32.totalorder %s237, %s240
      %p249 = scmp.eq.s32.totalorder %s28, 3
      %p250 = por %p248, %p249
      %p251 = scmp.ne.s32.totalorder %s240, %s241
      %p252 = scmp.eq.s32.totalorder %s28, 0
      %p253 = por %p251, %p252
      %p254 = scmp.ne.s32.totalorder %s240, %s241
      %p255 = scmp.eq.s32.totalorder %s29, 3
      %p256 = por %p254, %p255
      %p258 = scmp.ne.s32.totalorder %s241, %s257
      %p259 = scmp.eq.s32.totalorder %s29, 0
      %p260 = por %p258, %p259
      %s261 = ssub.s32 %s30, %s49
      %p262 = scmp.eq.s32.totalorder %s261, 0
      %s264 = sadd.s32 %s263, 1
      %s265 = scalar_select %p262, %s263, %s264
      %p268 = pneg %p262
      %p269 = scmp.eq.s32.totalorder %s23, 3
      %p270 = por %p268, %p269
      %p271 = scmp.ne.s32.totalorder %s263, %s266
      %p272 = scmp.eq.s32.totalorder %s23, 0
      %p273 = por %p271, %p272
      %p274 = scmp.ne.s32.totalorder %s263, %s266
      %p275 = scmp.eq.s32.totalorder %s28, 3
      %p276 = por %p274, %p275
      %p277 = scmp.ne.s32.totalorder %s266, %s267
      %p278 = scmp.eq.s32.totalorder %s28, 0
      %p279 = por %p277, %p278
      %p280 = scmp.ne.s32.totalorder %s266, %s267
      %p281 = scmp.eq.s32.totalorder %s29, 3
      %p282 = por %p280, %p281
      %p284 = scmp.ne.s32.totalorder %s267, %s283
      %p285 = scmp.eq.s32.totalorder %s29, 0
      %p286 = por %p284, %p285
      %s287 = ssub.s32 1, %s31
      %s288 = smul.u32 %s32, %s287
      %s289 = ssub.s32 1, %s45
      %s290 = smul.u32 %s41, %s289
      %s291 = ssub.s32 %s30, %s49
      %s292 = ssub.s32 %s288, %s290
      %s293 = sor.u32 %s291, %s292
      %p294 = scmp.eq.s32.totalorder %s293, 0
      %s296 = sadd.s32 %s295, 1
      %s297 = scalar_select %p294, %s295, %s296
      %p300 = pneg %p294
      %p301 = scmp.eq.s32.totalorder %s23, 3
      %p302 = por %p300, %p301
      %p303 = scmp.ne.s32.totalorder %s295, %s298
      %p304 = scmp.eq.s32.totalorder %s23, 0
      %p305 = por %p303, %p304
      %p306 = scmp.ne.s32.totalorder %s295, %s298
      %p307 = scmp.eq.s32.totalorder %s28, 3
      %p308 = por %p306, %p307
      %p309 = scmp.ne.s32.totalorder %s298, %s299
      %p310 = scmp.eq.s32.totalorder %s28, 0
      %p311 = por %p309, %p310
      %p312 = scmp.ne.s32.totalorder %s298, %s299
      %p313 = scmp.eq.s32.totalorder %s29, 3
      %p314 = por %p312, %p313
      %p316 = scmp.ne.s32.totalorder %s299, %s315
      %p317 = scmp.eq.s32.totalorder %s29, 0
      %p318 = por %p316, %p317
      %s319 = ssub.s32 %s30, %s49
      %p320 = scmp.eq.s32.totalorder %s319, 0
      %s322 = sadd.s32 %s321, 1
      %s323 = scalar_select %p320, %s321, %s322
      %p326 = pneg %p320
      %p327 = scmp.eq.s32.totalorder %s23, 3
      %p328 = por %p326, %p327
      %p329 = scmp.ne.s32.totalorder %s321, %s324
      %p330 = scmp.eq.s32.totalorder %s23, 0
      %p331 = por %p329, %p330
      %p332 = scmp.ne.s32.totalorder %s321, %s324
      %p333 = scmp.eq.s32.totalorder %s28, 3
      %p334 = por %p332, %p333
      %p335 = scmp.ne.s32.totalorder %s324, %s325
      %p336 = scmp.eq.s32.totalorder %s28, 0
      %p337 = por %p335, %p336
      %p338 = scmp.ne.s32.totalorder %s324, %s325
      %p339 = scmp.eq.s32.totalorder %s29, 3
      %p340 = por %p338, %p339
      %p342 = scmp.ne.s32.totalorder %s325, %s341
      %p343 = scmp.eq.s32.totalorder %s29, 0
      %p344 = por %p342, %p343
      %p345 = scmp.le.s32.totalorder 1, %s23
      %p346 = scmp.lt.s32.totalorder %s23, 5
      %p347 = pnand %p345, %p346
      %p348 = pneg %p347
      // Predicated region
      $region9: #{tpu_custom_call.1} parent=5 // pred_check
        _
      $region10: #{tpu_custom_call.1} parent=5 // pred_check_branch
        %350 = sbr.rel (%p347) target = $region12
      $region11: #{tpu_custom_call.1} parent=5 // pred_region
        %s351 = ssub.s32 %s23, 1
        // Predicated region
        $region13: #{tpu_custom_call.1} parent=11 // pred_check
          %p352 = pneg %p117
        $region14: #{tpu_custom_call.1} parent=11 // pred_check_branch
          %354 = sbr.rel (%p352) target = $region16
        $region15: #{tpu_custom_call.1} parent=11 // pred_region
          %356 = vsyncadd [#allocation8], 0
          %s358 = sshll.u32 %s2, 4
          %s359 = int_to_ptr.hbm [resolvable:$true] %s358
          %s360 = sshll.u32 [#allocation7], 4
          %s361 = int_to_ptr.vmem [resolvable:$true] %s360
          %363 = dma.hbm_to_vmem [thread:$0]  %s359, 128, %s361, [#allocation8]
        $region16: #{tpu_custom_call.1} parent=11 // pred_fallthru
          _
        // Predicated region
        $region17: #{tpu_custom_call.1} parent=11 // pred_check
          %p364 = pneg %p138
        $region18: #{tpu_custom_call.1} parent=11 // pred_check_branch
          %366 = sbr.rel (%p364) target = $region20
        $region19: #{tpu_custom_call.1} parent=11 // pred_region
          %368 = vsyncadd [#allocation11], 0
          %s370 = sshll.u32 %s3, 4
          %s371 = int_to_ptr.hbm [resolvable:$true] %s370
          %s372 = sshll.u32 [#allocation10], 4
          %s373 = int_to_ptr.vmem [resolvable:$true] %s372
          %375 = dma.hbm_to_vmem [thread:$0]  %s371, 16, %s373, [#allocation11]
        $region20: #{tpu_custom_call.1} parent=11 // pred_fallthru
          _
        // Predicated region
        $region21: #{tpu_custom_call.1} parent=11 // pred_check
          %p376 = pneg %p159
        $region22: #{tpu_custom_call.1} parent=11 // pred_check_branch
          %378 = sbr.rel (%p376) target = $region24
        $region23: #{tpu_custom_call.1} parent=11 // pred_region
          _
        $region24: #{tpu_custom_call.1} parent=11 // pred_fallthru
          _
        // Predicated region
        $region25: #{tpu_custom_call.1} parent=11 // pred_check
          %p379 = pneg %p180
        $region26: #{tpu_custom_call.1} parent=11 // pred_check_branch
          %381 = sbr.rel (%p379) target = $region28
        $region27: #{tpu_custom_call.1} parent=11 // pred_region
          %383 = vsyncadd [#allocation11], 0
          %s384 = sshll.u32 %s5, 4
          %s385 = int_to_ptr.hbm [resolvable:$true] %s384
          %s386 = sshll.u32 [#allocation12], 4
          %s387 = int_to_ptr.vmem [resolvable:$true] %s386
          %392 = dma.hbm_to_vmem [thread:$0]  %s385, 2048, %s387, [#allocation11], 128, 128, 8
        $region28: #{tpu_custom_call.1} parent=11 // pred_fallthru
          _
        // Predicated region
        $region29: #{tpu_custom_call.1} parent=11 // pred_check
          %p393 = pneg %p201
        $region30: #{tpu_custom_call.1} parent=11 // pred_check_branch
          %395 = sbr.rel (%p393) target = $region32
        $region31: #{tpu_custom_call.1} parent=11 // pred_region
          _
        $region32: #{tpu_custom_call.1} parent=11 // pred_fallthru
          _
      $region12: #{tpu_custom_call.1} parent=5 // pred_fallthru
        _
      %p396 = scmp.lt.s32.totalorder %s23, 4
      // Predicated region
      $region33: #{tpu_custom_call.1} parent=5 // pred_check
        %p397 = pneg %p396
      $region34: #{tpu_custom_call.1} parent=5 // pred_check_branch
        %399 = sbr.rel (%p397) target = $region36
      $region35: #{tpu_custom_call.1} parent=5 // pred_region
        // Predicated region
        $region37: #{tpu_custom_call.1} parent=35 // pred_check
          %p400 = pneg %p62
        $region38: #{tpu_custom_call.1} parent=35 // pred_check_branch
          %402 = sbr.rel (%p400) target = $region40
        $region39: #{tpu_custom_call.1} parent=35 // pred_region
          %p403 = scmp.lt.s32.totalorder %s30, 1
          %s404 = scalar_select %p403, %s30, 1
          %s405 = smul.addr %s404, 16
          %s406 = smul.addr %s405, 4
          %s407 = scalar_lea.vmem %s0, %s406
        $region40: #{tpu_custom_call.1} parent=35 // pred_fallthru
          _
        // Predicated region
        $region41: #{tpu_custom_call.1} parent=35 // pred_check
          %p408 = pneg %p90
        $region42: #{tpu_custom_call.1} parent=35 // pred_check_branch
          %410 = sbr.rel (%p408) target = $region44
        $region43: #{tpu_custom_call.1} parent=35 // pred_region
          %s411 = smul.u32 16, %s32
          %p412 = scmp.lt.s32.totalorder %s30, 1
          %s413 = scalar_select %p412, %s30, 1
          %p414 = scmp.lt.s32.totalorder %s411, 15
          %s415 = scalar_select %p414, %s411, 15
          %s416 = smul.addr %s413, 16
          %s417 = sadd.s32 %s415, %s416
          %s418 = smul.addr %s417, 4
          %s419 = scalar_lea.vmem %s1, %s418
          %s420 = smul.u32 16, %s32
        $region44: #{tpu_custom_call.1} parent=35 // pred_fallthru
          _
      $region36: #{tpu_custom_call.1} parent=5 // pred_fallthru
        _
      %p421 = scmp.le.s32.totalorder 1, %s23
      %p422 = scmp.lt.s32.totalorder %s23, 5
      %p423 = pnand %p421, %p422
      %p424 = pneg %p423
      // Predicated region
      $region45: #{tpu_custom_call.1} parent=5 // pred_check
        _
      $region46: #{tpu_custom_call.1} parent=5 // pred_check_branch
        %426 = sbr.rel (%p423) target = $region48
      $region47: #{tpu_custom_call.1} parent=5 // pred_region
        %s427 = ssub.s32 %s23, 1
        // Predicated region
        $region49: #{tpu_custom_call.1} parent=47 // pred_check
          %p428 = pneg %p117
        $region50: #{tpu_custom_call.1} parent=47 // pred_check_branch
          %430 = sbr.rel (%p428) target = $region52
        $region51: #{tpu_custom_call.1} parent=47 // pred_region
          %432 = dma.done [#allocation8], 128
        $region52: #{tpu_custom_call.1} parent=47 // pred_fallthru
          _
        // Predicated region
        $region53: #{tpu_custom_call.1} parent=47 // pred_check
          %p433 = pneg %p138
        $region54: #{tpu_custom_call.1} parent=47 // pred_check_branch
          %435 = sbr.rel (%p433) target = $region56
        $region55: #{tpu_custom_call.1} parent=47 // pred_region
          %437 = dma.done [#allocation11], 16
        $region56: #{tpu_custom_call.1} parent=47 // pred_fallthru
          _
        // Predicated region
        $region57: #{tpu_custom_call.1} parent=47 // pred_check
          %p438 = pneg %p180
        $region58: #{tpu_custom_call.1} parent=47 // pred_check_branch
          %440 = sbr.rel (%p438) target = $region60
        $region59: #{tpu_custom_call.1} parent=47 // pred_region
          %442 = dma.done [#allocation11], 2048
        $region60: #{tpu_custom_call.1} parent=47 // pred_fallthru
          _
        %p443 = scmp.lt.s32.totalorder %s33, 1
        %s444 = scalar_select %p443, %s33, 1
        %s445 = smul.addr %s444, 16
        %s446 = smul.addr %s445, 4
        %s447 = scalar_lea.vmem %s0, %s446
        %p448 = pneg %p68
        %p449 = pneg %p65
        %s450 = smul.u32 16, %s35
        %p451 = scmp.lt.s32.totalorder %s33, 1
        %s452 = scalar_select %p451, %s33, 1
        %p453 = scmp.lt.s32.totalorder %s450, 15
        %s454 = scalar_select %p453, %s450, 15
        %s455 = smul.addr %s452, 16
        %s456 = sadd.s32 %s454, %s455
        %s457 = smul.addr %s456, 4
        %s458 = scalar_lea.vmem %s1, %s457
        %p459 = pneg %p96
        %p460 = pneg %p93
        %p461 = pneg %p117
        %p462 = pneg %p114
        %p463 = pneg %p138
        %p464 = pneg %p135
        %p465 = pneg %p159
        %p466 = pneg %p156
        %p467 = pneg %p180
        %p468 = pneg %p177
        %p469 = pneg %p201
        %p470 = pneg %p198
        %p471 = pneg %p227
        %p472 = pneg %p224
        %p473 = scmp.lt.s32.totalorder %s33, 1
        %s474 = scalar_select %p473, %s33, 1
        %s475 = smul.addr %s474, 8
        %s476 = scalar_lea.vmem %s7, %s475
        %p477 = pneg %p253
        %p478 = pneg %p250
        %p479 = scmp.lt.s32.totalorder %s33, 1
        %s480 = scalar_select %p479, %s33, 1
        %s481 = scalar_lea.vmem %s8, %s480
        %p482 = pneg %p279
        %p483 = pneg %p276
        %p484 = scmp.lt.s32.totalorder %s33, 1
        %s485 = scalar_select %p484, %s33, 1
        %s486 = scalar_lea.vmem %s9, %s485
        %p487 = pneg %p311
        %p488 = pneg %p308
        %s489 = sand.u32 %s298, 1
        %s490 = scalar_lea.sflag [#allocation9], %s489
        %s491 = sand.u32 %s298, 1
        %s492 = smul.addr %s491, 128
        %s493 = scalar_lea.vmem [#allocation13], %s492
        %p494 = pneg %p337
        %p495 = pneg %p334
        %p496 = scmp.lt.s32.totalorder %s33, 1
        %s497 = scalar_select %p496, %s33, 1
        %s498 = smul.addr %s497, 8
        %s499 = scalar_lea.vmem %s11, %s498
        %p500 = scmp.lt.s32.totalorder %s33, 1
        %s501 = scalar_select %p500, %s33, 1
        %s502 = smul.addr %s501, 16
        %s503 = smul.addr %s502, 4
        %s504 = scalar_lea.vmem %s0, %s503
        %s505 = smul.u32 16, %s35
        %p506 = scmp.lt.s32.totalorder %s33, 1
        %s507 = scalar_select %p506, %s33, 1
        %p508 = scmp.lt.s32.totalorder %s505, 15
        %s509 = scalar_select %p508, %s505, 15
        %s510 = smul.addr %s507, 16
        %s511 = sadd.s32 %s509, %s510
        %s512 = smul.addr %s511, 4
        %s513 = scalar_lea.vmem %s1, %s512
        %s514 = smul.u32 16, %s35
        %p515 = scmp.lt.s32.totalorder %s33, 1
        %s516 = scalar_select %p515, %s33, 1
        %s517 = smul.addr %s516, 8
        %s518 = scalar_lea.vmem %s7, %s517
        %p519 = scmp.lt.s32.totalorder %s33, 1
        %s520 = scalar_select %p519, %s33, 1
        %s521 = scalar_lea.vmem %s8, %s520
        %p522 = scmp.lt.s32.totalorder %s33, 1
        %s523 = scalar_select %p522, %s33, 1
        %s524 = scalar_lea.vmem %s9, %s523
        %s525 = ssub.s32 1, %s34
        %s526 = smul.u32 %s35, %s525
        %s527 = smul.u32 16, %s526
        %p528 = scmp.lt.s32.totalorder %s33, 1
        %s529 = scalar_select %p528, %s33, 1
        %s530 = smul.addr %s529, 8
        %s531 = scalar_lea.vmem %s11, %s530
        %s532 = smul.u32 %s35, 128
        %v533 = vld [vmem:[%s513] sm:$0xf]
        %v534 = vld [vmem:[%s513 + $0x4] sm:$0xf]
        %v535 = vld [vmem:[%s513 + $0x8] sm:$0xf]
        %v536 = vld [vmem:[%s513 + $0xc] sm:$0xf]
        %v537 = vld [vmem:[%s513 + $0x10] sm:$0xf]
        %v538 = vld [vmem:[%s513 + $0x14] sm:$0xf]
        %v539 = vld [vmem:[%s513 + $0x18] sm:$0xf]
        %v540 = vld [vmem:[%s513 + $0x1c] sm:$0xf]
        %v541 = vld [vmem:[%s513 + $0x20] sm:$0xf]
        %v542 = vld [vmem:[%s513 + $0x24] sm:$0xf]
        %v543 = vld [vmem:[%s513 + $0x28] sm:$0xf]
        %v544 = vld [vmem:[%s513 + $0x2c] sm:$0xf]
        %v545 = vld [vmem:[%s513 + $0x30] sm:$0xf]
        %v546 = vld [vmem:[%s513 + $0x34] sm:$0xf]
        %v547 = vld [vmem:[%s513 + $0x38] sm:$0xf]
        %v548 = vld [vmem:[%s513 + $0x3c] sm:$0xf]
        %p549 = scmp.eq.s32.totalorder %s34, 0
        // Predicated region
        $region61: #{tpu_custom_call.1} parent=47 // pred_check
          %p550 = pneg %p549
        $region62: #{tpu_custom_call.1} parent=47 // pred_check_branch
          %552 = sbr.rel (%p550) target = $region64
        $region63: #{tpu_custom_call.1} parent=47 // pred_region
          %p553 = scmp.eq.s32.totalorder %s35, 0
          // Predicated region
          $region65: #{tpu_custom_call.1} parent=63 // pred_check
            %p554 = pneg %p553
          $region66: #{tpu_custom_call.1} parent=63 // pred_check_branch
            %556 = sbr.rel (%p554) target = $region68
          $region67: #{tpu_custom_call.1} parent=63 // pred_region
            %557 = vst [vmem:[#allocation3] sm:$0xff] 0.0
            %558 = vst [vmem:[#allocation3 + $0x8] sm:$0xff] 0.0
            %559 = vst [vmem:[#allocation3 + $0x10] sm:$0xff] 0.0
            %560 = vst [vmem:[#allocation3 + $0x18] sm:$0xff] 0.0
            %561 = vst [vmem:[#allocation3 + $0x20] sm:$0xff] 0.0
            %562 = vst [vmem:[#allocation3 + $0x28] sm:$0xff] 0.0
            %563 = vst [vmem:[#allocation3 + $0x30] sm:$0xff] 0.0
            %564 = vst [vmem:[#allocation3 + $0x38] sm:$0xff] 0.0
            %565 = vst [vmem:[#allocation3 + $0x40] sm:$0xff] 0.0
            %566 = vst [vmem:[#allocation3 + $0x48] sm:$0xff] 0.0
            %567 = vst [vmem:[#allocation3 + $0x50] sm:$0xff] 0.0
            %568 = vst [vmem:[#allocation3 + $0x58] sm:$0xff] 0.0
            %569 = vst [vmem:[#allocation3 + $0x60] sm:$0xff] 0.0
            %570 = vst [vmem:[#allocation3 + $0x68] sm:$0xff] 0.0
            %571 = vst [vmem:[#allocation3 + $0x70] sm:$0xff] 0.0
            %572 = vst [vmem:[#allocation3 + $0x78] sm:$0xff] 0.0
            %573 = vst [vmem:[#allocation4] sm:$0xff] 0.0
            %574 = vst [vmem:[#allocation4 + $0x8] sm:$0xff] 0.0
            %575 = vst [vmem:[#allocation4 + $0x10] sm:$0xff] 0.0
            %576 = vst [vmem:[#allocation4 + $0x18] sm:$0xff] 0.0
            %577 = vst [vmem:[#allocation4 + $0x20] sm:$0xff] 0.0
            %578 = vst [vmem:[#allocation4 + $0x28] sm:$0xff] 0.0
            %579 = vst [vmem:[#allocation4 + $0x30] sm:$0xff] 0.0
            %580 = vst [vmem:[#allocation4 + $0x38] sm:$0xff] 0.0
            %581 = vst [vmem:[#allocation4 + $0x40] sm:$0xff] 0.0
            %582 = vst [vmem:[#allocation4 + $0x48] sm:$0xff] 0.0
            %583 = vst [vmem:[#allocation4 + $0x50] sm:$0xff] 0.0
            %584 = vst [vmem:[#allocation4 + $0x58] sm:$0xff] 0.0
            %585 = vst [vmem:[#allocation4 + $0x60] sm:$0xff] 0.0
            %586 = vst [vmem:[#allocation4 + $0x68] sm:$0xff] 0.0
            %587 = vst [vmem:[#allocation4 + $0x70] sm:$0xff] 0.0
            %588 = vst [vmem:[#allocation4 + $0x78] sm:$0xff] 0.0
            %589 = vst [vmem:[#allocation6] sm:$0x1] 0.0
          $region68: #{tpu_custom_call.1} parent=63 // pred_fallthru
            _
          %v590 = vld [vmem:[%s504] sm:$0xf]
          %v591 = vld [vmem:[%s504 + $0x4] sm:$0xf]
          %v592 = vld [vmem:[%s504 + $0x8] sm:$0xf]
          %v593 = vld [vmem:[%s504 + $0xc] sm:$0xf]
          %v594 = vld [vmem:[%s504 + $0x10] sm:$0xf]
          %v595 = vld [vmem:[%s504 + $0x14] sm:$0xf]
          %v596 = vld [vmem:[%s504 + $0x18] sm:$0xf]
          %v597 = vld [vmem:[%s504 + $0x1c] sm:$0xf]
          %v598 = vld [vmem:[%s504 + $0x20] sm:$0xf]
          %v599 = vld [vmem:[%s504 + $0x24] sm:$0xf]
          %v600 = vld [vmem:[%s504 + $0x28] sm:$0xf]
          %v601 = vld [vmem:[%s504 + $0x2c] sm:$0xf]
          %v602 = vld [vmem:[%s504 + $0x30] sm:$0xf]
          %v603 = vld [vmem:[%s504 + $0x34] sm:$0xf]
          %v604 = vld [vmem:[%s504 + $0x38] sm:$0xf]
          %v605 = vld [vmem:[%s504 + $0x3c] sm:$0xf]
          %s606 = sshra.s32 %s532, 3
          %s607 = sand.u32 %s532, 7
          %s608 = smul.addr %s606, 4
          %s609 = scalar_lea.vmem %s504, %s608
          %v610 = vld [vmem:[%s609] sm:$0xf]
          %v611 = vld [vmem:[%s609 + $0x4] sm:$0xf]
          %v612 = vld [vmem:[%s609 + $0x8] sm:$0xf]
          %v613 = vld [vmem:[%s609 + $0xc] sm:$0xf]
          %v614 = vld [vmem:[%s609 + $0x10] sm:$0xf]
          %v615 = vld [vmem:[%s609 + $0x14] sm:$0xf]
          %v616 = vld [vmem:[%s609 + $0x18] sm:$0xf]
          %v617 = vld [vmem:[%s609 + $0x1c] sm:$0xf]
          %v618 = vld [vmem:[%s609 + $0x20] sm:$0xf]
          %v619 = vld [vmem:[%s609 + $0x24] sm:$0xf]
          %v620 = vld [vmem:[%s609 + $0x28] sm:$0xf]
          %v621 = vld [vmem:[%s609 + $0x2c] sm:$0xf]
          %v622 = vld [vmem:[%s609 + $0x30] sm:$0xf]
          %v623 = vld [vmem:[%s609 + $0x34] sm:$0xf]
          %v624 = vld [vmem:[%s609 + $0x38] sm:$0xf]
          %v625 = vld [vmem:[%s609 + $0x3c] sm:$0xf]
          %v626 = vunpack.c.l.bf16 %v610
          %v627 = vunpack.c.l.bf16 %v611
          %v628 = vunpack.c.l.bf16 %v612
          %v629 = vunpack.c.l.bf16 %v613
          %v630 = vunpack.c.l.bf16 %v614
          %v631 = vunpack.c.l.bf16 %v615
          %v632 = vunpack.c.l.bf16 %v616
          %v633 = vunpack.c.l.bf16 %v617
          %v634 = vunpack.c.l.bf16 %v618
          %v635 = vunpack.c.l.bf16 %v619
          %v636 = vunpack.c.l.bf16 %v620
          %v637 = vunpack.c.l.bf16 %v621
          %v638 = vunpack.c.l.bf16 %v622
          %v639 = vunpack.c.l.bf16 %v623
          %v640 = vunpack.c.l.bf16 %v624
          %v641 = vunpack.c.l.bf16 %v625
          %v658 = vunpack.c.l.b16 %v533
          %v659 = vunpack.c.l.b16 %v534
          %v660 = vunpack.c.l.b16 %v535
          %v661 = vunpack.c.l.b16 %v536
          %v662 = vunpack.c.l.b16 %v537
          %v663 = vunpack.c.l.b16 %v538
          %v664 = vunpack.c.l.b16 %v539
          %v665 = vunpack.c.l.b16 %v540
          %v666 = vunpack.c.l.b16 %v541
          %v667 = vunpack.c.l.b16 %v542
          %v668 = vunpack.c.l.b16 %v543
          %v669 = vunpack.c.l.b16 %v544
          %v670 = vunpack.c.l.b16 %v545
          %v671 = vunpack.c.l.b16 %v546
          %v672 = vunpack.c.l.b16 %v547
          %v673 = vunpack.c.l.b16 %v548
          %v674 = vpack.c.b16 %v659, %v658
          %v675 = vpack.c.b16 %v661, %v660
          %v676 = vpack.c.b16 %v663, %v662
          %v677 = vpack.c.b16 %v665, %v664
          %v678 = vpack.c.b16 %v667, %v666
          %v679 = vpack.c.b16 %v669, %v668
          %v680 = vpack.c.b16 %v671, %v670
          %v681 = vpack.c.b16 %v673, %v672
          %v706 = vunpack.c.l.b16 %v590
          %v707 = vunpack.c.l.b16 %v591
          %v708 = vunpack.c.l.b16 %v592
          %v709 = vunpack.c.l.b16 %v593
          %v710 = vunpack.c.l.b16 %v594
          %v711 = vunpack.c.l.b16 %v595
          %v712 = vunpack.c.l.b16 %v596
          %v713 = vunpack.c.l.b16 %v597
          %v714 = vunpack.c.l.b16 %v598
          %v715 = vunpack.c.l.b16 %v599
          %v716 = vunpack.c.l.b16 %v600
          %v717 = vunpack.c.l.b16 %v601
          %v718 = vunpack.c.l.b16 %v602
          %v719 = vunpack.c.l.b16 %v603
          %v720 = vunpack.c.l.b16 %v604
          %v721 = vunpack.c.l.b16 %v605
          %v722 = vpack.c.b16 %v707, %v706
          %v723 = vpack.c.b16 %v709, %v708
          %v724 = vpack.c.b16 %v711, %v710
          %v725 = vpack.c.b16 %v713, %v712
          %v726 = vpack.c.b16 %v715, %v714
          %v727 = vpack.c.b16 %v717, %v716
          %v728 = vpack.c.b16 %v719, %v718
          %v729 = vpack.c.b16 %v721, %v720
          %738 = vmatpush.bf16.msra.mxu0 %v729
          %739 = vmatpush.bf16.msra.mxu0 %v728
          %740 = vmatpush.bf16.msra.mxu0 %v727
          %741 = vmatpush.bf16.msra.mxu0 %v726
          %742 = vmatpush.bf16.msra.mxu0 %v725
          %743 = vmatpush.bf16.msra.mxu0 %v724
          %744 = vmatpush.bf16.msra.mxu0 %v723
          %745 = vmatpush.bf16.msra.mxu0 %v722
          %746 = vmatmul.bf16.gmra.mxu0 %v674
          %v747 = vpop.f32.mrf.mxu0
          %v748 = vadd.f32 0.0, %v747
          %v749 = vpop.f32.mrf.mxu0
          %v750 = vadd.f32 0.0, %v749
          %751 = vmatmul.bf16.gmra.mxu0 %v675
          %v752 = vpop.f32.mrf.mxu0
          %v753 = vadd.f32 0.0, %v752
          %v754 = vpop.f32.mrf.mxu0
          %v755 = vadd.f32 0.0, %v754
          %756 = vmatmul.bf16.gmra.mxu0 %v676
          %v757 = vpop.f32.mrf.mxu0
          %v758 = vadd.f32 0.0, %v757
          %v759 = vpop.f32.mrf.mxu0
          %v760 = vadd.f32 0.0, %v759
          %761 = vmatmul.bf16.gmra.mxu0 %v677
          %v762 = vpop.f32.mrf.mxu0
          %v763 = vadd.f32 0.0, %v762
          %v764 = vpop.f32.mrf.mxu0
          %v765 = vadd.f32 0.0, %v764
          %766 = vmatmul.bf16.gmra.mxu0 %v678
          %v767 = vpop.f32.mrf.mxu0
          %v768 = vadd.f32 0.0, %v767
          %v769 = vpop.f32.mrf.mxu0
          %v770 = vadd.f32 0.0, %v769
          %771 = vmatmul.bf16.gmra.mxu0 %v679
          %v772 = vpop.f32.mrf.mxu0
          %v773 = vadd.f32 0.0, %v772
          %v774 = vpop.f32.mrf.mxu0
          %v775 = vadd.f32 0.0, %v774
          %776 = vmatmul.bf16.gmra.mxu0 %v680
          %v777 = vpop.f32.mrf.mxu0
          %v778 = vadd.f32 0.0, %v777
          %v779 = vpop.f32.mrf.mxu0
          %v780 = vadd.f32 0.0, %v779
          %781 = vmatmul.bf16.gmra.mxu0 %v681
          %v782 = vpop.f32.mrf.mxu0
          %v783 = vadd.f32 0.0, %v782
          %v784 = vpop.f32.mrf.mxu0
          %v785 = vadd.f32 0.0, %v784
          %786 = vdwg.mxu0
          %v787 = vld [vmem:[#allocation7] sm:$0x1f]
          %v788 = vld [vmem:[#allocation10] sm:$0x1]
          %v790 = vperm.slane %v788, 0
          %vm792 = vcmask 39936
          %v794 = vsel %vm792, %v748, 0
          %v797 = vsel %vm792, %v750, 0
          %v800 = vsel %vm792, %v753, 0
          %v803 = vsel %vm792, %v755, 0
          %v806 = vsel %vm792, %v758, 0
          %v809 = vsel %vm792, %v760, 0
          %v812 = vsel %vm792, %v763, 0
          %v815 = vsel %vm792, %v765, 0
          %v818 = vsel %vm792, %v768, 0
          %v821 = vsel %vm792, %v770, 0
          %v824 = vsel %vm792, %v773, 0
          %v827 = vsel %vm792, %v775, 0
          %v830 = vsel %vm792, %v778, 0
          %v833 = vsel %vm792, %v780, 0
          %v836 = vsel %vm792, %v783, 0
          %v839 = vsel %vm792, %v785, 0
          %vm841 = vcmask 1044480
          %v843 = vsel %vm841, %v787, 0
          %845 = vmatpush.msra.mxu0 0.0
          %846 = vmatpush.msra.mxu0 0.0
          %847 = vmatpush.msra.mxu0 0.0
          %848 = vmatpush.msra.mxu0 0.0
          %849 = vmatpush.msra.mxu0 0.0
          %850 = vmatpush.msra.mxu0 0.0
          %851 = vmatpush.msra.mxu0 0.0
          %852 = vmatpush.msra.mxu0 0.0
          %853 = vmatpush.msra.mxu0 0.0
          %854 = vmatpush.msra.mxu0 0.0
          %855 = vmatpush.msra.mxu0 0.0
          %856 = vmatpush.msra.mxu0 0.0
          %857 = vmatpush.msra.mxu0 0.0
          %858 = vmatpush.msra.mxu0 0.0
          %859 = vmatpush.msra.mxu0 0.0
          %860 = vmatpush.msra.mxu0 %v843
          %861 = vmatmul.f32.gmra.mxu0 %v794
          %v862 = vpop.f32.mrf.mxu0
          %v863 = vadd.f32 %v790, %v862
          %864 = vmatmul.f32.gmra.mxu0 %v797
          %v865 = vpop.f32.mrf.mxu0
          %v866 = vadd.f32 %v790, %v865
          %867 = vmatmul.f32.gmra.mxu0 %v800
          %v868 = vpop.f32.mrf.mxu0
          %v869 = vadd.f32 %v790, %v868
          %870 = vmatmul.f32.gmra.mxu0 %v803
          %v871 = vpop.f32.mrf.mxu0
          %v872 = vadd.f32 %v790, %v871
          %873 = vmatmul.f32.gmra.mxu0 %v806
          %v874 = vpop.f32.mrf.mxu0
          %v875 = vadd.f32 %v790, %v874
          %876 = vmatmul.f32.gmra.mxu0 %v809
          %v877 = vpop.f32.mrf.mxu0
          %v878 = vadd.f32 %v790, %v877
          %879 = vmatmul.f32.gmra.mxu0 %v812
          %v880 = vpop.f32.mrf.mxu0
          %v881 = vadd.f32 %v790, %v880
          %882 = vmatmul.f32.gmra.mxu0 %v815
          %v883 = vpop.f32.mrf.mxu0
          %v884 = vadd.f32 %v790, %v883
          %885 = vmatmul.f32.gmra.mxu0 %v818
          %v886 = vpop.f32.mrf.mxu0
          %v887 = vadd.f32 %v790, %v886
          %888 = vmatmul.f32.gmra.mxu0 %v821
          %v889 = vpop.f32.mrf.mxu0
          %v890 = vadd.f32 %v790, %v889
          %891 = vmatmul.f32.gmra.mxu0 %v824
          %v892 = vpop.f32.mrf.mxu0
          %v893 = vadd.f32 %v790, %v892
          %894 = vmatmul.f32.gmra.mxu0 %v827
          %v895 = vpop.f32.mrf.mxu0
          %v896 = vadd.f32 %v790, %v895
          %897 = vmatmul.f32.gmra.mxu0 %v830
          %v898 = vpop.f32.mrf.mxu0
          %v899 = vadd.f32 %v790, %v898
          %900 = vmatmul.f32.gmra.mxu0 %v833
          %v901 = vpop.f32.mrf.mxu0
          %v902 = vadd.f32 %v790, %v901
          %903 = vmatmul.f32.gmra.mxu0 %v836
          %v904 = vpop.f32.mrf.mxu0
          %v905 = vadd.f32 %v790, %v904
          %906 = vmatmul.f32.gmra.mxu0 %v839
          %v907 = vpop.f32.mrf.mxu0
          %v908 = vadd.f32 %v790, %v907
          %909 = vdwg.mxu0
          %v910 = vld [vmem:[%s4] sm:$0x1f]
          %v912 = vsel %vm792, %v626, 0
          %v915 = vsel %vm792, %v627, 0
          %v918 = vsel %vm792, %v628, 0
          %v921 = vsel %vm792, %v629, 0
          %v924 = vsel %vm792, %v630, 0
          %v927 = vsel %vm792, %v631, 0
          %v930 = vsel %vm792, %v632, 0
          %v933 = vsel %vm792, %v633, 0
          %v936 = vsel %vm792, %v634, 0
          %v939 = vsel %vm792, %v635, 0
          %v942 = vsel %vm792, %v636, 0
          %v945 = vsel %vm792, %v637, 0
          %v948 = vsel %vm792, %v638, 0
          %v951 = vsel %vm792, %v639, 0
          %v954 = vsel %vm792, %v640, 0
          %v957 = vsel %vm792, %v641, 0
          %v960 = vsel %vm841, %v910, 0
          %962 = vmatpush.msra.mxu0 0.0
          %963 = vmatpush.msra.mxu0 0.0
          %964 = vmatpush.msra.mxu0 0.0
          %965 = vmatpush.msra.mxu0 0.0
          %966 = vmatpush.msra.mxu0 0.0
          %967 = vmatpush.msra.mxu0 0.0
          %968 = vmatpush.msra.mxu0 0.0
          %969 = vmatpush.msra.mxu0 0.0
          %970 = vmatpush.msra.mxu0 0.0
          %971 = vmatpush.msra.mxu0 0.0
          %972 = vmatpush.msra.mxu0 0.0
          %973 = vmatpush.msra.mxu0 0.0
          %974 = vmatpush.msra.mxu0 0.0
          %975 = vmatpush.msra.mxu0 0.0
          %976 = vmatpush.msra.mxu0 0.0
          %977 = vmatpush.msra.mxu0 %v960
          %978 = vmatmul.f32.gmra.mxu0 %v912
          %v979 = vpop.f32.mrf.mxu0
          %v980 = vadd.f32 0.0, %v979
          %981 = vmatmul.f32.gmra.mxu0 %v915
          %v982 = vpop.f32.mrf.mxu0
          %v983 = vadd.f32 0.0, %v982
          %984 = vmatmul.f32.gmra.mxu0 %v918
          %v985 = vpop.f32.mrf.mxu0
          %v986 = vadd.f32 0.0, %v985
          %987 = vmatmul.f32.gmra.mxu0 %v921
          %v988 = vpop.f32.mrf.mxu0
          %v989 = vadd.f32 0.0, %v988
          %990 = vmatmul.f32.gmra.mxu0 %v924
          %v991 = vpop.f32.mrf.mxu0
          %v992 = vadd.f32 0.0, %v991
          %993 = vmatmul.f32.gmra.mxu0 %v927
          %v994 = vpop.f32.mrf.mxu0
          %v995 = vadd.f32 0.0, %v994
          %996 = vmatmul.f32.gmra.mxu0 %v930
          %v997 = vpop.f32.mrf.mxu0
          %v998 = vadd.f32 0.0, %v997
          %999 = vmatmul.f32.gmra.mxu0 %v933
          %v1000 = vpop.f32.mrf.mxu0
          %v1001 = vadd.f32 0.0, %v1000
          %1002 = vmatmul.f32.gmra.mxu0 %v936
          %v1003 = vpop.f32.mrf.mxu0
          %v1004 = vadd.f32 0.0, %v1003
          %1005 = vmatmul.f32.gmra.mxu0 %v939
          %v1006 = vpop.f32.mrf.mxu0
          %v1007 = vadd.f32 0.0, %v1006
          %1008 = vmatmul.f32.gmra.mxu0 %v942
          %v1009 = vpop.f32.mrf.mxu0
          %v1010 = vadd.f32 0.0, %v1009
          %1011 = vmatmul.f32.gmra.mxu0 %v945
          %v1012 = vpop.f32.mrf.mxu0
          %v1013 = vadd.f32 0.0, %v1012
          %1014 = vmatmul.f32.gmra.mxu0 %v948
          %v1015 = vpop.f32.mrf.mxu0
          %v1016 = vadd.f32 0.0, %v1015
          %1017 = vmatmul.f32.gmra.mxu0 %v951
          %v1018 = vpop.f32.mrf.mxu0
          %v1019 = vadd.f32 0.0, %v1018
          %1020 = vmatmul.f32.gmra.mxu0 %v954
          %v1021 = vpop.f32.mrf.mxu0
          %v1022 = vadd.f32 0.0, %v1021
          %1023 = vmatmul.f32.gmra.mxu0 %v957
          %v1024 = vpop.f32.mrf.mxu0
          %v1025 = vadd.f32 0.0, %v1024
          %1026 = vdwg.mxu0
          %v1027 = vadd.f32 %v863, %v980
          %v1028 = vadd.f32 %v866, %v983
          %v1029 = vadd.f32 %v869, %v986
          %v1030 = vadd.f32 %v872, %v989
          %v1031 = vadd.f32 %v875, %v992
          %v1032 = vadd.f32 %v878, %v995
          %v1033 = vadd.f32 %v881, %v998
          %v1034 = vadd.f32 %v884, %v1001
          %v1035 = vadd.f32 %v887, %v1004
          %v1036 = vadd.f32 %v890, %v1007
          %v1037 = vadd.f32 %v893, %v1010
          %v1038 = vadd.f32 %v896, %v1013
          %v1039 = vadd.f32 %v899, %v1016
          %v1040 = vadd.f32 %v902, %v1019
          %v1041 = vadd.f32 %v905, %v1022
          %v1042 = vadd.f32 %v908, %v1025
          %v1043 = vmax.f32 %v1027, 0.0
          %v1044 = vmax.f32 %v1028, 0.0
          %v1045 = vmax.f32 %v1029, 0.0
          %v1046 = vmax.f32 %v1030, 0.0
          %v1047 = vmax.f32 %v1031, 0.0
          %v1048 = vmax.f32 %v1032, 0.0
          %v1049 = vmax.f32 %v1033, 0.0
          %v1050 = vmax.f32 %v1034, 0.0
          %v1051 = vmax.f32 %v1035, 0.0
          %v1052 = vmax.f32 %v1036, 0.0
          %v1053 = vmax.f32 %v1037, 0.0
          %v1054 = vmax.f32 %v1038, 0.0
          %v1055 = vmax.f32 %v1039, 0.0
          %v1056 = vmax.f32 %v1040, 0.0
          %v1057 = vmax.f32 %v1041, 0.0
          %v1058 = vmax.f32 %v1042, 0.0
          %v1059 = vld [vmem:[#allocation12] sm:$0xff]
          %v1060 = vld [vmem:[#allocation12 + $0x8] sm:$0xff]
          %v1061 = vld [vmem:[#allocation12 + $0x10] sm:$0xff]
          %v1062 = vld [vmem:[#allocation12 + $0x18] sm:$0xff]
          %v1063 = vld [vmem:[#allocation12 + $0x20] sm:$0xff]
          %v1064 = vld [vmem:[#allocation12 + $0x28] sm:$0xff]
          %v1065 = vld [vmem:[#allocation12 + $0x30] sm:$0xff]
          %v1066 = vld [vmem:[#allocation12 + $0x38] sm:$0xff]
          %v1067 = vld [vmem:[#allocation12 + $0x40] sm:$0xff]
          %v1068 = vld [vmem:[#allocation12 + $0x48] sm:$0xff]
          %v1069 = vld [vmem:[#allocation12 + $0x50] sm:$0xff]
          %v1070 = vld [vmem:[#allocation12 + $0x58] sm:$0xff]
          %v1071 = vld [vmem:[#allocation12 + $0x60] sm:$0xff]
          %v1072 = vld [vmem:[#allocation12 + $0x68] sm:$0xff]
          %v1073 = vld [vmem:[#allocation12 + $0x70] sm:$0xff]
          %v1074 = vld [vmem:[#allocation12 + $0x78] sm:$0xff]
          %v1075 = vld [vmem:[%s6] sm:$0x1]
          %v1077 = vperm.slane %v1075, 0
          %1079 = vmatpush.msra.mxu0 %v1074
          %1080 = vmatpush.msra.mxu0 %v1073
          %1081 = vmatpush.msra.mxu0 %v1072
          %1082 = vmatpush.msra.mxu0 %v1071
          %1083 = vmatpush.msra.mxu0 %v1070
          %1084 = vmatpush.msra.mxu0 %v1069
          %1085 = vmatpush.msra.mxu0 %v1068
          %1086 = vmatpush.msra.mxu0 %v1067
          %1087 = vmatpush.msra.mxu0 %v1066
          %1088 = vmatpush.msra.mxu0 %v1065
          %1089 = vmatpush.msra.mxu0 %v1064
          %1090 = vmatpush.msra.mxu0 %v1063
          %1091 = vmatpush.msra.mxu0 %v1062
          %1092 = vmatpush.msra.mxu0 %v1061
          %1093 = vmatpush.msra.mxu0 %v1060
          %1094 = vmatpush.msra.mxu0 %v1059
          %1095 = vmatmul.f32.gmra.mxu0 %v1043
          %v1096 = vpop.f32.mrf.mxu0
          %v1097 = vadd.f32 %v1077, %v1096
          %1098 = vmatmul.f32.gmra.mxu0 %v1044
          %v1099 = vpop.f32.mrf.mxu0
          %v1100 = vadd.f32 %v1077, %v1099
          %1101 = vmatmul.f32.gmra.mxu0 %v1045
          %v1102 = vpop.f32.mrf.mxu0
          %v1103 = vadd.f32 %v1077, %v1102
          %1104 = vmatmul.f32.gmra.mxu0 %v1046
          %v1105 = vpop.f32.mrf.mxu0
          %v1106 = vadd.f32 %v1077, %v1105
          %1107 = vmatmul.f32.gmra.mxu0 %v1047
          %v1108 = vpop.f32.mrf.mxu0
          %v1109 = vadd.f32 %v1077, %v1108
          %1110 = vmatmul.f32.gmra.mxu0 %v1048
          %v1111 = vpop.f32.mrf.mxu0
          %v1112 = vadd.f32 %v1077, %v1111
          %1113 = vmatmul.f32.gmra.mxu0 %v1049
          %v1114 = vpop.f32.mrf.mxu0
          %v1115 = vadd.f32 %v1077, %v1114
          %1116 = vmatmul.f32.gmra.mxu0 %v1050
          %v1117 = vpop.f32.mrf.mxu0
          %v1118 = vadd.f32 %v1077, %v1117
          %1119 = vmatmul.f32.gmra.mxu0 %v1051
          %v1120 = vpop.f32.mrf.mxu0
          %v1121 = vadd.f32 %v1077, %v1120
          %1122 = vmatmul.f32.gmra.mxu0 %v1052
          %v1123 = vpop.f32.mrf.mxu0
          %v1124 = vadd.f32 %v1077, %v1123
          %1125 = vmatmul.f32.gmra.mxu0 %v1053
          %v1126 = vpop.f32.mrf.mxu0
          %v1127 = vadd.f32 %v1077, %v1126
          %1128 = vmatmul.f32.gmra.mxu0 %v1054
          %v1129 = vpop.f32.mrf.mxu0
          %v1130 = vadd.f32 %v1077, %v1129
          %1131 = vmatmul.f32.gmra.mxu0 %v1055
          %v1132 = vpop.f32.mrf.mxu0
          %v1133 = vadd.f32 %v1077, %v1132
          %1134 = vmatmul.f32.gmra.mxu0 %v1056
          %v1135 = vpop.f32.mrf.mxu0
          %v1136 = vadd.f32 %v1077, %v1135
          %1137 = vmatmul.f32.gmra.mxu0 %v1057
          %v1138 = vpop.f32.mrf.mxu0
          %v1139 = vadd.f32 %v1077, %v1138
          %1140 = vmatmul.f32.gmra.mxu0 %v1058
          %v1141 = vpop.f32.mrf.mxu0
          %v1142 = vadd.f32 %v1077, %v1141
          %1143 = vdwg.mxu0
          %1144 = vst [vmem:[%s493] sm:$0xff] %v1097
          %1145 = vst [vmem:[%s493 + $0x8] sm:$0xff] %v1100
          %1146 = vst [vmem:[%s493 + $0x10] sm:$0xff] %v1103
          %1147 = vst [vmem:[%s493 + $0x18] sm:$0xff] %v1106
          %1148 = vst [vmem:[%s493 + $0x20] sm:$0xff] %v1109
          %1149 = vst [vmem:[%s493 + $0x28] sm:$0xff] %v1112
          %1150 = vst [vmem:[%s493 + $0x30] sm:$0xff] %v1115
          %1151 = vst [vmem:[%s493 + $0x38] sm:$0xff] %v1118
          %1152 = vst [vmem:[%s493 + $0x40] sm:$0xff] %v1121
          %1153 = vst [vmem:[%s493 + $0x48] sm:$0xff] %v1124
          %1154 = vst [vmem:[%s493 + $0x50] sm:$0xff] %v1127
          %1155 = vst [vmem:[%s493 + $0x58] sm:$0xff] %v1130
          %1156 = vst [vmem:[%s493 + $0x60] sm:$0xff] %v1133
          %1157 = vst [vmem:[%s493 + $0x68] sm:$0xff] %v1136
          %1158 = vst [vmem:[%s493 + $0x70] sm:$0xff] %v1139
          %1159 = vst [vmem:[%s493 + $0x78] sm:$0xff] %v1142
          %v1160 = vlaneseq
          %v1161 = vand.u32 %v1160, 127
          %vm1162 = vcmp.lt.s32.totalorder %v1161, 7
          %v1163 = vsel %vm1162, %v1097, -1e+30
          %v1164 = vsel %vm1162, %v1100, -1e+30
          %v1165 = vsel %vm1162, %v1103, -1e+30
          %v1166 = vsel %vm1162, %v1106, -1e+30
          %v1167 = vsel %vm1162, %v1109, -1e+30
          %v1168 = vsel %vm1162, %v1112, -1e+30
          %v1169 = vsel %vm1162, %v1115, -1e+30
          %v1170 = vsel %vm1162, %v1118, -1e+30
          %v1171 = vsel %vm1162, %v1121, -1e+30
          %v1172 = vsel %vm1162, %v1124, -1e+30
          %v1173 = vsel %vm1162, %v1127, -1e+30
          %v1174 = vsel %vm1162, %v1130, -1e+30
          %v1175 = vsel %vm1162, %v1133, -1e+30
          %v1176 = vsel %vm1162, %v1136, -1e+30
          %v1177 = vsel %vm1162, %v1139, -1e+30
          %v1178 = vsel %vm1162, %v1142, -1e+30
          %1179 = vmax.xlane.f32.xlu0 %v1163
          %v1180 = vpop.xlane.xlu0 %1179
          %1181 = vmax.xlane.f32.xlu0 %v1164
          %v1182 = vpop.xlane.xlu0 %1181
          %1183 = vmax.xlane.f32.xlu0 %v1165
          %v1184 = vpop.xlane.xlu0 %1183
          %1185 = vmax.xlane.f32.xlu0 %v1166
          %v1186 = vpop.xlane.xlu0 %1185
          %1187 = vmax.xlane.f32.xlu0 %v1167
          %v1188 = vpop.xlane.xlu0 %1187
          %1189 = vmax.xlane.f32.xlu0 %v1168
          %v1190 = vpop.xlane.xlu0 %1189
          %1191 = vmax.xlane.f32.xlu0 %v1169
          %v1192 = vpop.xlane.xlu0 %1191
          %1193 = vmax.xlane.f32.xlu0 %v1170
          %v1194 = vpop.xlane.xlu0 %1193
          %1195 = vmax.xlane.f32.xlu0 %v1171
          %v1196 = vpop.xlane.xlu0 %1195
          %1197 = vmax.xlane.f32.xlu0 %v1172
          %v1198 = vpop.xlane.xlu0 %1197
          %1199 = vmax.xlane.f32.xlu0 %v1173
          %v1200 = vpop.xlane.xlu0 %1199
          %1201 = vmax.xlane.f32.xlu0 %v1174
          %v1202 = vpop.xlane.xlu0 %1201
          %1203 = vmax.xlane.f32.xlu0 %v1175
          %v1204 = vpop.xlane.xlu0 %1203
          %1205 = vmax.xlane.f32.xlu0 %v1176
          %v1206 = vpop.xlane.xlu0 %1205
          %1207 = vmax.xlane.f32.xlu0 %v1177
          %v1208 = vpop.xlane.xlu0 %1207
          %1209 = vmax.xlane.f32.xlu0 %v1178
          %v1210 = vpop.xlane.xlu0 %1209
          %v1211 = vsub.f32 %v1163, %v1180
          %v1212 = vsub.f32 %v1164, %v1182
          %v1213 = vsub.f32 %v1165, %v1184
          %v1214 = vsub.f32 %v1166, %v1186
          %v1215 = vsub.f32 %v1167, %v1188
          %v1216 = vsub.f32 %v1168, %v1190
          %v1217 = vsub.f32 %v1169, %v1192
          %v1218 = vsub.f32 %v1170, %v1194
          %v1219 = vsub.f32 %v1171, %v1196
          %v1220 = vsub.f32 %v1172, %v1198
          %v1221 = vsub.f32 %v1173, %v1200
          %v1222 = vsub.f32 %v1174, %v1202
          %v1223 = vsub.f32 %v1175, %v1204
          %v1224 = vsub.f32 %v1176, %v1206
          %v1225 = vsub.f32 %v1177, %v1208
          %v1226 = vsub.f32 %v1178, %v1210
          %v1227 = vmul.f32 %v1211, 1.442695
          %v1228 = vpow.pop %v1227
          %v1229 = vmul.f32 %v1212, 1.442695
          %v1230 = vpow.pop %v1229
          %v1231 = vmul.f32 %v1213, 1.442695
          %v1232 = vpow.pop %v1231
          %v1233 = vmul.f32 %v1214, 1.442695
          %v1234 = vpow.pop %v1233
          %v1235 = vmul.f32 %v1215, 1.442695
          %v1236 = vpow.pop %v1235
          %v1237 = vmul.f32 %v1216, 1.442695
          %v1238 = vpow.pop %v1237
          %v1239 = vmul.f32 %v1217, 1.442695
          %v1240 = vpow.pop %v1239
          %v1241 = vmul.f32 %v1218, 1.442695
          %v1242 = vpow.pop %v1241
          %v1243 = vmul.f32 %v1219, 1.442695
          %v1244 = vpow.pop %v1243
          %v1245 = vmul.f32 %v1220, 1.442695
          %v1246 = vpow.pop %v1245
          %v1247 = vmul.f32 %v1221, 1.442695
          %v1248 = vpow.pop %v1247
          %v1249 = vmul.f32 %v1222, 1.442695
          %v1250 = vpow.pop %v1249
          %v1251 = vmul.f32 %v1223, 1.442695
          %v1252 = vpow.pop %v1251
          %v1253 = vmul.f32 %v1224, 1.442695
          %v1254 = vpow.pop %v1253
          %v1255 = vmul.f32 %v1225, 1.442695
          %v1256 = vpow.pop %v1255
          %v1257 = vmul.f32 %v1226, 1.442695
          %v1258 = vpow.pop %v1257
          %1259 = vadd.xlane.f32.xlu0 %v1228
          %v1260 = vpop.xlane.xlu0 %1259
          %1261 = vadd.xlane.f32.xlu0 %v1230
          %v1262 = vpop.xlane.xlu0 %1261
          %1263 = vadd.xlane.f32.xlu0 %v1232
          %v1264 = vpop.xlane.xlu0 %1263
          %1265 = vadd.xlane.f32.xlu0 %v1234
          %v1266 = vpop.xlane.xlu0 %1265
          %1267 = vadd.xlane.f32.xlu0 %v1236
          %v1268 = vpop.xlane.xlu0 %1267
          %1269 = vadd.xlane.f32.xlu0 %v1238
          %v1270 = vpop.xlane.xlu0 %1269
          %1271 = vadd.xlane.f32.xlu0 %v1240
          %v1272 = vpop.xlane.xlu0 %1271
          %1273 = vadd.xlane.f32.xlu0 %v1242
          %v1274 = vpop.xlane.xlu0 %1273
          %1275 = vadd.xlane.f32.xlu0 %v1244
          %v1276 = vpop.xlane.xlu0 %1275
          %1277 = vadd.xlane.f32.xlu0 %v1246
          %v1278 = vpop.xlane.xlu0 %1277
          %1279 = vadd.xlane.f32.xlu0 %v1248
          %v1280 = vpop.xlane.xlu0 %1279
          %1281 = vadd.xlane.f32.xlu0 %v1250
          %v1282 = vpop.xlane.xlu0 %1281
          %1283 = vadd.xlane.f32.xlu0 %v1252
          %v1284 = vpop.xlane.xlu0 %1283
          %1285 = vadd.xlane.f32.xlu0 %v1254
          %v1286 = vpop.xlane.xlu0 %1285
          %1287 = vadd.xlane.f32.xlu0 %v1256
          %v1288 = vpop.xlane.xlu0 %1287
          %1289 = vadd.xlane.f32.xlu0 %v1258
          %v1290 = vpop.xlane.xlu0 %1289
          %v1291 = vrcp.pop %v1260
          %v1292 = vmul.f32 %v1260, %v1291
          %v1293 = vsub.f32 1.0, %v1292
          %v1294 = vmul.f32 %v1291, %v1293
          %v1295 = vadd.f32 %v1291, %v1294
          %vm1296 = vweird.f32 %v1260
          %vm1297 = vweird.f32 %v1291
          %vm1298 = vmor %vm1296, %vm1297
          %v1299 = vsel %vm1298, %v1291, %v1295
          %v1300 = vand.u32 2147483647, %v1260
          %vm1301 = vcmp.eq.f32.partialorder %v1300, 8.507059e+37
          %v1302 = vand.u32 %v1260, 2147483648
          %v1303 = vor.u32 1.1754944e-38, %v1302
          %v1304 = vsel %vm1301, %v1303, %v1299
          %v1305 = vmul.f32 %v1228, %v1304
          %v1306 = vrcp.pop %v1262
          %v1307 = vmul.f32 %v1262, %v1306
          %v1308 = vsub.f32 1.0, %v1307
          %v1309 = vmul.f32 %v1306, %v1308
          %v1310 = vadd.f32 %v1306, %v1309
          %vm1311 = vweird.f32 %v1262
          %vm1312 = vweird.f32 %v1306
          %vm1313 = vmor %vm1311, %vm1312
          %v1314 = vsel %vm1313, %v1306, %v1310
          %v1315 = vand.u32 2147483647, %v1262
          %vm1316 = vcmp.eq.f32.partialorder %v1315, 8.507059e+37
          %v1317 = vand.u32 %v1262, 2147483648
          %v1318 = vor.u32 1.1754944e-38, %v1317
          %v1319 = vsel %vm1316, %v1318, %v1314
          %v1320 = vmul.f32 %v1230, %v1319
          %v1321 = vrcp.pop %v1264
          %v1322 = vmul.f32 %v1264, %v1321
          %v1323 = vsub.f32 1.0, %v1322
          %v1324 = vmul.f32 %v1321, %v1323
          %v1325 = vadd.f32 %v1321, %v1324
          %vm1326 = vweird.f32 %v1264
          %vm1327 = vweird.f32 %v1321
          %vm1328 = vmor %vm1326, %vm1327
          %v1329 = vsel %vm1328, %v1321, %v1325
          %v1330 = vand.u32 2147483647, %v1264
          %vm1331 = vcmp.eq.f32.partialorder %v1330, 8.507059e+37
          %v1332 = vand.u32 %v1264, 2147483648
          %v1333 = vor.u32 1.1754944e-38, %v1332
          %v1334 = vsel %vm1331, %v1333, %v1329
          %v1335 = vmul.f32 %v1232, %v1334
          %v1336 = vrcp.pop %v1266
          %v1337 = vmul.f32 %v1266, %v1336
          %v1338 = vsub.f32 1.0, %v1337
          %v1339 = vmul.f32 %v1336, %v1338
          %v1340 = vadd.f32 %v1336, %v1339
          %vm1341 = vweird.f32 %v1266
          %vm1342 = vweird.f32 %v1336
          %vm1343 = vmor %vm1341, %vm1342
          %v1344 = vsel %vm1343, %v1336, %v1340
          %v1345 = vand.u32 2147483647, %v1266
          %vm1346 = vcmp.eq.f32.partialorder %v1345, 8.507059e+37
          %v1347 = vand.u32 %v1266, 2147483648
          %v1348 = vor.u32 1.1754944e-38, %v1347
          %v1349 = vsel %vm1346, %v1348, %v1344
          %v1350 = vmul.f32 %v1234, %v1349
          %v1351 = vrcp.pop %v1268
          %v1352 = vmul.f32 %v1268, %v1351
          %v1353 = vsub.f32 1.0, %v1352
          %v1354 = vmul.f32 %v1351, %v1353
          %v1355 = vadd.f32 %v1351, %v1354
          %vm1356 = vweird.f32 %v1268
          %vm1357 = vweird.f32 %v1351
          %vm1358 = vmor %vm1356, %vm1357
          %v1359 = vsel %vm1358, %v1351, %v1355
          %v1360 = vand.u32 2147483647, %v1268
          %vm1361 = vcmp.eq.f32.partialorder %v1360, 8.507059e+37
          %v1362 = vand.u32 %v1268, 2147483648
          %v1363 = vor.u32 1.1754944e-38, %v1362
          %v1364 = vsel %vm1361, %v1363, %v1359
          %v1365 = vmul.f32 %v1236, %v1364
          %v1366 = vrcp.pop %v1270
          %v1367 = vmul.f32 %v1270, %v1366
          %v1368 = vsub.f32 1.0, %v1367
          %v1369 = vmul.f32 %v1366, %v1368
          %v1370 = vadd.f32 %v1366, %v1369
          %vm1371 = vweird.f32 %v1270
          %vm1372 = vweird.f32 %v1366
          %vm1373 = vmor %vm1371, %vm1372
          %v1374 = vsel %vm1373, %v1366, %v1370
          %v1375 = vand.u32 2147483647, %v1270
          %vm1376 = vcmp.eq.f32.partialorder %v1375, 8.507059e+37
          %v1377 = vand.u32 %v1270, 2147483648
          %v1378 = vor.u32 1.1754944e-38, %v1377
          %v1379 = vsel %vm1376, %v1378, %v1374
          %v1380 = vmul.f32 %v1238, %v1379
          %v1381 = vrcp.pop %v1272
          %v1382 = vmul.f32 %v1272, %v1381
          %v1383 = vsub.f32 1.0, %v1382
          %v1384 = vmul.f32 %v1381, %v1383
          %v1385 = vadd.f32 %v1381, %v1384
          %vm1386 = vweird.f32 %v1272
          %vm1387 = vweird.f32 %v1381
          %vm1388 = vmor %vm1386, %vm1387
          %v1389 = vsel %vm1388, %v1381, %v1385
          %v1390 = vand.u32 2147483647, %v1272
          %vm1391 = vcmp.eq.f32.partialorder %v1390, 8.507059e+37
          %v1392 = vand.u32 %v1272, 2147483648
          %v1393 = vor.u32 1.1754944e-38, %v1392
          %v1394 = vsel %vm1391, %v1393, %v1389
          %v1395 = vmul.f32 %v1240, %v1394
          %v1396 = vrcp.pop %v1274
          %v1397 = vmul.f32 %v1274, %v1396
          %v1398 = vsub.f32 1.0, %v1397
          %v1399 = vmul.f32 %v1396, %v1398
          %v1400 = vadd.f32 %v1396, %v1399
          %vm1401 = vweird.f32 %v1274
          %vm1402 = vweird.f32 %v1396
          %vm1403 = vmor %vm1401, %vm1402
          %v1404 = vsel %vm1403, %v1396, %v1400
          %v1405 = vand.u32 2147483647, %v1274
          %vm1406 = vcmp.eq.f32.partialorder %v1405, 8.507059e+37
          %v1407 = vand.u32 %v1274, 2147483648
          %v1408 = vor.u32 1.1754944e-38, %v1407
          %v1409 = vsel %vm1406, %v1408, %v1404
          %v1410 = vmul.f32 %v1242, %v1409
          %v1411 = vrcp.pop %v1276
          %v1412 = vmul.f32 %v1276, %v1411
          %v1413 = vsub.f32 1.0, %v1412
          %v1414 = vmul.f32 %v1411, %v1413
          %v1415 = vadd.f32 %v1411, %v1414
          %vm1416 = vweird.f32 %v1276
          %vm1417 = vweird.f32 %v1411
          %vm1418 = vmor %vm1416, %vm1417
          %v1419 = vsel %vm1418, %v1411, %v1415
          %v1420 = vand.u32 2147483647, %v1276
          %vm1421 = vcmp.eq.f32.partialorder %v1420, 8.507059e+37
          %v1422 = vand.u32 %v1276, 2147483648
          %v1423 = vor.u32 1.1754944e-38, %v1422
          %v1424 = vsel %vm1421, %v1423, %v1419
          %v1425 = vmul.f32 %v1244, %v1424
          %v1426 = vrcp.pop %v1278
          %v1427 = vmul.f32 %v1278, %v1426
          %v1428 = vsub.f32 1.0, %v1427
          %v1429 = vmul.f32 %v1426, %v1428
          %v1430 = vadd.f32 %v1426, %v1429
          %vm1431 = vweird.f32 %v1278
          %vm1432 = vweird.f32 %v1426
          %vm1433 = vmor %vm1431, %vm1432
          %v1434 = vsel %vm1433, %v1426, %v1430
          %v1435 = vand.u32 2147483647, %v1278
          %vm1436 = vcmp.eq.f32.partialorder %v1435, 8.507059e+37
          %v1437 = vand.u32 %v1278, 2147483648
          %v1438 = vor.u32 1.1754944e-38, %v1437
          %v1439 = vsel %vm1436, %v1438, %v1434
          %v1440 = vmul.f32 %v1246, %v1439
          %v1441 = vrcp.pop %v1280
          %v1442 = vmul.f32 %v1280, %v1441
          %v1443 = vsub.f32 1.0, %v1442
          %v1444 = vmul.f32 %v1441, %v1443
          %v1445 = vadd.f32 %v1441, %v1444
          %vm1446 = vweird.f32 %v1280
          %vm1447 = vweird.f32 %v1441
          %vm1448 = vmor %vm1446, %vm1447
          %v1449 = vsel %vm1448, %v1441, %v1445
          %v1450 = vand.u32 2147483647, %v1280
          %vm1451 = vcmp.eq.f32.partialorder %v1450, 8.507059e+37
          %v1452 = vand.u32 %v1280, 2147483648
          %v1453 = vor.u32 1.1754944e-38, %v1452
          %v1454 = vsel %vm1451, %v1453, %v1449
          %v1455 = vmul.f32 %v1248, %v1454
          %v1456 = vrcp.pop %v1282
          %v1457 = vmul.f32 %v1282, %v1456
          %v1458 = vsub.f32 1.0, %v1457
          %v1459 = vmul.f32 %v1456, %v1458
          %v1460 = vadd.f32 %v1456, %v1459
          %vm1461 = vweird.f32 %v1282
          %vm1462 = vweird.f32 %v1456
          %vm1463 = vmor %vm1461, %vm1462
          %v1464 = vsel %vm1463, %v1456, %v1460
          %v1465 = vand.u32 2147483647, %v1282
          %vm1466 = vcmp.eq.f32.partialorder %v1465, 8.507059e+37
          %v1467 = vand.u32 %v1282, 2147483648
          %v1468 = vor.u32 1.1754944e-38, %v1467
          %v1469 = vsel %vm1466, %v1468, %v1464
          %v1470 = vmul.f32 %v1250, %v1469
          %v1471 = vrcp.pop %v1284
          %v1472 = vmul.f32 %v1284, %v1471
          %v1473 = vsub.f32 1.0, %v1472
          %v1474 = vmul.f32 %v1471, %v1473
          %v1475 = vadd.f32 %v1471, %v1474
          %vm1476 = vweird.f32 %v1284
          %vm1477 = vweird.f32 %v1471
          %vm1478 = vmor %vm1476, %vm1477
          %v1479 = vsel %vm1478, %v1471, %v1475
          %v1480 = vand.u32 2147483647, %v1284
          %vm1481 = vcmp.eq.f32.partialorder %v1480, 8.507059e+37
          %v1482 = vand.u32 %v1284, 2147483648
          %v1483 = vor.u32 1.1754944e-38, %v1482
          %v1484 = vsel %vm1481, %v1483, %v1479
          %v1485 = vmul.f32 %v1252, %v1484
          %v1486 = vrcp.pop %v1286
          %v1487 = vmul.f32 %v1286, %v1486
          %v1488 = vsub.f32 1.0, %v1487
          %v1489 = vmul.f32 %v1486, %v1488
          %v1490 = vadd.f32 %v1486, %v1489
          %vm1491 = vweird.f32 %v1286
          %vm1492 = vweird.f32 %v1486
          %vm1493 = vmor %vm1491, %vm1492
          %v1494 = vsel %vm1493, %v1486, %v1490
          %v1495 = vand.u32 2147483647, %v1286
          %vm1496 = vcmp.eq.f32.partialorder %v1495, 8.507059e+37
          %v1497 = vand.u32 %v1286, 2147483648
          %v1498 = vor.u32 1.1754944e-38, %v1497
          %v1499 = vsel %vm1496, %v1498, %v1494
          %v1500 = vmul.f32 %v1254, %v1499
          %v1501 = vrcp.pop %v1288
          %v1502 = vmul.f32 %v1288, %v1501
          %v1503 = vsub.f32 1.0, %v1502
          %v1504 = vmul.f32 %v1501, %v1503
          %v1505 = vadd.f32 %v1501, %v1504
          %vm1506 = vweird.f32 %v1288
          %vm1507 = vweird.f32 %v1501
          %vm1508 = vmor %vm1506, %vm1507
          %v1509 = vsel %vm1508, %v1501, %v1505
          %v1510 = vand.u32 2147483647, %v1288
          %vm1511 = vcmp.eq.f32.partialorder %v1510, 8.507059e+37
          %v1512 = vand.u32 %v1288, 2147483648
          %v1513 = vor.u32 1.1754944e-38, %v1512
          %v1514 = vsel %vm1511, %v1513, %v1509
          %v1515 = vmul.f32 %v1256, %v1514
          %v1516 = vrcp.pop %v1290
          %v1517 = vmul.f32 %v1290, %v1516
          %v1518 = vsub.f32 1.0, %v1517
          %v1519 = vmul.f32 %v1516, %v1518
          %v1520 = vadd.f32 %v1516, %v1519
          %vm1521 = vweird.f32 %v1290
          %vm1522 = vweird.f32 %v1516
          %vm1523 = vmor %vm1521, %vm1522
          %v1524 = vsel %vm1523, %v1516, %v1520
          %v1525 = vand.u32 2147483647, %v1290
          %vm1526 = vcmp.eq.f32.partialorder %v1525, 8.507059e+37
          %v1527 = vand.u32 %v1290, 2147483648
          %v1528 = vor.u32 1.1754944e-38, %v1527
          %v1529 = vsel %vm1526, %v1528, %v1524
          %v1530 = vmul.f32 %v1258, %v1529
          %v1531 = vlaneseq
          %v1532 = vshrl.u32 %v1531, 7
          %v1533 = vadd.s32 %v1532, 8
          %v1534 = vadd.s32 %v1532, 16
          %v1535 = vadd.s32 %v1532, 24
          %v1536 = vadd.s32 %v1532, 32
          %v1537 = vadd.s32 %v1532, 40
          %v1538 = vadd.s32 %v1532, 48
          %v1539 = vadd.s32 %v1532, 56
          %v1540 = vadd.s32 %v1532, 64
          %v1541 = vadd.s32 %v1532, 72
          %v1542 = vadd.s32 %v1532, 80
          %v1543 = vadd.s32 %v1532, 88
          %v1544 = vadd.s32 %v1532, 96
          %v1545 = vadd.s32 %v1532, 104
          %v1546 = vadd.s32 %v1532, 112
          %v1547 = vadd.s32 %v1532, 120
          %v1548 = vstv %s532
          %v1549 = vadd.s32 %v1548, %v1532
          %v1550 = vadd.s32 %v1548, %v1533
          %v1551 = vadd.s32 %v1548, %v1534
          %v1552 = vadd.s32 %v1548, %v1535
          %v1553 = vadd.s32 %v1548, %v1536
          %v1554 = vadd.s32 %v1548, %v1537
          %v1555 = vadd.s32 %v1548, %v1538
          %v1556 = vadd.s32 %v1548, %v1539
          %v1557 = vadd.s32 %v1548, %v1540
          %v1558 = vadd.s32 %v1548, %v1541
          %v1559 = vadd.s32 %v1548, %v1542
          %v1560 = vadd.s32 %v1548, %v1543
          %v1561 = vadd.s32 %v1548, %v1544
          %v1562 = vadd.s32 %v1548, %v1545
          %v1563 = vadd.s32 %v1548, %v1546
          %v1564 = vadd.s32 %v1548, %v1547
          %vm1565 = vcmp.lt.s32.totalorder %v1549, 16
          %vm1566 = vcmp.lt.s32.totalorder %v1550, 16
          %vm1567 = vcmp.lt.s32.totalorder %v1551, 16
          %vm1568 = vcmp.lt.s32.totalorder %v1552, 16
          %vm1569 = vcmp.lt.s32.totalorder %v1553, 16
          %vm1570 = vcmp.lt.s32.totalorder %v1554, 16
          %vm1571 = vcmp.lt.s32.totalorder %v1555, 16
          %vm1572 = vcmp.lt.s32.totalorder %v1556, 16
          %vm1573 = vcmp.lt.s32.totalorder %v1557, 16
          %vm1574 = vcmp.lt.s32.totalorder %v1558, 16
          %vm1575 = vcmp.lt.s32.totalorder %v1559, 16
          %vm1576 = vcmp.lt.s32.totalorder %v1560, 16
          %vm1577 = vcmp.lt.s32.totalorder %v1561, 16
          %vm1578 = vcmp.lt.s32.totalorder %v1562, 16
          %vm1579 = vcmp.lt.s32.totalorder %v1563, 16
          %vm1580 = vcmp.lt.s32.totalorder %v1564, 16
          %v1581 = vsel %vm1565, %v1305, 0.0
          %v1582 = vsel %vm1566, %v1320, 0.0
          %v1583 = vsel %vm1567, %v1335, 0.0
          %v1584 = vsel %vm1568, %v1350, 0.0
          %v1585 = vsel %vm1569, %v1365, 0.0
          %v1586 = vsel %vm1570, %v1380, 0.0
          %v1587 = vsel %vm1571, %v1395, 0.0
          %v1588 = vsel %vm1572, %v1410, 0.0
          %v1589 = vsel %vm1573, %v1425, 0.0
          %v1590 = vsel %vm1574, %v1440, 0.0
          %v1591 = vsel %vm1575, %v1455, 0.0
          %v1592 = vsel %vm1576, %v1470, 0.0
          %v1593 = vsel %vm1577, %v1485, 0.0
          %v1594 = vsel %vm1578, %v1500, 0.0
          %v1595 = vsel %vm1579, %v1515, 0.0
          %v1596 = vsel %vm1580, %v1530, 0.0
          %v1597 = vpack.c.bf16 %v1581, %v1581
          %v1598 = vpack.c.bf16 %v1582, %v1582
          %v1599 = vpack.c.bf16 %v1583, %v1583
          %v1600 = vpack.c.bf16 %v1584, %v1584
          %v1601 = vpack.c.bf16 %v1585, %v1585
          %v1602 = vpack.c.bf16 %v1586, %v1586
          %v1603 = vpack.c.bf16 %v1587, %v1587
          %v1604 = vpack.c.bf16 %v1588, %v1588
          %v1605 = vpack.c.bf16 %v1589, %v1589
          %v1606 = vpack.c.bf16 %v1590, %v1590
          %v1607 = vpack.c.bf16 %v1591, %v1591
          %v1608 = vpack.c.bf16 %v1592, %v1592
          %v1609 = vpack.c.bf16 %v1593, %v1593
          %v1610 = vpack.c.bf16 %v1594, %v1594
          %v1611 = vpack.c.bf16 %v1595, %v1595
          %v1612 = vpack.c.bf16 %v1596, %v1596
          %s1613 = smul.addr %s606, 4
          %s1614 = scalar_lea.vmem [#allocation2], %s1613
          %1615 = vst [vmem:[%s1614] sm:$0xf] %v1597
          %1616 = vst [vmem:[%s1614 + $0x4] sm:$0xf] %v1598
          %1617 = vst [vmem:[%s1614 + $0x8] sm:$0xf] %v1599
          %1618 = vst [vmem:[%s1614 + $0xc] sm:$0xf] %v1600
          %1619 = vst [vmem:[%s1614 + $0x10] sm:$0xf] %v1601
          %1620 = vst [vmem:[%s1614 + $0x14] sm:$0xf] %v1602
          %1621 = vst [vmem:[%s1614 + $0x18] sm:$0xf] %v1603
          %1622 = vst [vmem:[%s1614 + $0x1c] sm:$0xf] %v1604
          %1623 = vst [vmem:[%s1614 + $0x20] sm:$0xf] %v1605
          %1624 = vst [vmem:[%s1614 + $0x24] sm:$0xf] %v1606
          %1625 = vst [vmem:[%s1614 + $0x28] sm:$0xf] %v1607
          %1626 = vst [vmem:[%s1614 + $0x2c] sm:$0xf] %v1608
          %1627 = vst [vmem:[%s1614 + $0x30] sm:$0xf] %v1609
          %1628 = vst [vmem:[%s1614 + $0x34] sm:$0xf] %v1610
          %1629 = vst [vmem:[%s1614 + $0x38] sm:$0xf] %v1611
          %1630 = vst [vmem:[%s1614 + $0x3c] sm:$0xf] %v1612
          %v1631 = vld [vmem:[#allocation3] sm:$0xff]
          %v1632 = vld [vmem:[#allocation3 + $0x8] sm:$0xff]
          %v1633 = vld [vmem:[#allocation3 + $0x10] sm:$0xff]
          %v1634 = vld [vmem:[#allocation3 + $0x18] sm:$0xff]
          %v1635 = vld [vmem:[#allocation3 + $0x20] sm:$0xff]
          %v1636 = vld [vmem:[#allocation3 + $0x28] sm:$0xff]
          %v1637 = vld [vmem:[#allocation3 + $0x30] sm:$0xff]
          %v1638 = vld [vmem:[#allocation3 + $0x38] sm:$0xff]
          %v1639 = vld [vmem:[#allocation3 + $0x40] sm:$0xff]
          %v1640 = vld [vmem:[#allocation3 + $0x48] sm:$0xff]
          %v1641 = vld [vmem:[#allocation3 + $0x50] sm:$0xff]
          %v1642 = vld [vmem:[#allocation3 + $0x58] sm:$0xff]
          %v1643 = vld [vmem:[#allocation3 + $0x60] sm:$0xff]
          %v1644 = vld [vmem:[#allocation3 + $0x68] sm:$0xff]
          %v1645 = vld [vmem:[#allocation3 + $0x70] sm:$0xff]
          %v1646 = vld [vmem:[#allocation3 + $0x78] sm:$0xff]
          %1647 = vxpose.xlu0.b32.start [1/16] %v1581, 128
          %1648 = vxpose.xlu0.b32.cont [2/16] %v1582, 128
          %1649 = vxpose.xlu0.b32.cont [3/16] %v1583, 128
          %1650 = vxpose.xlu0.b32.cont [4/16] %v1584, 128
          %1651 = vxpose.xlu0.b32.cont [5/16] %v1585, 128
          %1652 = vxpose.xlu0.b32.cont [6/16] %v1586, 128
          %1653 = vxpose.xlu0.b32.cont [7/16] %v1587, 128
          %1654 = vxpose.xlu0.b32.cont [8/16] %v1588, 128
          %1655 = vxpose.xlu0.b32.cont [9/16] %v1589, 128
          %1656 = vxpose.xlu0.b32.cont [10/16] %v1590, 128
          %1657 = vxpose.xlu0.b32.cont [11/16] %v1591, 128
          %1658 = vxpose.xlu0.b32.cont [12/16] %v1592, 128
          %1659 = vxpose.xlu0.b32.cont [13/16] %v1593, 128
          %1660 = vxpose.xlu0.b32.cont [14/16] %v1594, 128
          %1661 = vxpose.xlu0.b32.cont [15/16] %v1595, 128
          %1662 = vxpose.xlu0.b32.end [16/16] %v1596, 128
          %v1663 = vpop.trf.xlu0
          %v1664 = vpop.trf.xlu0
          %v1665 = vpop.trf.xlu0
          %v1666 = vpop.trf.xlu0
          %v1667 = vpop.trf.xlu0
          %v1668 = vpop.trf.xlu0
          %v1669 = vpop.trf.xlu0
          %v1670 = vpop.trf.xlu0
          %v1671 = vpop.trf.xlu0
          %v1672 = vpop.trf.xlu0
          %v1673 = vpop.trf.xlu0
          %v1674 = vpop.trf.xlu0
          %v1675 = vpop.trf.xlu0
          %v1676 = vpop.trf.xlu0
          %v1677 = vpop.trf.xlu0
          %v1678 = vpop.trf.xlu0
          %1679 = vmatpush.msra.mxu0 %v1058
          %1680 = vmatpush.msra.mxu0 %v1057
          %1681 = vmatpush.msra.mxu0 %v1056
          %1682 = vmatpush.msra.mxu0 %v1055
          %1683 = vmatpush.msra.mxu0 %v1054
          %1684 = vmatpush.msra.mxu0 %v1053
          %1685 = vmatpush.msra.mxu0 %v1052
          %1686 = vmatpush.msra.mxu0 %v1051
          %1687 = vmatpush.msra.mxu0 %v1050
          %1688 = vmatpush.msra.mxu0 %v1049
          %1689 = vmatpush.msra.mxu0 %v1048
          %1690 = vmatpush.msra.mxu0 %v1047
          %1691 = vmatpush.msra.mxu0 %v1046
          %1692 = vmatpush.msra.mxu0 %v1045
          %1693 = vmatpush.msra.mxu0 %v1044
          %1694 = vmatpush.msra.mxu0 %v1043
          %1695 = vmatmul.f32.gmra.mxu0 %v1663
          %v1696 = vpop.f32.mrf.mxu0
          %v1697 = vadd.f32 0.0, %v1696
          %1698 = vmatmul.f32.gmra.mxu0 %v1664
          %v1699 = vpop.f32.mrf.mxu0
          %v1700 = vadd.f32 0.0, %v1699
          %1701 = vmatmul.f32.gmra.mxu0 %v1665
          %v1702 = vpop.f32.mrf.mxu0
          %v1703 = vadd.f32 0.0, %v1702
          %1704 = vmatmul.f32.gmra.mxu0 %v1666
          %v1705 = vpop.f32.mrf.mxu0
          %v1706 = vadd.f32 0.0, %v1705
          %1707 = vmatmul.f32.gmra.mxu0 %v1667
          %v1708 = vpop.f32.mrf.mxu0
          %v1709 = vadd.f32 0.0, %v1708
          %1710 = vmatmul.f32.gmra.mxu0 %v1668
          %v1711 = vpop.f32.mrf.mxu0
          %v1712 = vadd.f32 0.0, %v1711
          %1713 = vmatmul.f32.gmra.mxu0 %v1669
          %v1714 = vpop.f32.mrf.mxu0
          %v1715 = vadd.f32 0.0, %v1714
          %1716 = vmatmul.f32.gmra.mxu0 %v1670
          %v1717 = vpop.f32.mrf.mxu0
          %v1718 = vadd.f32 0.0, %v1717
          %1719 = vmatmul.f32.gmra.mxu0 %v1671
          %v1720 = vpop.f32.mrf.mxu0
          %v1721 = vadd.f32 0.0, %v1720
          %1722 = vmatmul.f32.gmra.mxu0 %v1672
          %v1723 = vpop.f32.mrf.mxu0
          %v1724 = vadd.f32 0.0, %v1723
          %1725 = vmatmul.f32.gmra.mxu0 %v1673
          %v1726 = vpop.f32.mrf.mxu0
          %v1727 = vadd.f32 0.0, %v1726
          %1728 = vmatmul.f32.gmra.mxu0 %v1674
          %v1729 = vpop.f32.mrf.mxu0
          %v1730 = vadd.f32 0.0, %v1729
          %1731 = vmatmul.f32.gmra.mxu0 %v1675
          %v1732 = vpop.f32.mrf.mxu0
          %v1733 = vadd.f32 0.0, %v1732
          %1734 = vmatmul.f32.gmra.mxu0 %v1676
          %v1735 = vpop.f32.mrf.mxu0
          %v1736 = vadd.f32 0.0, %v1735
          %1737 = vmatmul.f32.gmra.mxu0 %v1677
          %v1738 = vpop.f32.mrf.mxu0
          %v1739 = vadd.f32 0.0, %v1738
          %1740 = vmatmul.f32.gmra.mxu0 %v1678
          %v1741 = vpop.f32.mrf.mxu0
          %v1742 = vadd.f32 0.0, %v1741
          %1743 = vdwg.mxu0
          %v1744 = vadd.f32 %v1631, %v1697
          %v1745 = vadd.f32 %v1632, %v1700
          %v1746 = vadd.f32 %v1633, %v1703
          %v1747 = vadd.f32 %v1634, %v1706
          %v1748 = vadd.f32 %v1635, %v1709
          %v1749 = vadd.f32 %v1636, %v1712
          %v1750 = vadd.f32 %v1637, %v1715
          %v1751 = vadd.f32 %v1638, %v1718
          %v1752 = vadd.f32 %v1639, %v1721
          %v1753 = vadd.f32 %v1640, %v1724
          %v1754 = vadd.f32 %v1641, %v1727
          %v1755 = vadd.f32 %v1642, %v1730
          %v1756 = vadd.f32 %v1643, %v1733
          %v1757 = vadd.f32 %v1644, %v1736
          %v1758 = vadd.f32 %v1645, %v1739
          %v1759 = vadd.f32 %v1646, %v1742
          %1760 = vst [vmem:[#allocation3] sm:$0xff] %v1744
          %1761 = vst [vmem:[#allocation3 + $0x8] sm:$0xff] %v1745
          %1762 = vst [vmem:[#allocation3 + $0x10] sm:$0xff] %v1746
          %1763 = vst [vmem:[#allocation3 + $0x18] sm:$0xff] %v1747
          %1764 = vst [vmem:[#allocation3 + $0x20] sm:$0xff] %v1748
          %1765 = vst [vmem:[#allocation3 + $0x28] sm:$0xff] %v1749
          %1766 = vst [vmem:[#allocation3 + $0x30] sm:$0xff] %v1750
          %1767 = vst [vmem:[#allocation3 + $0x38] sm:$0xff] %v1751
          %1768 = vst [vmem:[#allocation3 + $0x40] sm:$0xff] %v1752
          %1769 = vst [vmem:[#allocation3 + $0x48] sm:$0xff] %v1753
          %1770 = vst [vmem:[#allocation3 + $0x50] sm:$0xff] %v1754
          %1771 = vst [vmem:[#allocation3 + $0x58] sm:$0xff] %v1755
          %1772 = vst [vmem:[#allocation3 + $0x60] sm:$0xff] %v1756
          %1773 = vst [vmem:[#allocation3 + $0x68] sm:$0xff] %v1757
          %1774 = vst [vmem:[#allocation3 + $0x70] sm:$0xff] %v1758
          %1775 = vst [vmem:[#allocation3 + $0x78] sm:$0xff] %v1759
          %v1776 = vld [vmem:[#allocation4] sm:$0xff]
          %v1777 = vld [vmem:[#allocation4 + $0x8] sm:$0xff]
          %v1778 = vld [vmem:[#allocation4 + $0x10] sm:$0xff]
          %v1779 = vld [vmem:[#allocation4 + $0x18] sm:$0xff]
          %v1780 = vld [vmem:[#allocation4 + $0x20] sm:$0xff]
          %v1781 = vld [vmem:[#allocation4 + $0x28] sm:$0xff]
          %v1782 = vld [vmem:[#allocation4 + $0x30] sm:$0xff]
          %v1783 = vld [vmem:[#allocation4 + $0x38] sm:$0xff]
          %v1784 = vld [vmem:[#allocation4 + $0x40] sm:$0xff]
          %v1785 = vld [vmem:[#allocation4 + $0x48] sm:$0xff]
          %v1786 = vld [vmem:[#allocation4 + $0x50] sm:$0xff]
          %v1787 = vld [vmem:[#allocation4 + $0x58] sm:$0xff]
          %v1788 = vld [vmem:[#allocation4 + $0x60] sm:$0xff]
          %v1789 = vld [vmem:[#allocation4 + $0x68] sm:$0xff]
          %v1790 = vld [vmem:[#allocation4 + $0x70] sm:$0xff]
          %v1791 = vld [vmem:[#allocation4 + $0x78] sm:$0xff]
          %1792 = vmatpush.msra.mxu0 %v1596
          %1793 = vmatpush.msra.mxu0 %v1595
          %1794 = vmatpush.msra.mxu0 %v1594
          %1795 = vmatpush.msra.mxu0 %v1593
          %1796 = vmatpush.msra.mxu0 %v1592
          %1797 = vmatpush.msra.mxu0 %v1591
          %1798 = vmatpush.msra.mxu0 %v1590
          %1799 = vmatpush.msra.mxu0 %v1589
          %1800 = vmatpush.msra.mxu0 %v1588
          %1801 = vmatpush.msra.mxu0 %v1587
          %1802 = vmatpush.msra.mxu0 %v1586
          %1803 = vmatpush.msra.mxu0 %v1585
          %1804 = vmatpush.msra.mxu0 %v1584
          %1805 = vmatpush.msra.mxu0 %v1583
          %1806 = vmatpush.msra.mxu0 %v1582
          %1807 = vmatpush.msra.mxu0 %v1581
          %1808 = vmatmul.f32.gmra.mxu0 %v1663
          %v1809 = vpop.f32.mrf.mxu0
          %v1810 = vadd.f32 0.0, %v1809
          %1811 = vmatmul.f32.gmra.mxu0 %v1664
          %v1812 = vpop.f32.mrf.mxu0
          %v1813 = vadd.f32 0.0, %v1812
          %1814 = vmatmul.f32.gmra.mxu0 %v1665
          %v1815 = vpop.f32.mrf.mxu0
          %v1816 = vadd.f32 0.0, %v1815
          %1817 = vmatmul.f32.gmra.mxu0 %v1666
          %v1818 = vpop.f32.mrf.mxu0
          %v1819 = vadd.f32 0.0, %v1818
          %1820 = vmatmul.f32.gmra.mxu0 %v1667
          %v1821 = vpop.f32.mrf.mxu0
          %v1822 = vadd.f32 0.0, %v1821
          %1823 = vmatmul.f32.gmra.mxu0 %v1668
          %v1824 = vpop.f32.mrf.mxu0
          %v1825 = vadd.f32 0.0, %v1824
          %1826 = vmatmul.f32.gmra.mxu0 %v1669
          %v1827 = vpop.f32.mrf.mxu0
          %v1828 = vadd.f32 0.0, %v1827
          %1829 = vmatmul.f32.gmra.mxu0 %v1670
          %v1830 = vpop.f32.mrf.mxu0
          %v1831 = vadd.f32 0.0, %v1830
          %1832 = vmatmul.f32.gmra.mxu0 %v1671
          %v1833 = vpop.f32.mrf.mxu0
          %v1834 = vadd.f32 0.0, %v1833
          %1835 = vmatmul.f32.gmra.mxu0 %v1672
          %v1836 = vpop.f32.mrf.mxu0
          %v1837 = vadd.f32 0.0, %v1836
          %1838 = vmatmul.f32.gmra.mxu0 %v1673
          %v1839 = vpop.f32.mrf.mxu0
          %v1840 = vadd.f32 0.0, %v1839
          %1841 = vmatmul.f32.gmra.mxu0 %v1674
          %v1842 = vpop.f32.mrf.mxu0
          %v1843 = vadd.f32 0.0, %v1842
          %1844 = vmatmul.f32.gmra.mxu0 %v1675
          %v1845 = vpop.f32.mrf.mxu0
          %v1846 = vadd.f32 0.0, %v1845
          %1847 = vmatmul.f32.gmra.mxu0 %v1676
          %v1848 = vpop.f32.mrf.mxu0
          %v1849 = vadd.f32 0.0, %v1848
          %1850 = vmatmul.f32.gmra.mxu0 %v1677
          %v1851 = vpop.f32.mrf.mxu0
          %v1852 = vadd.f32 0.0, %v1851
          %1853 = vmatmul.f32.gmra.mxu0 %v1678
          %v1854 = vpop.f32.mrf.mxu0
          %v1855 = vadd.f32 0.0, %v1854
          %1856 = vdwg.mxu0
          %v1857 = vadd.f32 %v1776, %v1810
          %v1858 = vadd.f32 %v1777, %v1813
          %v1859 = vadd.f32 %v1778, %v1816
          %v1860 = vadd.f32 %v1779, %v1819
          %v1861 = vadd.f32 %v1780, %v1822
          %v1862 = vadd.f32 %v1781, %v1825
          %v1863 = vadd.f32 %v1782, %v1828
          %v1864 = vadd.f32 %v1783, %v1831
          %v1865 = vadd.f32 %v1784, %v1834
          %v1866 = vadd.f32 %v1785, %v1837
          %v1867 = vadd.f32 %v1786, %v1840
          %v1868 = vadd.f32 %v1787, %v1843
          %v1869 = vadd.f32 %v1788, %v1846
          %v1870 = vadd.f32 %v1789, %v1849
          %v1871 = vadd.f32 %v1790, %v1852
          %v1872 = vadd.f32 %v1791, %v1855
          %1873 = vst [vmem:[#allocation4] sm:$0xff] %v1857
          %1874 = vst [vmem:[#allocation4 + $0x8] sm:$0xff] %v1858
          %1875 = vst [vmem:[#allocation4 + $0x10] sm:$0xff] %v1859
          %1876 = vst [vmem:[#allocation4 + $0x18] sm:$0xff] %v1860
          %1877 = vst [vmem:[#allocation4 + $0x20] sm:$0xff] %v1861
          %1878 = vst [vmem:[#allocation4 + $0x28] sm:$0xff] %v1862
          %1879 = vst [vmem:[#allocation4 + $0x30] sm:$0xff] %v1863
          %1880 = vst [vmem:[#allocation4 + $0x38] sm:$0xff] %v1864
          %1881 = vst [vmem:[#allocation4 + $0x40] sm:$0xff] %v1865
          %1882 = vst [vmem:[#allocation4 + $0x48] sm:$0xff] %v1866
          %1883 = vst [vmem:[#allocation4 + $0x50] sm:$0xff] %v1867
          %1884 = vst [vmem:[#allocation4 + $0x58] sm:$0xff] %v1868
          %1885 = vst [vmem:[#allocation4 + $0x60] sm:$0xff] %v1869
          %1886 = vst [vmem:[#allocation4 + $0x68] sm:$0xff] %v1870
          %1887 = vst [vmem:[#allocation4 + $0x70] sm:$0xff] %v1871
          %1888 = vst [vmem:[#allocation4 + $0x78] sm:$0xff] %v1872
          %v1889 = vld [vmem:[#allocation6] sm:$0x1]
          %1890 = vset.pattern.permute.xlu0 4
          %1891 = vperm.xlu0 %1890, %v748
          %v1892 = vpop.permute.xlu0 %1891
          %1894 = vset.pattern.permute.xlu0 4
          %1895 = vperm.xlu0 %1894, %v750
          %v1896 = vpop.permute.xlu0 %1895
          %1898 = vset.pattern.permute.xlu0 4
          %1899 = vperm.xlu0 %1898, %v753
          %v1900 = vpop.permute.xlu0 %1899
          %1902 = vset.pattern.permute.xlu0 4
          %1903 = vperm.xlu0 %1902, %v755
          %v1904 = vpop.permute.xlu0 %1903
          %1906 = vset.pattern.permute.xlu0 4
          %1907 = vperm.xlu0 %1906, %v758
          %v1908 = vpop.permute.xlu0 %1907
          %1910 = vset.pattern.permute.xlu0 4
          %1911 = vperm.xlu0 %1910, %v760
          %v1912 = vpop.permute.xlu0 %1911
          %1914 = vset.pattern.permute.xlu0 4
          %1915 = vperm.xlu0 %1914, %v763
          %v1916 = vpop.permute.xlu0 %1915
          %1918 = vset.pattern.permute.xlu0 4
          %1919 = vperm.xlu0 %1918, %v765
          %v1920 = vpop.permute.xlu0 %1919
          %1922 = vset.pattern.permute.xlu0 4
          %1923 = vperm.xlu0 %1922, %v768
          %v1924 = vpop.permute.xlu0 %1923
          %1926 = vset.pattern.permute.xlu0 4
          %1927 = vperm.xlu0 %1926, %v770
          %v1928 = vpop.permute.xlu0 %1927
          %1930 = vset.pattern.permute.xlu0 4
          %1931 = vperm.xlu0 %1930, %v773
          %v1932 = vpop.permute.xlu0 %1931
          %1934 = vset.pattern.permute.xlu0 4
          %1935 = vperm.xlu0 %1934, %v775
          %v1936 = vpop.permute.xlu0 %1935
          %1938 = vset.pattern.permute.xlu0 4
          %1939 = vperm.xlu0 %1938, %v778
          %v1940 = vpop.permute.xlu0 %1939
          %1942 = vset.pattern.permute.xlu0 4
          %1943 = vperm.xlu0 %1942, %v780
          %v1944 = vpop.permute.xlu0 %1943
          %1946 = vset.pattern.permute.xlu0 4
          %1947 = vperm.xlu0 %1946, %v783
          %v1948 = vpop.permute.xlu0 %1947
          %1950 = vset.pattern.permute.xlu0 4
          %1951 = vperm.xlu0 %1950, %v785
          %v1952 = vpop.permute.xlu0 %1951
          %v1954 = vmul.f32 %v1892, %v1581
          %v1955 = vmul.f32 %v1896, %v1582
          %v1956 = vmul.f32 %v1900, %v1583
          %v1957 = vmul.f32 %v1904, %v1584
          %v1958 = vmul.f32 %v1908, %v1585
          %v1959 = vmul.f32 %v1912, %v1586
          %v1960 = vmul.f32 %v1916, %v1587
          %v1961 = vmul.f32 %v1920, %v1588
          %v1962 = vmul.f32 %v1924, %v1589
          %v1963 = vmul.f32 %v1928, %v1590
          %v1964 = vmul.f32 %v1932, %v1591
          %v1965 = vmul.f32 %v1936, %v1592
          %v1966 = vmul.f32 %v1940, %v1593
          %v1967 = vmul.f32 %v1944, %v1594
          %v1968 = vmul.f32 %v1948, %v1595
          %v1969 = vmul.f32 %v1952, %v1596
          %v1970 = vmul.f32 %v1954, %v1581
          %v1971 = vmul.f32 %v1955, %v1582
          %v1972 = vmul.f32 %v1956, %v1583
          %v1973 = vmul.f32 %v1957, %v1584
          %v1974 = vmul.f32 %v1958, %v1585
          %v1975 = vmul.f32 %v1959, %v1586
          %v1976 = vmul.f32 %v1960, %v1587
          %v1977 = vmul.f32 %v1961, %v1588
          %v1978 = vmul.f32 %v1962, %v1589
          %v1979 = vmul.f32 %v1963, %v1590
          %v1980 = vmul.f32 %v1964, %v1591
          %v1981 = vmul.f32 %v1965, %v1592
          %v1982 = vmul.f32 %v1966, %v1593
          %v1983 = vmul.f32 %v1967, %v1594
          %v1984 = vmul.f32 %v1968, %v1595
          %v1985 = vmul.f32 %v1969, %v1596
          %v1986 = vadd.f32 %v1970, %v1971
          %v1987 = vadd.f32 %v1986, %v1972
          %v1988 = vadd.f32 %v1987, %v1973
          %v1989 = vadd.f32 %v1988, %v1974
          %v1990 = vadd.f32 %v1989, %v1975
          %v1991 = vadd.f32 %v1990, %v1976
          %v1992 = vadd.f32 %v1991, %v1977
          %v1993 = vadd.f32 %v1992, %v1978
          %v1994 = vadd.f32 %v1993, %v1979
          %v1995 = vadd.f32 %v1994, %v1980
          %v1996 = vadd.f32 %v1995, %v1981
          %v1997 = vadd.f32 %v1996, %v1982
          %v1998 = vadd.f32 %v1997, %v1983
          %v1999 = vadd.f32 %v1998, %v1984
          %v2000 = vadd.f32 %v1999, %v1985
          %v2001 = vrot.slane %v2000, 4
          %v2002 = vadd.f32 %v2000, %v2001
          %v2003 = vrot.slane %v2002, 2
          %v2004 = vadd.f32 %v2002, %v2003
          %v2005 = vrot.slane %v2004, 1
          %v2006 = vadd.f32 %v2004, %v2005
          %v2007 = vadd.f32 %v1889, %v2006
          %2008 = vst [vmem:[#allocation6] sm:$0x1] %v2007
        $region64: #{tpu_custom_call.1} parent=47 // pred_fallthru
          _
        %p2009 = scmp.eq.s32.totalorder %s34, 1
        // Predicated region
        $region69: #{tpu_custom_call.1} parent=47 // pred_check
          %p2010 = pneg %p2009
        $region70: #{tpu_custom_call.1} parent=47 // pred_check_branch
          %2012 = sbr.rel (%p2010) target = $region72
        $region71: #{tpu_custom_call.1} parent=47 // pred_region
          %p2013 = scmp.eq.s32.totalorder %s35, 0
          // Predicated region
          $region73: #{tpu_custom_call.1} parent=71 // pred_check
            %p2014 = pneg %p2013
          $region74: #{tpu_custom_call.1} parent=71 // pred_check_branch
            %2016 = sbr.rel (%p2014) target = $region76
          $region75: #{tpu_custom_call.1} parent=71 // pred_region
            %2017 = vst [vmem:[#allocation5] sm:$0xff] 0.0
            %2018 = vst [vmem:[#allocation5 + $0x8] sm:$0xff] 0.0
            %2019 = vst [vmem:[#allocation5 + $0x10] sm:$0xff] 0.0
            %2020 = vst [vmem:[#allocation5 + $0x18] sm:$0xff] 0.0
            %2021 = vst [vmem:[#allocation5 + $0x20] sm:$0xff] 0.0
            %2022 = vst [vmem:[#allocation5 + $0x28] sm:$0xff] 0.0
            %2023 = vst [vmem:[#allocation5 + $0x30] sm:$0xff] 0.0
            %2024 = vst [vmem:[#allocation5 + $0x38] sm:$0xff] 0.0
            %2025 = vst [vmem:[#allocation5 + $0x40] sm:$0xff] 0.0
            %2026 = vst [vmem:[#allocation5 + $0x48] sm:$0xff] 0.0
            %2027 = vst [vmem:[#allocation5 + $0x50] sm:$0xff] 0.0
            %2028 = vst [vmem:[#allocation5 + $0x58] sm:$0xff] 0.0
            %2029 = vst [vmem:[#allocation5 + $0x60] sm:$0xff] 0.0
            %2030 = vst [vmem:[#allocation5 + $0x68] sm:$0xff] 0.0
            %2031 = vst [vmem:[#allocation5 + $0x70] sm:$0xff] 0.0
            %2032 = vst [vmem:[#allocation5 + $0x78] sm:$0xff] 0.0
          $region76: #{tpu_custom_call.1} parent=71 // pred_fallthru
            _
          %s2033 = sshra.s32 %s532, 3
          %s2034 = sand.u32 %s532, 7
          %s2035 = smul.addr %s2033, 4
          %s2036 = scalar_lea.vmem [#allocation2], %s2035
          %v2037 = vld [vmem:[%s2036] sm:$0xf]
          %v2038 = vld [vmem:[%s2036 + $0x4] sm:$0xf]
          %v2039 = vld [vmem:[%s2036 + $0x8] sm:$0xf]
          %v2040 = vld [vmem:[%s2036 + $0xc] sm:$0xf]
          %v2041 = vld [vmem:[%s2036 + $0x10] sm:$0xf]
          %v2042 = vld [vmem:[%s2036 + $0x14] sm:$0xf]
          %v2043 = vld [vmem:[%s2036 + $0x18] sm:$0xf]
          %v2044 = vld [vmem:[%s2036 + $0x1c] sm:$0xf]
          %v2045 = vld [vmem:[%s2036 + $0x20] sm:$0xf]
          %v2046 = vld [vmem:[%s2036 + $0x24] sm:$0xf]
          %v2047 = vld [vmem:[%s2036 + $0x28] sm:$0xf]
          %v2048 = vld [vmem:[%s2036 + $0x2c] sm:$0xf]
          %v2049 = vld [vmem:[%s2036 + $0x30] sm:$0xf]
          %v2050 = vld [vmem:[%s2036 + $0x34] sm:$0xf]
          %v2051 = vld [vmem:[%s2036 + $0x38] sm:$0xf]
          %v2052 = vld [vmem:[%s2036 + $0x3c] sm:$0xf]
          %v2053 = vld [vmem:[#allocation2] sm:$0xf]
          %v2054 = vld [vmem:[#allocation2 + $0x4] sm:$0xf]
          %v2055 = vld [vmem:[#allocation2 + $0x8] sm:$0xf]
          %v2056 = vld [vmem:[#allocation2 + $0xc] sm:$0xf]
          %v2057 = vld [vmem:[#allocation2 + $0x10] sm:$0xf]
          %v2058 = vld [vmem:[#allocation2 + $0x14] sm:$0xf]
          %v2059 = vld [vmem:[#allocation2 + $0x18] sm:$0xf]
          %v2060 = vld [vmem:[#allocation2 + $0x1c] sm:$0xf]
          %v2061 = vld [vmem:[#allocation2 + $0x20] sm:$0xf]
          %v2062 = vld [vmem:[#allocation2 + $0x24] sm:$0xf]
          %v2063 = vld [vmem:[#allocation2 + $0x28] sm:$0xf]
          %v2064 = vld [vmem:[#allocation2 + $0x2c] sm:$0xf]
          %v2065 = vld [vmem:[#allocation2 + $0x30] sm:$0xf]
          %v2066 = vld [vmem:[#allocation2 + $0x34] sm:$0xf]
          %v2067 = vld [vmem:[#allocation2 + $0x38] sm:$0xf]
          %v2068 = vld [vmem:[#allocation2 + $0x3c] sm:$0xf]
          %v2085 = vunpack.c.l.b16 %v533
          %v2086 = vunpack.c.l.b16 %v534
          %v2087 = vunpack.c.l.b16 %v535
          %v2088 = vunpack.c.l.b16 %v536
          %v2089 = vunpack.c.l.b16 %v537
          %v2090 = vunpack.c.l.b16 %v538
          %v2091 = vunpack.c.l.b16 %v539
          %v2092 = vunpack.c.l.b16 %v540
          %v2093 = vunpack.c.l.b16 %v541
          %v2094 = vunpack.c.l.b16 %v542
          %v2095 = vunpack.c.l.b16 %v543
          %v2096 = vunpack.c.l.b16 %v544
          %v2097 = vunpack.c.l.b16 %v545
          %v2098 = vunpack.c.l.b16 %v546
          %v2099 = vunpack.c.l.b16 %v547
          %v2100 = vunpack.c.l.b16 %v548
          %v2101 = vpack.c.b16 %v2086, %v2085
          %v2102 = vpack.c.b16 %v2088, %v2087
          %v2103 = vpack.c.b16 %v2090, %v2089
          %v2104 = vpack.c.b16 %v2092, %v2091
          %v2105 = vpack.c.b16 %v2094, %v2093
          %v2106 = vpack.c.b16 %v2096, %v2095
          %v2107 = vpack.c.b16 %v2098, %v2097
          %v2108 = vpack.c.b16 %v2100, %v2099
          %v2133 = vunpack.c.l.b16 %v2053
          %v2134 = vunpack.c.l.b16 %v2054
          %v2135 = vunpack.c.l.b16 %v2055
          %v2136 = vunpack.c.l.b16 %v2056
          %v2137 = vunpack.c.l.b16 %v2057
          %v2138 = vunpack.c.l.b16 %v2058
          %v2139 = vunpack.c.l.b16 %v2059
          %v2140 = vunpack.c.l.b16 %v2060
          %v2141 = vunpack.c.l.b16 %v2061
          %v2142 = vunpack.c.l.b16 %v2062
          %v2143 = vunpack.c.l.b16 %v2063
          %v2144 = vunpack.c.l.b16 %v2064
          %v2145 = vunpack.c.l.b16 %v2065
          %v2146 = vunpack.c.l.b16 %v2066
          %v2147 = vunpack.c.l.b16 %v2067
          %v2148 = vunpack.c.l.b16 %v2068
          %v2149 = vpack.c.b16 %v2134, %v2133
          %v2150 = vpack.c.b16 %v2136, %v2135
          %v2151 = vpack.c.b16 %v2138, %v2137
          %v2152 = vpack.c.b16 %v2140, %v2139
          %v2153 = vpack.c.b16 %v2142, %v2141
          %v2154 = vpack.c.b16 %v2144, %v2143
          %v2155 = vpack.c.b16 %v2146, %v2145
          %v2156 = vpack.c.b16 %v2148, %v2147
          %2165 = vmatpush.bf16.msra.mxu0 %v2156
          %2166 = vmatpush.bf16.msra.mxu0 %v2155
          %2167 = vmatpush.bf16.msra.mxu0 %v2154
          %2168 = vmatpush.bf16.msra.mxu0 %v2153
          %2169 = vmatpush.bf16.msra.mxu0 %v2152
          %2170 = vmatpush.bf16.msra.mxu0 %v2151
          %2171 = vmatpush.bf16.msra.mxu0 %v2150
          %2172 = vmatpush.bf16.msra.mxu0 %v2149
          %2173 = vmatmul.bf16.gmra.mxu0 %v2101
          %v2174 = vpop.f32.mrf.mxu0
          %v2175 = vadd.f32 0.0, %v2174
          %v2176 = vpop.f32.mrf.mxu0
          %v2177 = vadd.f32 0.0, %v2176
          %2178 = vmatmul.bf16.gmra.mxu0 %v2102
          %v2179 = vpop.f32.mrf.mxu0
          %v2180 = vadd.f32 0.0, %v2179
          %v2181 = vpop.f32.mrf.mxu0
          %v2182 = vadd.f32 0.0, %v2181
          %2183 = vmatmul.bf16.gmra.mxu0 %v2103
          %v2184 = vpop.f32.mrf.mxu0
          %v2185 = vadd.f32 0.0, %v2184
          %v2186 = vpop.f32.mrf.mxu0
          %v2187 = vadd.f32 0.0, %v2186
          %2188 = vmatmul.bf16.gmra.mxu0 %v2104
          %v2189 = vpop.f32.mrf.mxu0
          %v2190 = vadd.f32 0.0, %v2189
          %v2191 = vpop.f32.mrf.mxu0
          %v2192 = vadd.f32 0.0, %v2191
          %2193 = vmatmul.bf16.gmra.mxu0 %v2105
          %v2194 = vpop.f32.mrf.mxu0
          %v2195 = vadd.f32 0.0, %v2194
          %v2196 = vpop.f32.mrf.mxu0
          %v2197 = vadd.f32 0.0, %v2196
          %2198 = vmatmul.bf16.gmra.mxu0 %v2106
          %v2199 = vpop.f32.mrf.mxu0
          %v2200 = vadd.f32 0.0, %v2199
          %v2201 = vpop.f32.mrf.mxu0
          %v2202 = vadd.f32 0.0, %v2201
          %2203 = vmatmul.bf16.gmra.mxu0 %v2107
          %v2204 = vpop.f32.mrf.mxu0
          %v2205 = vadd.f32 0.0, %v2204
          %v2206 = vpop.f32.mrf.mxu0
          %v2207 = vadd.f32 0.0, %v2206
          %2208 = vmatmul.bf16.gmra.mxu0 %v2108
          %v2209 = vpop.f32.mrf.mxu0
          %v2210 = vadd.f32 0.0, %v2209
          %v2211 = vpop.f32.mrf.mxu0
          %v2212 = vadd.f32 0.0, %v2211
          %2213 = vdwg.mxu0
          %v2214 = vld [vmem:[#allocation5] sm:$0xff]
          %v2215 = vld [vmem:[#allocation5 + $0x8] sm:$0xff]
          %v2216 = vld [vmem:[#allocation5 + $0x10] sm:$0xff]
          %v2217 = vld [vmem:[#allocation5 + $0x18] sm:$0xff]
          %v2218 = vld [vmem:[#allocation5 + $0x20] sm:$0xff]
          %v2219 = vld [vmem:[#allocation5 + $0x28] sm:$0xff]
          %v2220 = vld [vmem:[#allocation5 + $0x30] sm:$0xff]
          %v2221 = vld [vmem:[#allocation5 + $0x38] sm:$0xff]
          %v2222 = vld [vmem:[#allocation5 + $0x40] sm:$0xff]
          %v2223 = vld [vmem:[#allocation5 + $0x48] sm:$0xff]
          %v2224 = vld [vmem:[#allocation5 + $0x50] sm:$0xff]
          %v2225 = vld [vmem:[#allocation5 + $0x58] sm:$0xff]
          %v2226 = vld [vmem:[#allocation5 + $0x60] sm:$0xff]
          %v2227 = vld [vmem:[#allocation5 + $0x68] sm:$0xff]
          %v2228 = vld [vmem:[#allocation5 + $0x70] sm:$0xff]
          %v2229 = vld [vmem:[#allocation5 + $0x78] sm:$0xff]
          %v2230 = vpack.c.bf16 %v2177, %v2175
          %v2231 = vpack.c.bf16 %v2182, %v2180
          %v2232 = vpack.c.bf16 %v2187, %v2185
          %v2233 = vpack.c.bf16 %v2192, %v2190
          %v2234 = vpack.c.bf16 %v2197, %v2195
          %v2235 = vpack.c.bf16 %v2202, %v2200
          %v2236 = vpack.c.bf16 %v2207, %v2205
          %v2237 = vpack.c.bf16 %v2212, %v2210
          %v2254 = vunpack.c.l.b16 %v2037
          %v2255 = vunpack.c.l.b16 %v2038
          %v2256 = vunpack.c.l.b16 %v2039
          %v2257 = vunpack.c.l.b16 %v2040
          %v2258 = vunpack.c.l.b16 %v2041
          %v2259 = vunpack.c.l.b16 %v2042
          %v2260 = vunpack.c.l.b16 %v2043
          %v2261 = vunpack.c.l.b16 %v2044
          %v2262 = vunpack.c.l.b16 %v2045
          %v2263 = vunpack.c.l.b16 %v2046
          %v2264 = vunpack.c.l.b16 %v2047
          %v2265 = vunpack.c.l.b16 %v2048
          %v2266 = vunpack.c.l.b16 %v2049
          %v2267 = vunpack.c.l.b16 %v2050
          %v2268 = vunpack.c.l.b16 %v2051
          %v2269 = vunpack.c.l.b16 %v2052
          %v2270 = vpack.c.b16 %v2255, %v2254
          %v2271 = vpack.c.b16 %v2257, %v2256
          %v2272 = vpack.c.b16 %v2259, %v2258
          %v2273 = vpack.c.b16 %v2261, %v2260
          %v2274 = vpack.c.b16 %v2263, %v2262
          %v2275 = vpack.c.b16 %v2265, %v2264
          %v2276 = vpack.c.b16 %v2267, %v2266
          %v2277 = vpack.c.b16 %v2269, %v2268
          %2286 = vxpose.xlu0.c.b16.start [1/8] %v2270, 128
          %2287 = vxpose.xlu0.c.b16.cont [2/8] %v2271, 128
          %2288 = vxpose.xlu0.c.b16.cont [3/8] %v2272, 128
          %2289 = vxpose.xlu0.c.b16.cont [4/8] %v2273, 128
          %2290 = vxpose.xlu0.c.b16.cont [5/8] %v2274, 128
          %2291 = vxpose.xlu0.c.b16.cont [6/8] %v2275, 128
          %2292 = vxpose.xlu0.c.b16.cont [7/8] %v2276, 128
          %2293 = vxpose.xlu0.c.b16.end [8/8] %v2277, 128
          %v2294 = vpop.trf.xlu0
          %v2295 = vpop.trf.xlu0
          %v2296 = vpop.trf.xlu0
          %v2297 = vpop.trf.xlu0
          %v2298 = vpop.trf.xlu0
          %v2299 = vpop.trf.xlu0
          %v2300 = vpop.trf.xlu0
          %v2301 = vpop.trf.xlu0
          %2302 = vmatpush.bf16.msra.mxu0 %v2237
          %2303 = vmatpush.bf16.msra.mxu0 %v2236
          %2304 = vmatpush.bf16.msra.mxu0 %v2235
          %2305 = vmatpush.bf16.msra.mxu0 %v2234
          %2306 = vmatpush.bf16.msra.mxu0 %v2233
          %2307 = vmatpush.bf16.msra.mxu0 %v2232
          %2308 = vmatpush.bf16.msra.mxu0 %v2231
          %2309 = vmatpush.bf16.msra.mxu0 %v2230
          %2310 = vmatmul.bf16.gmra.mxu0 %v2294
          %v2311 = vpop.f32.mrf.mxu0
          %v2312 = vadd.f32 0.0, %v2311
          %v2313 = vpop.f32.mrf.mxu0
          %v2314 = vadd.f32 0.0, %v2313
          %2315 = vmatmul.bf16.gmra.mxu0 %v2295
          %v2316 = vpop.f32.mrf.mxu0
          %v2317 = vadd.f32 0.0, %v2316
          %v2318 = vpop.f32.mrf.mxu0
          %v2319 = vadd.f32 0.0, %v2318
          %2320 = vmatmul.bf16.gmra.mxu0 %v2296
          %v2321 = vpop.f32.mrf.mxu0
          %v2322 = vadd.f32 0.0, %v2321
          %v2323 = vpop.f32.mrf.mxu0
          %v2324 = vadd.f32 0.0, %v2323
          %2325 = vmatmul.bf16.gmra.mxu0 %v2297
          %v2326 = vpop.f32.mrf.mxu0
          %v2327 = vadd.f32 0.0, %v2326
          %v2328 = vpop.f32.mrf.mxu0
          %v2329 = vadd.f32 0.0, %v2328
          %2330 = vmatmul.bf16.gmra.mxu0 %v2298
          %v2331 = vpop.f32.mrf.mxu0
          %v2332 = vadd.f32 0.0, %v2331
          %v2333 = vpop.f32.mrf.mxu0
          %v2334 = vadd.f32 0.0, %v2333
          %2335 = vmatmul.bf16.gmra.mxu0 %v2299
          %v2336 = vpop.f32.mrf.mxu0
          %v2337 = vadd.f32 0.0, %v2336
          %v2338 = vpop.f32.mrf.mxu0
          %v2339 = vadd.f32 0.0, %v2338
          %2340 = vmatmul.bf16.gmra.mxu0 %v2300
          %v2341 = vpop.f32.mrf.mxu0
          %v2342 = vadd.f32 0.0, %v2341
          %v2343 = vpop.f32.mrf.mxu0
          %v2344 = vadd.f32 0.0, %v2343
          %2345 = vmatmul.bf16.gmra.mxu0 %v2301
          %v2346 = vpop.f32.mrf.mxu0
          %v2347 = vadd.f32 0.0, %v2346
          %v2348 = vpop.f32.mrf.mxu0
          %v2349 = vadd.f32 0.0, %v2348
          %2350 = vdwg.mxu0
          %v2351 = vadd.f32 %v2214, %v2312
          %v2352 = vadd.f32 %v2215, %v2314
          %v2353 = vadd.f32 %v2216, %v2317
          %v2354 = vadd.f32 %v2217, %v2319
          %v2355 = vadd.f32 %v2218, %v2322
          %v2356 = vadd.f32 %v2219, %v2324
          %v2357 = vadd.f32 %v2220, %v2327
          %v2358 = vadd.f32 %v2221, %v2329
          %v2359 = vadd.f32 %v2222, %v2332
          %v2360 = vadd.f32 %v2223, %v2334
          %v2361 = vadd.f32 %v2224, %v2337
          %v2362 = vadd.f32 %v2225, %v2339
          %v2363 = vadd.f32 %v2226, %v2342
          %v2364 = vadd.f32 %v2227, %v2344
          %v2365 = vadd.f32 %v2228, %v2347
          %v2366 = vadd.f32 %v2229, %v2349
          %2367 = vst [vmem:[#allocation5] sm:$0xff] %v2351
          %2368 = vst [vmem:[#allocation5 + $0x8] sm:$0xff] %v2352
          %2369 = vst [vmem:[#allocation5 + $0x10] sm:$0xff] %v2353
          %2370 = vst [vmem:[#allocation5 + $0x18] sm:$0xff] %v2354
          %2371 = vst [vmem:[#allocation5 + $0x20] sm:$0xff] %v2355
          %2372 = vst [vmem:[#allocation5 + $0x28] sm:$0xff] %v2356
          %2373 = vst [vmem:[#allocation5 + $0x30] sm:$0xff] %v2357
          %2374 = vst [vmem:[#allocation5 + $0x38] sm:$0xff] %v2358
          %2375 = vst [vmem:[#allocation5 + $0x40] sm:$0xff] %v2359
          %2376 = vst [vmem:[#allocation5 + $0x48] sm:$0xff] %v2360
          %2377 = vst [vmem:[#allocation5 + $0x50] sm:$0xff] %v2361
          %2378 = vst [vmem:[#allocation5 + $0x58] sm:$0xff] %v2362
          %2379 = vst [vmem:[#allocation5 + $0x60] sm:$0xff] %v2363
          %2380 = vst [vmem:[#allocation5 + $0x68] sm:$0xff] %v2364
          %2381 = vst [vmem:[#allocation5 + $0x70] sm:$0xff] %v2365
          %2382 = vst [vmem:[#allocation5 + $0x78] sm:$0xff] %v2366
          // Predicated region
          $region77: #{tpu_custom_call.1} parent=71 // pred_check
            %p2383 = pneg %p2013
          $region78: #{tpu_custom_call.1} parent=71 // pred_check_branch
            %2385 = sbr.rel (%p2383) target = $region80
          $region79: #{tpu_custom_call.1} parent=71 // pred_region
            %v2386 = vld [vmem:[#allocation3] sm:$0x7f]
            %v2387 = vld [vmem:[#allocation4] sm:$0x7f]
            %v2388 = vld [vmem:[#allocation5] sm:$0x7f]
            %v2389 = vlaneseq
            %v2390 = vshrl.u32 %v2389, 7
            %v2391 = vlaneseq
            %v2392 = vand.u32 %v2391, 127
            %vm2393 = vcmp.eq.s32.totalorder %v2390, %v2392
            %v2394 = vsel %vm2393, 1, 0
            %v2395 = vcvt.s32.f32 %v2394
            %v2396 = vmul.f32 %v2388, %v2395
            %vm2397 = vcmask 55296
            %v2398 = vsel %vm2397, %v2396, 0.0
            %2399 = vadd.xlane.f32.xlu0 %v2398
            %v2400 = vpop.xlane.xlu0 %2399
            %v2401 = vrot.slane %v2400, 4
            %v2402 = vadd.f32 %v2400, %v2401
            %v2403 = vrot.slane %v2402, 2
            %v2404 = vadd.f32 %v2402, %v2403
            %v2405 = vrot.slane %v2404, 1
            %v2406 = vadd.f32 %v2404, %v2405
            %s2407 = vtos %v2406
            %v2408 = vstv %s2407
            %v2409 = vld [vmem:[#allocation6] sm:$0x1]
            %vm2410 = vcmask 1040384
            %v2411 = vsel %vm2410, %v2409, 0.0
            %2412 = vadd.xlane.f32.xlu0 %v2411
            %v2413 = vpop.xlane.xlu0 %2412
            %v2414 = vrot.slane %v2413, 4
            %v2415 = vadd.f32 %v2413, %v2414
            %v2416 = vrot.slane %v2415, 2
            %v2417 = vadd.f32 %v2415, %v2416
            %v2418 = vrot.slane %v2417, 1
            %v2419 = vadd.f32 %v2417, %v2418
            %s2420 = vtos %v2419
            %v2421 = vstv %s2420
            %v2422 = vrcp.pop %v2421
            %v2423 = vmul.f32 %v2421, %v2422
            %v2424 = vsub.f32 1.0, %v2423
            %v2425 = vmul.f32 %v2422, %v2424
            %v2426 = vadd.f32 %v2422, %v2425
            %vm2427 = vweird.f32 %v2421
            %vm2428 = vweird.f32 %v2422
            %vm2429 = vmor %vm2427, %vm2428
            %v2430 = vsel %vm2429, %v2422, %v2426
            %v2431 = vand.u32 2147483647, %v2421
            %vm2432 = vcmp.eq.f32.partialorder %v2431, 8.507059e+37
            %v2433 = vand.u32 %v2421, 2147483648
            %v2434 = vor.u32 1.1754944e-38, %v2433
            %v2435 = vsel %vm2432, %v2434, %v2430
            %v2436 = vmul.f32 %v2408, %v2435
            %v2437 = vsub.f32 0.0, %v2436
            %vm2438 = vcmask 0
            %2439 = vst.msk [vmem:[%s521] sm:$0x1] %vm2438, %v2437
            %v2440 = vmul.f32 %v2387, %v2387
            %v2441 = vsel %vm2397, %v2440, 0.0
            %2442 = vadd.xlane.f32.xlu0 %v2441
            %v2443 = vpop.xlane.xlu0 %2442
            %v2444 = vrot.slane %v2443, 4
            %v2445 = vadd.f32 %v2443, %v2444
            %v2446 = vrot.slane %v2445, 2
            %v2447 = vadd.f32 %v2445, %v2446
            %v2448 = vrot.slane %v2447, 1
            %v2449 = vadd.f32 %v2447, %v2448
            %s2450 = vtos %v2449
            %v2451 = vstv %s2450
            %v2452 = vrsqrt.pop %v2451
            %v2453 = vmul.f32 %v2452, %v2451
            %v2454 = vmul.f32 %v2453, %v2452
            %v2455 = vmul.f32 0.5, %v2454
            %v2456 = vsub.f32 1.5, %v2455
            %v2457 = vmul.f32 %v2452, %v2456
            %v2458 = vmul.f32 %v2451, %v2457
            %vm2459 = vcmp.eq.f32.partialorder %v2451, inf
            %v2460 = vsel %vm2459, %v2451, %v2458
            %vm2461 = vcmp.eq.f32.partialorder %v2451, 0.0
            %v2462 = vand.u32 %v2451, 2147483648
            %v2463 = vsel %vm2461, %v2462, %v2460
            %v2464 = vrcp.pop %v2463
            %v2465 = vmul.f32 %v2463, %v2464
            %v2466 = vsub.f32 1.0, %v2465
            %v2467 = vmul.f32 %v2464, %v2466
            %v2468 = vadd.f32 %v2464, %v2467
            %vm2469 = vweird.f32 %v2463
            %vm2470 = vweird.f32 %v2464
            %vm2471 = vmor %vm2469, %vm2470
            %v2472 = vsel %vm2471, %v2464, %v2468
            %v2473 = vand.u32 2147483647, %v2463
            %vm2474 = vcmp.eq.f32.partialorder %v2473, 8.507059e+37
            %v2475 = vand.u32 %v2463, 2147483648
            %v2476 = vor.u32 1.1754944e-38, %v2475
            %v2477 = vsel %vm2474, %v2476, %v2472
            %v2478 = vmul.f32 %v2387, %v2477
            %v2479 = vmul.f32 %v2395, 0.37796447
            %v2480 = vsub.f32 %v2478, %v2479
            %v2481 = vmul.f32 %v2480, %v2480
            %v2482 = vsel %vm2397, %v2481, 0.0
            %2483 = vadd.xlane.f32.xlu0 %v2482
            %v2484 = vpop.xlane.xlu0 %2483
            %v2485 = vrot.slane %v2484, 4
            %v2486 = vadd.f32 %v2484, %v2485
            %v2487 = vrot.slane %v2486, 2
            %v2488 = vadd.f32 %v2486, %v2487
            %v2489 = vrot.slane %v2488, 1
            %v2490 = vadd.f32 %v2488, %v2489
            %s2491 = vtos %v2490
            %v2492 = vstv %s2491
            %v2493 = vrsqrt.pop %v2492
            %v2494 = vmul.f32 %v2493, %v2492
            %v2495 = vmul.f32 %v2494, %v2493
            %v2496 = vmul.f32 0.5, %v2495
            %v2497 = vsub.f32 1.5, %v2496
            %v2498 = vmul.f32 %v2493, %v2497
            %v2499 = vmul.f32 %v2492, %v2498
            %vm2500 = vcmp.eq.f32.partialorder %v2492, inf
            %v2501 = vsel %vm2500, %v2492, %v2499
            %vm2502 = vcmp.eq.f32.partialorder %v2492, 0.0
            %v2503 = vand.u32 %v2492, 2147483648
            %v2504 = vsel %vm2502, %v2503, %v2501
            %2505 = vst.msk [vmem:[%s524] sm:$0x1] %vm2438, %v2504
            %v2506 = vsub.f32 1.0, %v2395
            %v2507 = vmul.f32 %v2388, %v2506
            %vm2508 = vcmask 56320
            %v2510 = vsel %vm2508, %v2507, 0
            %vm2512 = vcmask 1046528
            %v2514 = vsel %vm2512, 1.0, 0
            %2516 = vmatpush.msra.mxu0 0.0
            %2517 = vmatpush.msra.mxu0 0.0
            %2518 = vmatpush.msra.mxu0 0.0
            %2519 = vmatpush.msra.mxu0 0.0
            %2520 = vmatpush.msra.mxu0 0.0
            %2521 = vmatpush.msra.mxu0 0.0
            %2522 = vmatpush.msra.mxu0 0.0
            %2523 = vmatpush.msra.mxu0 0.0
            %2524 = vmatpush.msra.mxu0 0.0
            %2525 = vmatpush.msra.mxu0 0.0
            %2526 = vmatpush.msra.mxu0 0.0
            %2527 = vmatpush.msra.mxu0 0.0
            %2528 = vmatpush.msra.mxu0 0.0
            %2529 = vmatpush.msra.mxu0 0.0
            %2530 = vmatpush.msra.mxu0 0.0
            %2531 = vmatpush.msra.mxu0 %v2514
            %2532 = vmatmul.f32.gmra.mxu0 %v2510
            %v2533 = vpop.f32.mrf.mxu0
            %v2534 = vadd.f32 0.0, %v2533
            %2535 = vdwg.mxu0
            %2536 = vxpose.xlu0.b32.start [1/16] 1.0, 128
            %2537 = vxpose.xlu0.b32.cont [2/16] 0.0, 128
            %2538 = vxpose.xlu0.b32.cont [3/16] 0.0, 128
            %2539 = vxpose.xlu0.b32.cont [4/16] 0.0, 128
            %2540 = vxpose.xlu0.b32.cont [5/16] 0.0, 128
            %2541 = vxpose.xlu0.b32.cont [6/16] 0.0, 128
            %2542 = vxpose.xlu0.b32.cont [7/16] 0.0, 128
            %2543 = vxpose.xlu0.b32.cont [8/16] 0.0, 128
            %2544 = vxpose.xlu0.b32.cont [9/16] 0.0, 128
            %2545 = vxpose.xlu0.b32.cont [10/16] 0.0, 128
            %2546 = vxpose.xlu0.b32.cont [11/16] 0.0, 128
            %2547 = vxpose.xlu0.b32.cont [12/16] 0.0, 128
            %2548 = vxpose.xlu0.b32.cont [13/16] 0.0, 128
            %2549 = vxpose.xlu0.b32.cont [14/16] 0.0, 128
            %2550 = vxpose.xlu0.b32.cont [15/16] 0.0, 128
            %2551 = vxpose.xlu0.b32.end [16/16] 0.0, 128
            %v2552 = vpop.trf.xlu0
            %v2553 = vpop.trf.xlu0
            %v2554 = vpop.trf.xlu0
            %v2555 = vpop.trf.xlu0
            %v2556 = vpop.trf.xlu0
            %v2557 = vpop.trf.xlu0
            %v2558 = vpop.trf.xlu0
            %v2559 = vpop.trf.xlu0
            %v2560 = vpop.trf.xlu0
            %v2561 = vpop.trf.xlu0
            %v2562 = vpop.trf.xlu0
            %v2563 = vpop.trf.xlu0
            %v2564 = vpop.trf.xlu0
            %v2565 = vpop.trf.xlu0
            %v2566 = vpop.trf.xlu0
            %v2567 = vpop.trf.xlu0
            %v2569 = vsel %vm2508, %v2552, 0
            %2571 = vmatpush.xpose.msra.mxu0 0.0
            %2572 = vmatpush.xpose.msra.mxu0 0.0
            %2573 = vmatpush.xpose.msra.mxu0 0.0
            %2574 = vmatpush.xpose.msra.mxu0 0.0
            %2575 = vmatpush.xpose.msra.mxu0 0.0
            %2576 = vmatpush.xpose.msra.mxu0 0.0
            %2577 = vmatpush.xpose.msra.mxu0 0.0
            %2578 = vmatpush.xpose.msra.mxu0 0.0
            %2579 = vmatpush.xpose.msra.mxu0 0.0
            %2580 = vmatpush.xpose.msra.mxu0 0.0
            %2581 = vmatpush.xpose.msra.mxu0 0.0
            %2582 = vmatpush.xpose.msra.mxu0 0.0
            %2583 = vmatpush.xpose.msra.mxu0 0.0
            %2584 = vmatpush.xpose.msra.mxu0 0.0
            %2585 = vmatpush.xpose.msra.mxu0 0.0
            %2586 = vmatpush.xpose.msra.mxu0 %v2510
            %2587 = vmatmul.f32.gmra.mxu0 %v2569
            %v2588 = vpop.f32.mrf.mxu0
            %v2589 = vadd.f32 0.0, %v2588
            %2590 = vdwg.mxu0
            %v2591 = vrsqrt.pop %v2589
            %v2592 = vmul.f32 %v2591, %v2589
            %v2593 = vmul.f32 %v2592, %v2591
            %v2594 = vmul.f32 0.5, %v2593
            %v2595 = vsub.f32 1.5, %v2594
            %v2596 = vmul.f32 %v2591, %v2595
            %v2597 = vmul.f32 %v2589, %v2596
            %vm2598 = vcmp.eq.f32.partialorder %v2589, inf
            %v2599 = vsel %vm2598, %v2589, %v2597
            %vm2600 = vcmp.eq.f32.partialorder %v2589, 0.0
            %v2601 = vand.u32 %v2589, 2147483648
            %v2602 = vsel %vm2600, %v2601, %v2599
            %v2603 = vadd.f32 %v2602, 1e-15
            %v2604 = vperm.slane %v2603, 0
            %v2605 = vrcp.pop %v2604
            %v2606 = vmul.f32 %v2604, %v2605
            %v2607 = vsub.f32 1.0, %v2606
            %v2608 = vmul.f32 %v2605, %v2607
            %v2609 = vadd.f32 %v2605, %v2608
            %vm2610 = vweird.f32 %v2604
            %vm2611 = vweird.f32 %v2605
            %vm2612 = vmor %vm2610, %vm2611
            %v2613 = vsel %vm2612, %v2605, %v2609
            %v2614 = vand.u32 2147483647, %v2604
            %vm2615 = vcmp.eq.f32.partialorder %v2614, 8.507059e+37
            %v2616 = vand.u32 %v2604, 2147483648
            %v2617 = vor.u32 1.1754944e-38, %v2616
            %v2618 = vsel %vm2615, %v2617, %v2613
            %v2619 = vmul.f32 %v2507, %v2618
            %v2620 = vrsqrt.pop %v2534
            %v2621 = vmul.f32 %v2620, %v2534
            %v2622 = vmul.f32 %v2621, %v2620
            %v2623 = vmul.f32 0.5, %v2622
            %v2624 = vsub.f32 1.5, %v2623
            %v2625 = vmul.f32 %v2620, %v2624
            %v2626 = vmul.f32 %v2534, %v2625
            %vm2627 = vcmp.eq.f32.partialorder %v2534, inf
            %v2628 = vsel %vm2627, %v2534, %v2626
            %vm2629 = vcmp.eq.f32.partialorder %v2534, 0.0
            %v2630 = vand.u32 %v2534, 2147483648
            %v2631 = vsel %vm2629, %v2630, %v2628
            %v2632 = vadd.f32 %v2631, 1e-15
            %2634 = vset.pattern.permute.xlu0 0
            %2635 = vperm.xlu0 %2634, %v2632
            %v2636 = vpop.permute.xlu0 %2635
            %v2638 = vrcp.pop %v2636
            %v2639 = vmul.f32 %v2636, %v2638
            %v2640 = vsub.f32 1.0, %v2639
            %v2641 = vmul.f32 %v2638, %v2640
            %v2642 = vadd.f32 %v2638, %v2641
            %vm2643 = vweird.f32 %v2636
            %vm2644 = vweird.f32 %v2638
            %vm2645 = vmor %vm2643, %vm2644
            %v2646 = vsel %vm2645, %v2638, %v2642
            %v2647 = vand.u32 2147483647, %v2636
            %vm2648 = vcmp.eq.f32.partialorder %v2647, 8.507059e+37
            %v2649 = vand.u32 %v2636, 2147483648
            %v2650 = vor.u32 1.1754944e-38, %v2649
            %v2651 = vsel %vm2648, %v2650, %v2646
            %v2652 = vmul.f32 %v2619, %v2651
            %2653 = vst.msk [vmem:[%s531] sm:$0x7f] %vm2397, %v2652
            %v2654 = vsel %vm2512, %v2386, -inf
            %2655 = vmax.xlane.f32.xlu0 %v2654
            %v2656 = vpop.xlane.xlu0 %2655
            %v2657 = vsub.f32 %v2386, %v2656
            %v2658 = vmul.f32 %v2657, 1.442695
            %v2659 = vpow.pop %v2658
            %v2660 = vsel %vm2512, %v2659, 0.0
            %2661 = vadd.xlane.f32.xlu0 %v2660
            %v2662 = vpop.xlane.xlu0 %2661
            %v2663 = vlog2.pop %v2662
            %v2664 = vmul.f32 %v2663, 0.6931472
            %v2665 = vsub.f32 %v2657, %v2664
            %2666 = vst [vmem:[%s518] sm:$0x7f] %v2665
          $region80: #{tpu_custom_call.1} parent=71 // pred_fallthru
            _
        $region72: #{tpu_custom_call.1} parent=47 // pred_fallthru
          _
        %p2667 = scmp.lt.s32.totalorder %s33, 1
        %s2668 = scalar_select %p2667, %s33, 1
        %s2669 = smul.addr %s2668, 8
        %s2670 = scalar_lea.vmem %s7, %s2669
        %p2671 = scmp.lt.s32.totalorder %s33, 1
        %s2672 = scalar_select %p2671, %s33, 1
        %s2673 = scalar_lea.vmem %s8, %s2672
        %p2674 = scmp.lt.s32.totalorder %s33, 1
        %s2675 = scalar_select %p2674, %s33, 1
        %s2676 = scalar_lea.vmem %s9, %s2675
        %s2677 = sand.u32 %s298, 1
        %s2678 = scalar_lea.sflag [#allocation9], %s2677
        %s2679 = sand.u32 %s298, 1
        %s2680 = smul.addr %s2679, 128
        %s2681 = scalar_lea.vmem [#allocation13], %s2680
        %p2682 = scmp.lt.s32.totalorder %s33, 1
        %s2683 = scalar_select %p2682, %s33, 1
        %s2684 = smul.addr %s2683, 8
        %s2685 = scalar_lea.vmem %s11, %s2684
        // Predicated region
        $region81: #{tpu_custom_call.1} parent=47 // pred_check
          %p2686 = pneg %p224
        $region82: #{tpu_custom_call.1} parent=47 // pred_check_branch
          %2688 = sbr.rel (%p2686) target = $region84
        $region83: #{tpu_custom_call.1} parent=47 // pred_region
          _
        $region84: #{tpu_custom_call.1} parent=47 // pred_fallthru
          _
        // Predicated region
        $region85: #{tpu_custom_call.1} parent=47 // pred_check
          %p2689 = pneg %p250
        $region86: #{tpu_custom_call.1} parent=47 // pred_check_branch
          %2691 = sbr.rel (%p2689) target = $region88
        $region87: #{tpu_custom_call.1} parent=47 // pred_region
          _
        $region88: #{tpu_custom_call.1} parent=47 // pred_fallthru
          _
        // Predicated region
        $region89: #{tpu_custom_call.1} parent=47 // pred_check
          %p2692 = pneg %p276
        $region90: #{tpu_custom_call.1} parent=47 // pred_check_branch
          %2694 = sbr.rel (%p2692) target = $region92
        $region91: #{tpu_custom_call.1} parent=47 // pred_region
          _
        $region92: #{tpu_custom_call.1} parent=47 // pred_fallthru
          _
        // Predicated region
        $region93: #{tpu_custom_call.1} parent=47 // pred_check
          %p2695 = pneg %p308
        $region94: #{tpu_custom_call.1} parent=47 // pred_check_branch
          %2697 = sbr.rel (%p2695) target = $region96
        $region95: #{tpu_custom_call.1} parent=47 // pred_region
          %s2698 = ssub.s32 1, %s34
          %s2699 = smul.u32 %s35, %s2698
          %s2700 = smul.u32 16, %s2699
          %2702 = vsyncadd %s2678, 0
          %s2703 = smul.addr %s33, 16
          %s2704 = sadd.s32 %s2700, %s2703
          %s2705 = smul.addr %s2704, 8
          %s2706 = scalar_lea.hbm %s10, %s2705
          %s2707 = sshll.u32 %s2681, 4
          %s2708 = int_to_ptr.vmem [resolvable:$true] %s2707
          %s2709 = sshll.u32 %s2706, 4
          %s2710 = int_to_ptr.hbm [resolvable:$true] %s2709
          %2715 = dma.vmem_to_hbm [thread:$0]  %s2708, 2048, %s2710, %s2678, 128, 128, 8
        $region96: #{tpu_custom_call.1} parent=47 // pred_fallthru
          _
        // Predicated region
        $region97: #{tpu_custom_call.1} parent=47 // pred_check
          %p2716 = pneg %p334
        $region98: #{tpu_custom_call.1} parent=47 // pred_check_branch
          %2718 = sbr.rel (%p2716) target = $region100
        $region99: #{tpu_custom_call.1} parent=47 // pred_region
          _
        $region100: #{tpu_custom_call.1} parent=47 // pred_fallthru
          _
      $region48: #{tpu_custom_call.1} parent=5 // pred_fallthru
        _
      %p2719 = scmp.le.s32.totalorder 2, %s23
      // Predicated region
      $region101: #{tpu_custom_call.1} parent=5 // pred_check
        %p2720 = pneg %p2719
      $region102: #{tpu_custom_call.1} parent=5 // pred_check_branch
        %2722 = sbr.rel (%p2720) target = $region104
      $region103: #{tpu_custom_call.1} parent=5 // pred_region
        %s2723 = ssub.s32 %s23, 2
        // Predicated region
        $region105: #{tpu_custom_call.1} parent=103 // pred_check
          %p2724 = pneg %p230
        $region106: #{tpu_custom_call.1} parent=103 // pred_check_branch
          %2726 = sbr.rel (%p2724) target = $region108
        $region107: #{tpu_custom_call.1} parent=103 // pred_region
          %p2727 = scmp.lt.s32.totalorder %s36, 1
          %s2728 = scalar_select %p2727, %s36, 1
          %s2729 = smul.addr %s2728, 8
          %s2730 = scalar_lea.vmem %s7, %s2729
        $region108: #{tpu_custom_call.1} parent=103 // pred_fallthru
          _
        // Predicated region
        $region109: #{tpu_custom_call.1} parent=103 // pred_check
          %p2731 = pneg %p256
        $region110: #{tpu_custom_call.1} parent=103 // pred_check_branch
          %2733 = sbr.rel (%p2731) target = $region112
        $region111: #{tpu_custom_call.1} parent=103 // pred_region
          %p2734 = scmp.lt.s32.totalorder %s36, 1
          %s2735 = scalar_select %p2734, %s36, 1
          %s2736 = scalar_lea.vmem %s8, %s2735
        $region112: #{tpu_custom_call.1} parent=103 // pred_fallthru
          _
        // Predicated region
        $region113: #{tpu_custom_call.1} parent=103 // pred_check
          %p2737 = pneg %p282
        $region114: #{tpu_custom_call.1} parent=103 // pred_check_branch
          %2739 = sbr.rel (%p2737) target = $region116
        $region115: #{tpu_custom_call.1} parent=103 // pred_region
          %p2740 = scmp.lt.s32.totalorder %s36, 1
          %s2741 = scalar_select %p2740, %s36, 1
          %s2742 = scalar_lea.vmem %s9, %s2741
        $region116: #{tpu_custom_call.1} parent=103 // pred_fallthru
          _
        // Predicated region
        $region117: #{tpu_custom_call.1} parent=103 // pred_check
          %p2743 = pneg %p314
        $region118: #{tpu_custom_call.1} parent=103 // pred_check_branch
          %2745 = sbr.rel (%p2743) target = $region120
        $region119: #{tpu_custom_call.1} parent=103 // pred_region
          %s2746 = sand.u32 %s299, 1
          %s2747 = scalar_lea.sflag [#allocation9], %s2746
          %s2748 = sand.u32 %s299, 1
          %s2749 = smul.addr %s2748, 128
          %s2750 = scalar_lea.vmem [#allocation13], %s2749
          %2752 = dma.done %s2747, 2048
        $region120: #{tpu_custom_call.1} parent=103 // pred_fallthru
          _
        // Predicated region
        $region121: #{tpu_custom_call.1} parent=103 // pred_check
          %p2753 = pneg %p340
        $region122: #{tpu_custom_call.1} parent=103 // pred_check_branch
          %2755 = sbr.rel (%p2753) target = $region124
        $region123: #{tpu_custom_call.1} parent=103 // pred_region
          %p2756 = scmp.lt.s32.totalorder %s36, 1
          %s2757 = scalar_select %p2756, %s36, 1
          %s2758 = smul.addr %s2757, 8
          %s2759 = scalar_lea.vmem %s11, %s2758
        $region124: #{tpu_custom_call.1} parent=103 // pred_fallthru
          _
      $region104: #{tpu_custom_call.1} parent=5 // pred_fallthru
        _
    $region6: #{tpu_custom_call.1} parent=1 // loop_footer
      %s27 = sadd.s32 1, %s23
    $region7: #{tpu_custom_call.1} parent=1 // loop_footer_branch
      %22 = sbr.rel target = $region3
    $region8: #{tpu_custom_call.1} parent=1 // loop_exit
      _
    %2760 = vsyncpa [#allocation8], 1
    %s2761 = scalar_lea.sflag [#allocation8], 1
    %2762 = vsyncpa %s2761, 1
    %2763 = vsyncpa [#allocation11], 1
    %2764 = vsyncpa [#allocation9], 1
    %s2765 = scalar_lea.sflag [#allocation9], 1
    %2766 = vsyncpa %s2765, 1

</llo_original>
